<compile_context>
chip_gen: v7x
topology: tpu7x:2x2x1
jax: 0.10.0
libtpu: 0.0.40
codegen_flags: <defaults>
</compile_context>

<pallas_src>
import math

import jax
import jax.numpy as jnp
from jax.experimental import pallas as pl
from jax.experimental.pallas import tpu as pltpu

# CartPole-v0: observation dim 4, action dim 2.
IN_SIZE = 4
H1, H2, H3 = 300, 150, 75
OUT_SIZE = 2

# Zero-padded dims used by the kernel (lane/sublane friendly; padding is zeros
# so results are bit-for-bit what the unpadded math would give).
IN_P = 8
H1P, H2P, H3P = 384, 256, 128

TILE_B = 256          # batch tile (multiple of 128); bump to 512-1024 for huge rollouts
ACT_DTYPE = jnp.bfloat16   # bias-add/ReLU dtype: bf16 for v6e/v7x; use jnp.float32 on v5e


def actor_net_kernel(xT_ref, w1_ref, b1_ref, w2_ref, b2_ref, w3_ref, b3_ref,
                     dw4_ref, db4_ref, out_ref):
    tb = out_ref.shape[1]                               # batch tile width (lanes)
    col = pl.multiple_of(pl.program_id(0) * tb, 128)    # 128-aligned lane window
    xT = xT_ref[:, pl.ds(col, tb)]                      # [IN_P, tb] bf16 (resident slab)

    # ---- fc1 + ReLU.  K=8 is a low-utilization vmatmul, but it keeps the VALU
    #      free and avoids per-feature lane broadcasts in this layout.
    h = jnp.dot(w1_ref[...], xT, preferred_element_type=jnp.float32)   # [H1P, tb] f32
    h = jnp.maximum(h.astype(ACT_DTYPE) + b1_ref[...], 0)

    # ---- fc2 + ReLU (bf16 MXU operands, f32 accumulation; bf16 bias/ReLU).
    h = jnp.dot(w2_ref[...], h.astype(w2_ref.dtype),
                preferred_element_type=jnp.float32)                    # [H2P, tb]
    h = jnp.maximum(h.astype(ACT_DTYPE) + b2_ref[...], 0)

    # ---- fc3 + ReLU.
    h = jnp.dot(w3_ref[...], h.astype(w3_ref.dtype),
                preferred_element_type=jnp.float32)                    # [H3P, tb]
    h = jnp.maximum(h.astype(ACT_DTYPE) + b3_ref[...], 0)

    # ---- 2-class softmax folded into a sigmoid of the logit difference:
    #        neg_d[b] = l0[b] - l1[b] = dw4 . h[:, b] + db4
    #        p1       = 1 / (1 + exp(neg_d))            (exactly softmax, overflow safe)
    neg_d = jnp.dot(dw4_ref[...], h.astype(dw4_ref.dtype),
                    preferred_element_type=jnp.float32) + db4_ref[0, 0]   # [1, tb]
    p1 = pl.reciprocal(1.0 + jnp.exp(neg_d), approx=True)                 # EUP, ~free
    out_ref[...] = p1.astype(out_ref.dtype)              # lane-dense (1, tb) store


def actor_net_forward(x, packed, *, tile_b=TILE_B, core_parallel=False):
    """x: [B, IN_SIZE] float32 -> [B, OUT_SIZE] action probabilities."""
    assert tile_b % 128 == 0, "tile_b must be a multiple of the 128-lane width"
    B = x.shape[0]
    n_tiles = pl.cdiv(B, tile_b)
    Bp = n_tiles * tile_b

    # Batch-on-lanes, feature-padded bf16 input slab.  It is tiny (8*Bp*2 B),
    # so it is made fully VMEM-resident (constant index_map): no per-step
    # input DMA at all; each grid step slices its 128-aligned lane window.
    xT = jnp.zeros((IN_P, Bp), jnp.bfloat16)
    xT = xT.at[:IN_SIZE, :B].set(x.T.astype(jnp.bfloat16))

    def resident(shape):
        # Same block every grid step -> DMA'd once, stays resident in VMEM.
        return pl.BlockSpec(shape, lambda i: (0, 0))

    p1 = pl.pallas_call(
        actor_net_kernel,
        out_shape=jax.ShapeDtypeStruct((1, Bp), jnp.float32),
        grid_spec=pltpu.PrefetchScalarGridSpec(
            num_scalar_prefetch=0,
            grid=(n_tiles,),
            in_specs=[
                resident((IN_P, Bp)),                         # x (transposed, resident)
                resident((H1P, IN_P)),  resident((H1P, 1)),   # fc1
                resident((H2P, H1P)),   resident((H2P, 1)),   # fc2
                resident((H3P, H2P)),   resident((H3P, 1)),   # fc3
                resident((1, H3P)),                           # dw4 (folded 2-class head)
                pl.BlockSpec(memory_space=pltpu.MemorySpace.SMEM),   # db4 scalar
            ],
            # Lane-dense p1-only output: (1, tile_b) per step -> unmasked vst rows.
            out_specs=pl.BlockSpec((1, tile_b), lambda i: (0, i)),
        ),
        compiler_params=pltpu.CompilerParams(
            # core_parallel=True shards the batch grid across the two
            # TensorCores on v7x; the portable default keeps "parallel".
            dimension_semantics=(
                pltpu.CORE_PARALLEL if core_parallel else pltpu.PARALLEL,),
        ),
    )(xT,
      packed["w1T"], packed["b1"],
      packed["w2T"], packed["b2"],
      packed["w3T"], packed["b3"],
      packed["dw4"], packed["db4"])

    p1 = p1[0, :B]
    return jnp.stack([1.0 - p1, p1], axis=-1)


# ----------------------------------------------------------------------------
# Parameter initialization (mirrors the PyTorch module) and kernel-layout packing.
# ----------------------------------------------------------------------------
def _xavier_uniform(key, fan_in, fan_out):
    bound = math.sqrt(6.0 / (fan_in + fan_out))
    return jax.random.uniform(key, (fan_in, fan_out), jnp.float32, -bound, bound)


def init_params(key):
    """Logical f32 parameters, initialized exactly like the PyTorch module
    (xavier_uniform weights, biases filled with 0.01; `out` bias keeps the
    default nn.Linear init U(+-1/sqrt(75)))."""
    ks = jax.random.split(key, 5)
    return {
        "w1": _xavier_uniform(ks[0], IN_SIZE, H1), "b1": jnp.full((H1,), 0.01, jnp.float32),
        "w2": _xavier_uniform(ks[1], H1, H2),      "b2": jnp.full((H2,), 0.01, jnp.float32),
        "w3": _xavier_uniform(ks[2], H2, H3),      "b3": jnp.full((H3,), 0.01, jnp.float32),
        "w4": _xavier_uniform(ks[3], H3, OUT_SIZE),
        "b4": jax.random.uniform(ks[4], (OUT_SIZE,), jnp.float32,
                                 -1.0 / math.sqrt(H3), 1.0 / math.sqrt(H3)),
    }


def pack_params(p):
    """Pad hidden dims to lane/sublane multiples, transpose into the
    batch-on-lanes kernel layout, cast MXU operands to bf16, and fold the
    2-class head into (dw4, db4)."""
    def padT(w, rows_to, cols_to):
        # w: [in, out] f32 -> wT zero-padded to [rows_to, cols_to], bf16.
        wT = jnp.zeros((rows_to, cols_to), jnp.float32)
        wT = wT.at[:w.shape[1], :w.shape[0]].set(w.T)
        return wT.astype(jnp.bfloat16)

    def pad_bias(b, to):
        return jnp.zeros((to, 1), jnp.float32).at[:b.shape[0], 0].set(b).astype(ACT_DTYPE)

    dw4 = p["w4"][:, 0] - p["w4"][:, 1]                         # [H3]
    db4 = p["b4"][0] - p["b4"][1]                               # scalar
    return {
        "w1T": padT(p["w1"], H1P, IN_P), "b1": pad_bias(p["b1"], H1P),
        "w2T": padT(p["w2"], H2P, H1P),  "b2": pad_bias(p["b2"], H2P),
        "w3T": padT(p["w3"], H3P, H2P),  "b3": pad_bias(p["b3"], H3P),
        "dw4": jnp.zeros((1, H3P), jnp.float32).at[0, :H3].set(dw4).astype(jnp.bfloat16),
        "db4": jnp.reshape(db4, (1, 1)).astype(jnp.float32),
    }


# ----------------------------------------------------------------------------
# References for testing.
# ----------------------------------------------------------------------------
def actor_net_reference(x, packed):
    """Pure-JAX mirror of the kernel's exact dtype recipe (tight comparison)."""
    B = x.shape[0]
    xT = jnp.zeros((IN_P, B), jnp.bfloat16).at[:IN_SIZE].set(x.T.astype(jnp.bfloat16))
    h = jnp.dot(packed["w1T"], xT, preferred_element_type=jnp.float32)
    h = jnp.maximum(h.astype(ACT_DTYPE) + packed["b1"], 0)
    h = jnp.dot(packed["w2T"], h.astype(packed["w2T"].dtype),
                preferred_element_type=jnp.float32)
    h = jnp.maximum(h.astype(ACT_DTYPE) + packed["b2"], 0)
    h = jnp.dot(packed["w3T"], h.astype(packed["w3T"].dtype),
                preferred_element_type=jnp.float32)
    h = jnp.maximum(h.astype(ACT_DTYPE) + packed["b3"], 0)
    neg_d = jnp.dot(packed["dw4"], h.astype(packed["dw4"].dtype),
                    preferred_element_type=jnp.float32) + packed["db4"][0, 0]
    p1 = (1.0 / (1.0 + jnp.exp(neg_d)))[0]
    return jnp.stack([1.0 - p1, p1], axis=-1)


def actor_net_reference_f32(x, logical):
    """Straight f32 port of the PyTorch forward (softmax included)."""
    h = jnp.maximum(x @ logical["w1"] + logical["b1"], 0.0)
    h = jnp.maximum(h @ logical["w2"] + logical["b2"], 0.0)
    h = jnp.maximum(h @ logical["w3"] + logical["b3"], 0.0)
    logits = h @ logical["w4"] + logical["b4"]
    return jax.nn.softmax(logits, axis=-1)


if __name__ == "__main__":
    key = jax.random.PRNGKey(0)
    k_param, k_x = jax.random.split(key)
    logical = init_params(k_param)
    params = pack_params(logical)

    B = 512                      # two 256-row batch tiles -> exercises the grid
    x = jax.random.normal(k_x, (B, IN_SIZE), jnp.float32)

    out = jax.block_until_ready(actor_net_forward(x, params))
    assert out.shape == (B, OUT_SIZE)
    assert bool(jnp.allclose(jnp.sum(out, axis=-1), 1.0, atol=1e-5))

    # Tight check against a pure-JAX mirror of the kernel's dtype recipe.
    ref = actor_net_reference(x, params)
    assert bool(jnp.allclose(out, ref, atol=2e-3, rtol=2e-3))

    # Loose check against the straight f32 PyTorch-equivalent forward
    # (validates the padding / transposition / folded-head packing itself).
    ref32 = actor_net_reference_f32(x, logical)
    assert bool(jnp.allclose(out, ref32, atol=3e-2))

    # Batch that is not a multiple of tile_b (padding path).
    out2 = jax.block_until_ready(actor_net_forward(x[:37], params))
    assert out2.shape == (37, OUT_SIZE)
    assert bool(jnp.allclose(out2, ref[:37], atol=2e-3, rtol=2e-3))

    print("KERNEL_OK")
</pallas_src>

<mosaic_0001>
module attributes {stable_mosaic.version = 11 : i64} {
  func.func @actor_net_kernel(%arg0: i32, %arg1: memref<8x512xbf16, #tpu.memory_space<vmem>>, %arg2: memref<384x8xbf16, #tpu.memory_space<vmem>>, %arg3: memref<384x1xbf16, #tpu.memory_space<vmem>>, %arg4: memref<256x384xbf16, #tpu.memory_space<vmem>>, %arg5: memref<256x1xbf16, #tpu.memory_space<vmem>>, %arg6: memref<128x256xbf16, #tpu.memory_space<vmem>>, %arg7: memref<128x1xbf16, #tpu.memory_space<vmem>>, %arg8: memref<1x128xbf16, #tpu.memory_space<vmem>>, %arg9: memref<1x1xf32, #tpu.memory_space<smem>>, %arg10: memref<1x256xf32, #tpu.memory_space<vmem>>) attributes {dimension_semantics = [#tpu.dimension_semantics<parallel>], iteration_bounds = array<i64: 2>, scalar_prefetch = 0 : i64, scratch_operands = 0 : i64, tpu.core_type = #tpu.core_type<tc>, window_params = [{pipeline_mode = #tpu.pipeline_mode<synchronous>, transform_indices = @transform_0, window_bounds = array<i64: 8, 512>}, {pipeline_mode = #tpu.pipeline_mode<synchronous>, transform_indices = @transform_1, window_bounds = array<i64: 384, 8>}, {pipeline_mode = #tpu.pipeline_mode<synchronous>, transform_indices = @transform_2, window_bounds = array<i64: 384, 1>}, {pipeline_mode = #tpu.pipeline_mode<synchronous>, transform_indices = @transform_3, window_bounds = array<i64: 256, 384>}, {pipeline_mode = #tpu.pipeline_mode<synchronous>, transform_indices = @transform_4, window_bounds = array<i64: 256, 1>}, {pipeline_mode = #tpu.pipeline_mode<synchronous>, transform_indices = @transform_5, window_bounds = array<i64: 128, 256>}, {pipeline_mode = #tpu.pipeline_mode<synchronous>, transform_indices = @transform_6, window_bounds = array<i64: 128, 1>}, {pipeline_mode = #tpu.pipeline_mode<synchronous>, transform_indices = @transform_7, window_bounds = array<i64: 1, 128>}, {transform_indices = @transform_8, window_bounds = array<i64: 1, 1>}, {transform_indices = @transform_9, window_bounds = array<i64: 1, 256>}]} {
    %c256_i32 = arith.constant 256 : i32
    %0 = arith.muli %arg0, %c256_i32 : i32
    %1 = tpu.assume_multiple %0, 128 : i32
    %c0 = arith.constant 0 : index
    %2 = arith.index_cast %1 : i32 to index
    %3 = vector.load %arg1[%c0, %2] : memref<8x512xbf16, #tpu.memory_space<vmem>>, vector<8x256xbf16>
    %c0_0 = arith.constant 0 : index
    %c0_1 = arith.constant 0 : index
    %4 = vector.load %arg2[%c0_0, %c0_1] : memref<384x8xbf16, #tpu.memory_space<vmem>>, vector<384x8xbf16>
    %cst = arith.constant dense<0.000000e+00> : vector<384x256xf32>
    %5 = tpu.matmul %4, %3, %cst {dimension_numbers = #tpu.dot_dimension_numbers<[1], [0], [0], [1], [0, 0, 1, 1], [], []>} : vector<384x8xbf16>, vector<8x256xbf16>, vector<384x256xf32> -> vector<384x256xf32>
    %6 = arith.truncf %5 : vector<384x256xf32> to vector<384x256xbf16>
    %c0_2 = arith.constant 0 : index
    %c0_3 = arith.constant 0 : index
    %7 = vector.load %arg3[%c0_2, %c0_3] : memref<384x1xbf16, #tpu.memory_space<vmem>>, vector<384x1xbf16>
    %8 = vector.broadcast %7 : vector<384x1xbf16> to vector<384x256xbf16>
    %9 = arith.addf %6, %8 : vector<384x256xbf16>
    %cst_4 = arith.constant 0.000000e+00 : bf16
    %10 = vector.broadcast %cst_4 : bf16 to vector<384x256xbf16>
    %11 = arith.maximumf %9, %10 : vector<384x256xbf16>
    %c0_5 = arith.constant 0 : index
    %c0_6 = arith.constant 0 : index
    %12 = vector.load %arg4[%c0_5, %c0_6] : memref<256x384xbf16, #tpu.memory_space<vmem>>, vector<256x384xbf16>
    %cst_7 = arith.constant dense<0.000000e+00> : vector<256x256xf32>
    %13 = tpu.matmul %12, %11, %cst_7 {dimension_numbers = #tpu.dot_dimension_numbers<[1], [0], [0], [1], [0, 0, 1, 1], [], []>} : vector<256x384xbf16>, vector<384x256xbf16>, vector<256x256xf32> -> vector<256x256xf32>
    %14 = arith.truncf %13 : vector<256x256xf32> to vector<256x256xbf16>
    %c0_8 = arith.constant 0 : index
    %c0_9 = arith.constant 0 : index
    %15 = vector.load %arg5[%c0_8, %c0_9] : memref<256x1xbf16, #tpu.memory_space<vmem>>, vector<256x1xbf16>
    %16 = vector.broadcast %15 : vector<256x1xbf16> to vector<256x256xbf16>
    %17 = arith.addf %14, %16 : vector<256x256xbf16>
    %cst_10 = arith.constant 0.000000e+00 : bf16
    %18 = vector.broadcast %cst_10 : bf16 to vector<256x256xbf16>
    %19 = arith.maximumf %17, %18 : vector<256x256xbf16>
    %c0_11 = arith.constant 0 : index
    %c0_12 = arith.constant 0 : index
    %20 = vector.load %arg6[%c0_11, %c0_12] : memref<128x256xbf16, #tpu.memory_space<vmem>>, vector<128x256xbf16>
    %cst_13 = arith.constant dense<0.000000e+00> : vector<128x256xf32>
    %21 = tpu.matmul %20, %19, %cst_13 {dimension_numbers = #tpu.dot_dimension_numbers<[1], [0], [0], [1], [0, 0, 1, 1], [], []>} : vector<128x256xbf16>, vector<256x256xbf16>, vector<128x256xf32> -> vector<128x256xf32>
    %22 = arith.truncf %21 : vector<128x256xf32> to vector<128x256xbf16>
    %c0_14 = arith.constant 0 : index
    %c0_15 = arith.constant 0 : index
    %23 = vector.load %arg7[%c0_14, %c0_15] : memref<128x1xbf16, #tpu.memory_space<vmem>>, vector<128x1xbf16>
    %24 = vector.broadcast %23 : vector<128x1xbf16> to vector<128x256xbf16>
    %25 = arith.addf %22, %24 : vector<128x256xbf16>
    %cst_16 = arith.constant 0.000000e+00 : bf16
    %26 = vector.broadcast %cst_16 : bf16 to vector<128x256xbf16>
    %27 = arith.maximumf %25, %26 : vector<128x256xbf16>
    %c0_17 = arith.constant 0 : index
    %c0_18 = arith.constant 0 : index
    %28 = vector.load %arg8[%c0_17, %c0_18] : memref<1x128xbf16, #tpu.memory_space<vmem>>, vector<1x128xbf16>
    %cst_19 = arith.constant dense<0.000000e+00> : vector<1x256xf32>
    %29 = tpu.matmul %28, %27, %cst_19 {dimension_numbers = #tpu.dot_dimension_numbers<[1], [0], [0], [1], [0, 0, 1, 1], [], []>} : vector<1x128xbf16>, vector<128x256xbf16>, vector<1x256xf32> -> vector<1x256xf32>
    %c0_20 = arith.constant 0 : index
    %c0_21 = arith.constant 0 : index
    %30 = memref.load %arg9[%c0_20, %c0_21] : memref<1x1xf32, #tpu.memory_space<smem>>
    %31 = vector.broadcast %30 : f32 to vector<1x256xf32>
    %32 = arith.addf %29, %31 : vector<1x256xf32>
    %33 = math.exp %32 : vector<1x256xf32>
    %cst_22 = arith.constant 1.000000e+00 : f32
    %34 = vector.broadcast %cst_22 : f32 to vector<1x256xf32>
    %35 = arith.addf %34, %33 : vector<1x256xf32>
    %36 = tpu.reciprocal %35 {approx = true} : vector<1x256xf32> -> vector<1x256xf32>
    %c0_23 = arith.constant 0 : index
    %c0_24 = arith.constant 0 : index
    %37 = vector.load %arg10[%c0_23, %c0_24] : memref<1x256xf32, #tpu.memory_space<vmem>>, vector<1x256xf32>
    tpu.vector_store %arg10[%c0_23, %c0_24], %36 {strides = array<i32>} : memref<1x256xf32, #tpu.memory_space<vmem>>, vector<1x256xf32>,
    return
  }
  func.func @transform_0(%arg0: i32) -> (i32, i32) {
    %c0_i32 = arith.constant 0 : i32
    %c0_i32_0 = arith.constant 0 : i32
    %c0_i32_1 = arith.constant 0 : i32
    return %c0_i32, %c0_i32_0 : i32, i32
  }
  func.func @transform_1(%arg0: i32) -> (i32, i32) {
    %c0_i32 = arith.constant 0 : i32
    %c0_i32_0 = arith.constant 0 : i32
    %c0_i32_1 = arith.constant 0 : i32
    return %c0_i32, %c0_i32_0 : i32, i32
  }
  func.func @transform_2(%arg0: i32) -> (i32, i32) {
    %c0_i32 = arith.constant 0 : i32
    %c0_i32_0 = arith.constant 0 : i32
    %c0_i32_1 = arith.constant 0 : i32
    return %c0_i32, %c0_i32_0 : i32, i32
  }
  func.func @transform_3(%arg0: i32) -> (i32, i32) {
    %c0_i32 = arith.constant 0 : i32
    %c0_i32_0 = arith.constant 0 : i32
    %c0_i32_1 = arith.constant 0 : i32
    return %c0_i32, %c0_i32_0 : i32, i32
  }
  func.func @transform_4(%arg0: i32) -> (i32, i32) {
    %c0_i32 = arith.constant 0 : i32
    %c0_i32_0 = arith.constant 0 : i32
    %c0_i32_1 = arith.constant 0 : i32
    return %c0_i32, %c0_i32_0 : i32, i32
  }
  func.func @transform_5(%arg0: i32) -> (i32, i32) {
    %c0_i32 = arith.constant 0 : i32
    %c0_i32_0 = arith.constant 0 : i32
    %c0_i32_1 = arith.constant 0 : i32
    return %c0_i32, %c0_i32_0 : i32, i32
  }
  func.func @transform_6(%arg0: i32) -> (i32, i32) {
    %c0_i32 = arith.constant 0 : i32
    %c0_i32_0 = arith.constant 0 : i32
    %c0_i32_1 = arith.constant 0 : i32
    return %c0_i32, %c0_i32_0 : i32, i32
  }
  func.func @transform_7(%arg0: i32) -> (i32, i32) {
    %c0_i32 = arith.constant 0 : i32
    %c0_i32_0 = arith.constant 0 : i32
    %c0_i32_1 = arith.constant 0 : i32
    return %c0_i32, %c0_i32_0 : i32, i32
  }
  func.func @transform_8(%arg0: i32) -> (i32, i32) {
    %c0_i32 = arith.constant 0 : i32
    %c0_i32_0 = arith.constant 0 : i32
    %c0_i32_1 = arith.constant 0 : i32
    return %c0_i32, %c0_i32_0 : i32, i32
  }
  func.func @transform_9(%arg0: i32) -> (i32, i32) {
    %c0_i32 = arith.constant 0 : i32
    %c0_i32_0 = arith.constant 0 : i32
    return %c0_i32, %arg0 : i32, i32
  }
}

</mosaic_0001>

<llo_original>
// kernel: tpu_custom_call.1
$region0: #{tpu_custom_call.1}
  #allocation0 [shape = 'u32[]', space=smem, size = 0x4, offset = 0x4, fixed_abs, tag = 'smem constant byte address 0x4 - core index']
  #allocation1 [shape = 'u32[144,128]{1,0:T(1,128)}', space=vmem, size = 0x12000, scoped, tag = 'internal scratch']
  #allocation2 [shape = 'f32[1,1]{1,0:T(1,128)S(6)}', space=smem, size = 0x200, scoped, tag = 'scoped memory for tpu_custom_call.1']
  %s0 = inlined_call_operand.vmem [shape: bf16[8,512], index: 0, kind: input, shape index: {}]
  %s1 = inlined_call_operand.vmem [shape: bf16[384,8], index: 1, kind: input, shape index: {}]
  %s2 = inlined_call_operand.vmem [shape: bf16[384,1], index: 2, kind: input, shape index: {}]
  %s3 = inlined_call_operand.vmem [shape: bf16[256,384], index: 3, kind: input, shape index: {}]
  %s4 = inlined_call_operand.vmem [shape: bf16[256,1], index: 4, kind: input, shape index: {}]
  %s5 = inlined_call_operand.vmem [shape: bf16[128,256], index: 5, kind: input, shape index: {}]
  %s6 = inlined_call_operand.vmem [shape: bf16[128,1], index: 6, kind: input, shape index: {}]
  %s7 = inlined_call_operand.vmem [shape: bf16[1,128], index: 7, kind: input, shape index: {}]
  %s8 = inlined_call_operand.<no memory space> [shape: f32[1,1], index: 8, kind: input, shape index: {}]
  %s9 = inlined_call_operand.hbm [shape: f32[1,512], index: 9, kind: output, shape index: {}]
  %s10 = sld [smem:[#allocation0]]
  $region69: #{tpu_custom_call.1} parent=0
    _
  %s12 = ssub.s32 1, %s10
  %s13 = scalar_select 0, %s12, %s10
  %14 = sst [smem:[#allocation2]] %s8
  $region1: #{tpu_custom_call.1} parent=0
    #allocation3 [shape = 'u8[2048]{0}', space=vmem, size = 0x800, scoped, tag = 'output window, operand 0']
    #allocation4 [shape = 's32[2]{0}', space=sflag, size = 0x8, scoped, tag = 'scoped memory for tpu_custom_call.1']
    %15 = vsyncpa [#allocation4], 0
    %s16 = scalar_lea.sflag [#allocation4], 1
    %17 = vsyncpa %s16, 0
    loop: start=0, step=1, limit=4
    $region2: #{tpu_custom_call.1} parent=1 // loop_pre_header
      _
    $region3: #{tpu_custom_call.1} parent=1 // loop_header
      %s19 = sphi 0, %s23
      %p20 = scmp.ge.s32.totalorder %s19, 4
      %s27 = sphi 0, %s27
      %s29 = sphi 0, %s27
      %s30 = sphi 0, %s29
      %s44 = sphi 0, %s30
      %s48 = sphi 0, %s48
      %s50 = sphi 0, %s48
      %s51 = sphi 0, %s50
      %s65 = sphi 0, %s51
      %s69 = sphi 0, %s69
      %s71 = sphi 0, %s69
      %s72 = sphi 0, %s71
      %s86 = sphi 0, %s72
      %s90 = sphi 0, %s90
      %s92 = sphi 0, %s90
      %s93 = sphi 0, %s92
      %s107 = sphi 0, %s93
      %s111 = sphi 0, %s111
      %s113 = sphi 0, %s111
      %s114 = sphi 0, %s113
      %s128 = sphi 0, %s114
      %s132 = sphi 0, %s132
      %s134 = sphi 0, %s132
      %s135 = sphi 0, %s134
      %s149 = sphi 0, %s135
      %s153 = sphi 0, %s153
      %s155 = sphi 0, %s153
      %s156 = sphi 0, %s155
      %s170 = sphi 0, %s156
      %s174 = sphi 0, %s174
      %s176 = sphi 0, %s174
      %s177 = sphi 0, %s176
      %s191 = sphi 0, %s177
      %s195 = sphi 0, %s195
      %s197 = sphi 0, %s195
      %s198 = sphi 0, %s197
      %s212 = sphi 0, %s198
      %s218 = sphi 0, %s220
      %s221 = sphi 0, %s218
      %s222 = sphi 0, %s221
      %s238 = sphi 0, %s222
    $region4: #{tpu_custom_call.1} parent=1 // loop_header_branch
      %22 = sbr.rel (%p20) target = $region8
    $region5: #{tpu_custom_call.1} parent=1 // loop_body
      %s24 = ssub.s32 %s19, 1
      %s25 = ssub.s32 %s19, 2
      %s26 = sadd.s32 %s19, 1
      %s28 = sadd.s32 %s27, 1
      %p31 = scmp.eq.s32.totalorder %s19, 1
      %p32 = scmp.ne.s32.totalorder %s27, %s29
      %p33 = scmp.eq.s32.totalorder %s19, 0
      %p34 = por %p32, %p33
      %p35 = scmp.ne.s32.totalorder %s27, %s29
      %p36 = scmp.eq.s32.totalorder %s24, 1
      %p37 = por %p35, %p36
      %p38 = scmp.ne.s32.totalorder %s29, %s30
      %p39 = scmp.eq.s32.totalorder %s24, 0
      %p40 = por %p38, %p39
      %p41 = scmp.ne.s32.totalorder %s29, %s30
      %p42 = scmp.eq.s32.totalorder %s25, 1
      %p43 = por %p41, %p42
      %p45 = scmp.ne.s32.totalorder %s30, %s44
      %p46 = scmp.eq.s32.totalorder %s25, 0
      %p47 = por %p45, %p46
      %s49 = sadd.s32 %s48, 1
      %p52 = scmp.eq.s32.totalorder %s19, 1
      %p53 = scmp.ne.s32.totalorder %s48, %s50
      %p54 = scmp.eq.s32.totalorder %s19, 0
      %p55 = por %p53, %p54
      %p56 = scmp.ne.s32.totalorder %s48, %s50
      %p57 = scmp.eq.s32.totalorder %s24, 1
      %p58 = por %p56, %p57
      %p59 = scmp.ne.s32.totalorder %s50, %s51
      %p60 = scmp.eq.s32.totalorder %s24, 0
      %p61 = por %p59, %p60
      %p62 = scmp.ne.s32.totalorder %s50, %s51
      %p63 = scmp.eq.s32.totalorder %s25, 1
      %p64 = por %p62, %p63
      %p66 = scmp.ne.s32.totalorder %s51, %s65
      %p67 = scmp.eq.s32.totalorder %s25, 0
      %p68 = por %p66, %p67
      %s70 = sadd.s32 %s69, 1
      %p73 = scmp.eq.s32.totalorder %s19, 1
      %p74 = scmp.ne.s32.totalorder %s69, %s71
      %p75 = scmp.eq.s32.totalorder %s19, 0
      %p76 = por %p74, %p75
      %p77 = scmp.ne.s32.totalorder %s69, %s71
      %p78 = scmp.eq.s32.totalorder %s24, 1
      %p79 = por %p77, %p78
      %p80 = scmp.ne.s32.totalorder %s71, %s72
      %p81 = scmp.eq.s32.totalorder %s24, 0
      %p82 = por %p80, %p81
      %p83 = scmp.ne.s32.totalorder %s71, %s72
      %p84 = scmp.eq.s32.totalorder %s25, 1
      %p85 = por %p83, %p84
      %p87 = scmp.ne.s32.totalorder %s72, %s86
      %p88 = scmp.eq.s32.totalorder %s25, 0
      %p89 = por %p87, %p88
      %s91 = sadd.s32 %s90, 1
      %p94 = scmp.eq.s32.totalorder %s19, 1
      %p95 = scmp.ne.s32.totalorder %s90, %s92
      %p96 = scmp.eq.s32.totalorder %s19, 0
      %p97 = por %p95, %p96
      %p98 = scmp.ne.s32.totalorder %s90, %s92
      %p99 = scmp.eq.s32.totalorder %s24, 1
      %p100 = por %p98, %p99
      %p101 = scmp.ne.s32.totalorder %s92, %s93
      %p102 = scmp.eq.s32.totalorder %s24, 0
      %p103 = por %p101, %p102
      %p104 = scmp.ne.s32.totalorder %s92, %s93
      %p105 = scmp.eq.s32.totalorder %s25, 1
      %p106 = por %p104, %p105
      %p108 = scmp.ne.s32.totalorder %s93, %s107
      %p109 = scmp.eq.s32.totalorder %s25, 0
      %p110 = por %p108, %p109
      %s112 = sadd.s32 %s111, 1
      %p115 = scmp.eq.s32.totalorder %s19, 1
      %p116 = scmp.ne.s32.totalorder %s111, %s113
      %p117 = scmp.eq.s32.totalorder %s19, 0
      %p118 = por %p116, %p117
      %p119 = scmp.ne.s32.totalorder %s111, %s113
      %p120 = scmp.eq.s32.totalorder %s24, 1
      %p121 = por %p119, %p120
      %p122 = scmp.ne.s32.totalorder %s113, %s114
      %p123 = scmp.eq.s32.totalorder %s24, 0
      %p124 = por %p122, %p123
      %p125 = scmp.ne.s32.totalorder %s113, %s114
      %p126 = scmp.eq.s32.totalorder %s25, 1
      %p127 = por %p125, %p126
      %p129 = scmp.ne.s32.totalorder %s114, %s128
      %p130 = scmp.eq.s32.totalorder %s25, 0
      %p131 = por %p129, %p130
      %s133 = sadd.s32 %s132, 1
      %p136 = scmp.eq.s32.totalorder %s19, 1
      %p137 = scmp.ne.s32.totalorder %s132, %s134
      %p138 = scmp.eq.s32.totalorder %s19, 0
      %p139 = por %p137, %p138
      %p140 = scmp.ne.s32.totalorder %s132, %s134
      %p141 = scmp.eq.s32.totalorder %s24, 1
      %p142 = por %p140, %p141
      %p143 = scmp.ne.s32.totalorder %s134, %s135
      %p144 = scmp.eq.s32.totalorder %s24, 0
      %p145 = por %p143, %p144
      %p146 = scmp.ne.s32.totalorder %s134, %s135
      %p147 = scmp.eq.s32.totalorder %s25, 1
      %p148 = por %p146, %p147
      %p150 = scmp.ne.s32.totalorder %s135, %s149
      %p151 = scmp.eq.s32.totalorder %s25, 0
      %p152 = por %p150, %p151
      %s154 = sadd.s32 %s153, 1
      %p157 = scmp.eq.s32.totalorder %s19, 1
      %p158 = scmp.ne.s32.totalorder %s153, %s155
      %p159 = scmp.eq.s32.totalorder %s19, 0
      %p160 = por %p158, %p159
      %p161 = scmp.ne.s32.totalorder %s153, %s155
      %p162 = scmp.eq.s32.totalorder %s24, 1
      %p163 = por %p161, %p162
      %p164 = scmp.ne.s32.totalorder %s155, %s156
      %p165 = scmp.eq.s32.totalorder %s24, 0
      %p166 = por %p164, %p165
      %p167 = scmp.ne.s32.totalorder %s155, %s156
      %p168 = scmp.eq.s32.totalorder %s25, 1
      %p169 = por %p167, %p168
      %p171 = scmp.ne.s32.totalorder %s156, %s170
      %p172 = scmp.eq.s32.totalorder %s25, 0
      %p173 = por %p171, %p172
      %s175 = sadd.s32 %s174, 1
      %p178 = scmp.eq.s32.totalorder %s19, 1
      %p179 = scmp.ne.s32.totalorder %s174, %s176
      %p180 = scmp.eq.s32.totalorder %s19, 0
      %p181 = por %p179, %p180
      %p182 = scmp.ne.s32.totalorder %s174, %s176
      %p183 = scmp.eq.s32.totalorder %s24, 1
      %p184 = por %p182, %p183
      %p185 = scmp.ne.s32.totalorder %s176, %s177
      %p186 = scmp.eq.s32.totalorder %s24, 0
      %p187 = por %p185, %p186
      %p188 = scmp.ne.s32.totalorder %s176, %s177
      %p189 = scmp.eq.s32.totalorder %s25, 1
      %p190 = por %p188, %p189
      %p192 = scmp.ne.s32.totalorder %s177, %s191
      %p193 = scmp.eq.s32.totalorder %s25, 0
      %p194 = por %p192, %p193
      %s196 = sadd.s32 %s195, 1
      %p199 = scmp.eq.s32.totalorder %s19, 1
      %p200 = scmp.ne.s32.totalorder %s195, %s197
      %p201 = scmp.eq.s32.totalorder %s19, 0
      %p202 = por %p200, %p201
      %p203 = scmp.ne.s32.totalorder %s195, %s197
      %p204 = scmp.eq.s32.totalorder %s24, 1
      %p205 = por %p203, %p204
      %p206 = scmp.ne.s32.totalorder %s197, %s198
      %p207 = scmp.eq.s32.totalorder %s24, 0
      %p208 = por %p206, %p207
      %p209 = scmp.ne.s32.totalorder %s197, %s198
      %p210 = scmp.eq.s32.totalorder %s25, 1
      %p211 = por %p209, %p210
      %p213 = scmp.ne.s32.totalorder %s198, %s212
      %p214 = scmp.eq.s32.totalorder %s25, 0
      %p215 = por %p213, %p214
      %s216 = ssub.s32 %s19, %s26
      %p217 = scmp.eq.s32.totalorder %s216, 0
      %s219 = sadd.s32 %s218, 1
      %s220 = scalar_select %p217, %s218, %s219
      %p223 = pneg %p217
      %p224 = scmp.eq.s32.totalorder %s19, 1
      %p225 = por %p223, %p224
      %p226 = scmp.ne.s32.totalorder %s218, %s221
      %p227 = scmp.eq.s32.totalorder %s19, 0
      %p228 = por %p226, %p227
      %p229 = scmp.ne.s32.totalorder %s218, %s221
      %p230 = scmp.eq.s32.totalorder %s24, 1
      %p231 = por %p229, %p230
      %p232 = scmp.ne.s32.totalorder %s221, %s222
      %p233 = scmp.eq.s32.totalorder %s24, 0
      %p234 = por %p232, %p233
      %p235 = scmp.ne.s32.totalorder %s221, %s222
      %p236 = scmp.eq.s32.totalorder %s25, 1
      %p237 = por %p235, %p236
      %p239 = scmp.ne.s32.totalorder %s222, %s238
      %p240 = scmp.eq.s32.totalorder %s25, 0
      %p241 = por %p239, %p240
      %p242 = scmp.le.s32.totalorder 1, %s19
      %p243 = scmp.lt.s32.totalorder %s19, 3
      %p244 = pnand %p242, %p243
      %p245 = pneg %p244
      // Predicated region
      $region9: #{tpu_custom_call.1} parent=5 // pred_check
        _
      $region10: #{tpu_custom_call.1} parent=5 // pred_check_branch
        %247 = sbr.rel (%p244) target = $region12
      $region11: #{tpu_custom_call.1} parent=5 // pred_region
        %s248 = ssub.s32 %s19, 1
        // Predicated region
        $region13: #{tpu_custom_call.1} parent=11 // pred_check
          %p249 = pneg %p40
        $region14: #{tpu_custom_call.1} parent=11 // pred_check_branch
          %251 = sbr.rel (%p249) target = $region16
        $region15: #{tpu_custom_call.1} parent=11 // pred_region
          _
        $region16: #{tpu_custom_call.1} parent=11 // pred_fallthru
          _
        // Predicated region
        $region17: #{tpu_custom_call.1} parent=11 // pred_check
          %p252 = pneg %p61
        $region18: #{tpu_custom_call.1} parent=11 // pred_check_branch
          %254 = sbr.rel (%p252) target = $region20
        $region19: #{tpu_custom_call.1} parent=11 // pred_region
          _
        $region20: #{tpu_custom_call.1} parent=11 // pred_fallthru
          _
        // Predicated region
        $region21: #{tpu_custom_call.1} parent=11 // pred_check
          %p255 = pneg %p82
        $region22: #{tpu_custom_call.1} parent=11 // pred_check_branch
          %257 = sbr.rel (%p255) target = $region24
        $region23: #{tpu_custom_call.1} parent=11 // pred_region
          _
        $region24: #{tpu_custom_call.1} parent=11 // pred_fallthru
          _
        // Predicated region
        $region25: #{tpu_custom_call.1} parent=11 // pred_check
          %p258 = pneg %p103
        $region26: #{tpu_custom_call.1} parent=11 // pred_check_branch
          %260 = sbr.rel (%p258) target = $region28
        $region27: #{tpu_custom_call.1} parent=11 // pred_region
          _
        $region28: #{tpu_custom_call.1} parent=11 // pred_fallthru
          _
        // Predicated region
        $region29: #{tpu_custom_call.1} parent=11 // pred_check
          %p261 = pneg %p124
        $region30: #{tpu_custom_call.1} parent=11 // pred_check_branch
          %263 = sbr.rel (%p261) target = $region32
        $region31: #{tpu_custom_call.1} parent=11 // pred_region
          _
        $region32: #{tpu_custom_call.1} parent=11 // pred_fallthru
          _
        // Predicated region
        $region33: #{tpu_custom_call.1} parent=11 // pred_check
          %p264 = pneg %p145
        $region34: #{tpu_custom_call.1} parent=11 // pred_check_branch
          %266 = sbr.rel (%p264) target = $region36
        $region35: #{tpu_custom_call.1} parent=11 // pred_region
          _
        $region36: #{tpu_custom_call.1} parent=11 // pred_fallthru
          _
        // Predicated region
        $region37: #{tpu_custom_call.1} parent=11 // pred_check
          %p267 = pneg %p166
        $region38: #{tpu_custom_call.1} parent=11 // pred_check_branch
          %269 = sbr.rel (%p267) target = $region40
        $region39: #{tpu_custom_call.1} parent=11 // pred_region
          _
        $region40: #{tpu_custom_call.1} parent=11 // pred_fallthru
          _
        // Predicated region
        $region41: #{tpu_custom_call.1} parent=11 // pred_check
          %p270 = pneg %p187
        $region42: #{tpu_custom_call.1} parent=11 // pred_check_branch
          %272 = sbr.rel (%p270) target = $region44
        $region43: #{tpu_custom_call.1} parent=11 // pred_region
          _
        $region44: #{tpu_custom_call.1} parent=11 // pred_fallthru
          _
        // Predicated region
        $region45: #{tpu_custom_call.1} parent=11 // pred_check
          %p273 = pneg %p208
        $region46: #{tpu_custom_call.1} parent=11 // pred_check_branch
          %275 = sbr.rel (%p273) target = $region48
        $region47: #{tpu_custom_call.1} parent=11 // pred_region
          _
        $region48: #{tpu_custom_call.1} parent=11 // pred_fallthru
          _
      $region12: #{tpu_custom_call.1} parent=5 // pred_fallthru
        _
      %p276 = scmp.lt.s32.totalorder %s19, 2
      // Predicated region
      $region49: #{tpu_custom_call.1} parent=5 // pred_check
        %p277 = pneg %p276
      $region50: #{tpu_custom_call.1} parent=5 // pred_check_branch
        %279 = sbr.rel (%p277) target = $region52
      $region51: #{tpu_custom_call.1} parent=5 // pred_region
        _
      $region52: #{tpu_custom_call.1} parent=5 // pred_fallthru
        _
      %p280 = scmp.le.s32.totalorder 1, %s19
      %p281 = scmp.lt.s32.totalorder %s19, 3
      %p282 = pnand %p280, %p281
      %p283 = pneg %p282
      // Predicated region
      $region53: #{tpu_custom_call.1} parent=5 // pred_check
        _
      $region54: #{tpu_custom_call.1} parent=5 // pred_check_branch
        %285 = sbr.rel (%p282) target = $region56
      $region55: #{tpu_custom_call.1} parent=5 // pred_region
        %s286 = ssub.s32 %s19, 1
        %p287 = pneg %p40
        %p288 = pneg %p37
        %p289 = pneg %p61
        %p290 = pneg %p58
        %p291 = pneg %p82
        %p292 = pneg %p79
        %p293 = pneg %p103
        %p294 = pneg %p100
        %p295 = pneg %p124
        %p296 = pneg %p121
        %p297 = pneg %p145
        %p298 = pneg %p142
        %p299 = pneg %p166
        %p300 = pneg %p163
        %p301 = pneg %p187
        %p302 = pneg %p184
        %p303 = pneg %p208
        %p304 = pneg %p205
        %p305 = pneg %p234
        %p306 = pneg %p231
        %s307 = sand.u32 %s221, 1
        %s308 = scalar_lea.sflag [#allocation4], %s307
        %s309 = sand.u32 %s221, 1
        %s310 = smul.addr %s309, 2
        %s311 = scalar_lea.vmem [#allocation3], %s310
        %s312 = smul.u32 2, %s24
        %s314 = smul.u32 %s24, 256
        %s315 = sshra.s32 %s314, 7
        %s316 = sand.u32 %s314, 127
        %s317 = smul.addr %s315, 4
        %s318 = scalar_lea.vmem %s0, %s317
        %v319 = vld [vmem:[%s318] sm:$0xff]
        %v320 = vld [vmem:[%s1] sm:$0xf]
        %v321 = vld [vmem:[%s1 + $0x4] sm:$0xf]
        %v322 = vld [vmem:[%s1 + $0x8] sm:$0xf]
        %v323 = vld [vmem:[%s1 + $0xc] sm:$0xf]
        %v324 = vld [vmem:[%s1 + $0x10] sm:$0xf]
        %v325 = vld [vmem:[%s1 + $0x14] sm:$0xf]
        %v326 = vld [vmem:[%s1 + $0x18] sm:$0xf]
        %v327 = vld [vmem:[%s1 + $0x1c] sm:$0xf]
        %v328 = vld [vmem:[%s1 + $0x20] sm:$0xf]
        %v329 = vld [vmem:[%s1 + $0x24] sm:$0xf]
        %v330 = vld [vmem:[%s1 + $0x28] sm:$0xf]
        %v331 = vld [vmem:[%s1 + $0x2c] sm:$0xf]
        %v332 = vld [vmem:[%s1 + $0x30] sm:$0xf]
        %v333 = vld [vmem:[%s1 + $0x34] sm:$0xf]
        %v334 = vld [vmem:[%s1 + $0x38] sm:$0xf]
        %v335 = vld [vmem:[%s1 + $0x3c] sm:$0xf]
        %v336 = vld [vmem:[%s1 + $0x40] sm:$0xf]
        %v337 = vld [vmem:[%s1 + $0x44] sm:$0xf]
        %v338 = vld [vmem:[%s1 + $0x48] sm:$0xf]
        %v339 = vld [vmem:[%s1 + $0x4c] sm:$0xf]
        %v340 = vld [vmem:[%s1 + $0x50] sm:$0xf]
        %v341 = vld [vmem:[%s1 + $0x54] sm:$0xf]
        %v342 = vld [vmem:[%s1 + $0x58] sm:$0xf]
        %v343 = vld [vmem:[%s1 + $0x5c] sm:$0xf]
        %v344 = vld [vmem:[%s1 + $0x60] sm:$0xf]
        %v345 = vld [vmem:[%s1 + $0x64] sm:$0xf]
        %v346 = vld [vmem:[%s1 + $0x68] sm:$0xf]
        %v347 = vld [vmem:[%s1 + $0x6c] sm:$0xf]
        %v348 = vld [vmem:[%s1 + $0x70] sm:$0xf]
        %v349 = vld [vmem:[%s1 + $0x74] sm:$0xf]
        %v350 = vld [vmem:[%s1 + $0x78] sm:$0xf]
        %v351 = vld [vmem:[%s1 + $0x7c] sm:$0xf]
        %v352 = vld [vmem:[%s1 + $0x80] sm:$0xf]
        %v353 = vld [vmem:[%s1 + $0x84] sm:$0xf]
        %v354 = vld [vmem:[%s1 + $0x88] sm:$0xf]
        %v355 = vld [vmem:[%s1 + $0x8c] sm:$0xf]
        %v356 = vld [vmem:[%s1 + $0x90] sm:$0xf]
        %v357 = vld [vmem:[%s1 + $0x94] sm:$0xf]
        %v358 = vld [vmem:[%s1 + $0x98] sm:$0xf]
        %v359 = vld [vmem:[%s1 + $0x9c] sm:$0xf]
        %v360 = vld [vmem:[%s1 + $0xa0] sm:$0xf]
        %v361 = vld [vmem:[%s1 + $0xa4] sm:$0xf]
        %v362 = vld [vmem:[%s1 + $0xa8] sm:$0xf]
        %v363 = vld [vmem:[%s1 + $0xac] sm:$0xf]
        %v364 = vld [vmem:[%s1 + $0xb0] sm:$0xf]
        %v365 = vld [vmem:[%s1 + $0xb4] sm:$0xf]
        %v366 = vld [vmem:[%s1 + $0xb8] sm:$0xf]
        %v367 = vld [vmem:[%s1 + $0xbc] sm:$0xf]
        %v416 = vunpack.c.l.b16 %v320
        %v417 = vunpack.c.l.b16 %v321
        %v418 = vunpack.c.l.b16 %v322
        %v419 = vunpack.c.l.b16 %v323
        %v420 = vunpack.c.l.b16 %v324
        %v421 = vunpack.c.l.b16 %v325
        %v422 = vunpack.c.l.b16 %v326
        %v423 = vunpack.c.l.b16 %v327
        %v424 = vunpack.c.l.b16 %v328
        %v425 = vunpack.c.l.b16 %v329
        %v426 = vunpack.c.l.b16 %v330
        %v427 = vunpack.c.l.b16 %v331
        %v428 = vunpack.c.l.b16 %v332
        %v429 = vunpack.c.l.b16 %v333
        %v430 = vunpack.c.l.b16 %v334
        %v431 = vunpack.c.l.b16 %v335
        %v432 = vunpack.c.l.b16 %v336
        %v433 = vunpack.c.l.b16 %v337
        %v434 = vunpack.c.l.b16 %v338
        %v435 = vunpack.c.l.b16 %v339
        %v436 = vunpack.c.l.b16 %v340
        %v437 = vunpack.c.l.b16 %v341
        %v438 = vunpack.c.l.b16 %v342
        %v439 = vunpack.c.l.b16 %v343
        %v440 = vunpack.c.l.b16 %v344
        %v441 = vunpack.c.l.b16 %v345
        %v442 = vunpack.c.l.b16 %v346
        %v443 = vunpack.c.l.b16 %v347
        %v444 = vunpack.c.l.b16 %v348
        %v445 = vunpack.c.l.b16 %v349
        %v446 = vunpack.c.l.b16 %v350
        %v447 = vunpack.c.l.b16 %v351
        %v448 = vunpack.c.l.b16 %v352
        %v449 = vunpack.c.l.b16 %v353
        %v450 = vunpack.c.l.b16 %v354
        %v451 = vunpack.c.l.b16 %v355
        %v452 = vunpack.c.l.b16 %v356
        %v453 = vunpack.c.l.b16 %v357
        %v454 = vunpack.c.l.b16 %v358
        %v455 = vunpack.c.l.b16 %v359
        %v456 = vunpack.c.l.b16 %v360
        %v457 = vunpack.c.l.b16 %v361
        %v458 = vunpack.c.l.b16 %v362
        %v459 = vunpack.c.l.b16 %v363
        %v460 = vunpack.c.l.b16 %v364
        %v461 = vunpack.c.l.b16 %v365
        %v462 = vunpack.c.l.b16 %v366
        %v463 = vunpack.c.l.b16 %v367
        %v464 = vpack.c.b16 %v417, %v416
        %v465 = vpack.c.b16 %v419, %v418
        %v466 = vpack.c.b16 %v421, %v420
        %v467 = vpack.c.b16 %v423, %v422
        %v468 = vpack.c.b16 %v425, %v424
        %v469 = vpack.c.b16 %v427, %v426
        %v470 = vpack.c.b16 %v429, %v428
        %v471 = vpack.c.b16 %v431, %v430
        %v472 = vpack.c.b16 %v433, %v432
        %v473 = vpack.c.b16 %v435, %v434
        %v474 = vpack.c.b16 %v437, %v436
        %v475 = vpack.c.b16 %v439, %v438
        %v476 = vpack.c.b16 %v441, %v440
        %v477 = vpack.c.b16 %v443, %v442
        %v478 = vpack.c.b16 %v445, %v444
        %v479 = vpack.c.b16 %v447, %v446
        %v480 = vpack.c.b16 %v449, %v448
        %v481 = vpack.c.b16 %v451, %v450
        %v482 = vpack.c.b16 %v453, %v452
        %v483 = vpack.c.b16 %v455, %v454
        %v484 = vpack.c.b16 %v457, %v456
        %v485 = vpack.c.b16 %v459, %v458
        %v486 = vpack.c.b16 %v461, %v460
        %v487 = vpack.c.b16 %v463, %v462
        %v489 = vunpack.c.l.b16 %v319
        %v490 = vunpack.c.h.b16 %v319
        %v491 = vpack.c.b16 %v489, %v489
        %v492 = vpack.c.b16 %v490, %v490
        %vm493 = vcmask 64512
        %v495 = vsel %vm493, %v464, 0
        %v498 = vsel %vm493, %v465, 0
        %v501 = vsel %vm493, %v466, 0
        %v504 = vsel %vm493, %v467, 0
        %v507 = vsel %vm493, %v468, 0
        %v510 = vsel %vm493, %v469, 0
        %v513 = vsel %vm493, %v470, 0
        %v516 = vsel %vm493, %v471, 0
        %v519 = vsel %vm493, %v472, 0
        %v522 = vsel %vm493, %v473, 0
        %v525 = vsel %vm493, %v474, 0
        %v528 = vsel %vm493, %v475, 0
        %v531 = vsel %vm493, %v476, 0
        %v534 = vsel %vm493, %v477, 0
        %v537 = vsel %vm493, %v478, 0
        %v540 = vsel %vm493, %v479, 0
        %v543 = vsel %vm493, %v480, 0
        %v546 = vsel %vm493, %v481, 0
        %v549 = vsel %vm493, %v482, 0
        %v552 = vsel %vm493, %v483, 0
        %v555 = vsel %vm493, %v484, 0
        %v558 = vsel %vm493, %v485, 0
        %v561 = vsel %vm493, %v486, 0
        %v564 = vsel %vm493, %v487, 0
        %vm566 = vcmask 1043456
        %v568 = vsel %vm566, %v491, 0
        %v571 = vsel %vm566, %v492, 0
        %573 = vmatprep.subr.bf16.mxu0 %v571
        %574 = vmatpush1.bf16.msra.mxu0 %v568
        %575 = vmatprep.subr.bf16.mxu0 0
        %576 = vmatpush1.bf16.msra.mxu0 0
        %577 = vmatprep.subr.bf16.mxu0 0
        %578 = vmatpush1.bf16.msra.mxu0 0
        %579 = vmatprep.subr.bf16.mxu0 0
        %580 = vmatpush1.bf16.msra.mxu0 0
        %581 = vmatprep.subr.bf16.mxu0 0
        %582 = vmatpush1.bf16.msra.mxu0 0
        %583 = vmatprep.subr.bf16.mxu0 0
        %584 = vmatpush1.bf16.msra.mxu0 0
        %585 = vmatprep.subr.bf16.mxu0 0
        %586 = vmatpush1.bf16.msra.mxu0 0
        %587 = vmatprep.subr.bf16.mxu0 0
        %588 = vmatpush1.bf16.msra.mxu0 0
        %589 = vmatprep.subr.bf16.mxu0 0
        %590 = vmatpush1.bf16.msra.mxu0 0
        %591 = vmatprep.subr.bf16.mxu0 0
        %592 = vmatpush1.bf16.msra.mxu0 0
        %593 = vmatprep.subr.bf16.mxu0 0
        %594 = vmatpush1.bf16.msra.mxu0 0
        %595 = vmatprep.subr.bf16.mxu0 0
        %596 = vmatpush1.bf16.msra.mxu0 0
        %597 = vmatprep.subr.bf16.mxu0 0
        %598 = vmatpush1.bf16.msra.mxu0 0
        %599 = vmatprep.subr.bf16.mxu0 0
        %600 = vmatpush1.bf16.msra.mxu0 0
        %601 = vmatprep.subr.bf16.mxu0 0
        %602 = vmatpush1.bf16.msra.mxu0 0
        %603 = vmatprep.subr.bf16.mxu0 0
        %604 = vmatpush1.bf16.msra.mxu0 0
        %605 = vmatprep.mubr.bf16.mxu0 0
        %606 = vmatmul.mubr.bf16.gmra.mrb[0].mxu0 %v495
        %v607 = vpop.f32.mrb[0].mxu0
        %v608 = vadd.f32 0.0, %v607
        %v609 = vpop.f32.mrb[0].mxu0
        %v610 = vadd.f32 0.0, %v609
        %v611 = vpop.f32.mrb[0].mxu0
        %v612 = vadd.f32 0.0, %v611
        %v613 = vpop.f32.mrb[0].mxu0
        %v614 = vadd.f32 0.0, %v613
        %615 = vmatprep.mubr.bf16.mxu0 0
        %616 = vmatmul.mubr.bf16.gmra.mrb[0].mxu0 %v498
        %v617 = vpop.f32.mrb[0].mxu0
        %v618 = vadd.f32 0.0, %v617
        %v619 = vpop.f32.mrb[0].mxu0
        %v620 = vadd.f32 0.0, %v619
        %v621 = vpop.f32.mrb[0].mxu0
        %v622 = vadd.f32 0.0, %v621
        %v623 = vpop.f32.mrb[0].mxu0
        %v624 = vadd.f32 0.0, %v623
        %625 = vmatprep.mubr.bf16.mxu0 0
        %626 = vmatmul.mubr.bf16.gmra.mrb[0].mxu0 %v501
        %v627 = vpop.f32.mrb[0].mxu0
        %v628 = vadd.f32 0.0, %v627
        %v629 = vpop.f32.mrb[0].mxu0
        %v630 = vadd.f32 0.0, %v629
        %v631 = vpop.f32.mrb[0].mxu0
        %v632 = vadd.f32 0.0, %v631
        %v633 = vpop.f32.mrb[0].mxu0
        %v634 = vadd.f32 0.0, %v633
        %635 = vmatprep.mubr.bf16.mxu0 0
        %636 = vmatmul.mubr.bf16.gmra.mrb[0].mxu0 %v504
        %v637 = vpop.f32.mrb[0].mxu0
        %v638 = vadd.f32 0.0, %v637
        %v639 = vpop.f32.mrb[0].mxu0
        %v640 = vadd.f32 0.0, %v639
        %v641 = vpop.f32.mrb[0].mxu0
        %v642 = vadd.f32 0.0, %v641
        %v643 = vpop.f32.mrb[0].mxu0
        %v644 = vadd.f32 0.0, %v643
        %645 = vmatprep.mubr.bf16.mxu0 0
        %646 = vmatmul.mubr.bf16.gmra.mrb[0].mxu0 %v507
        %v647 = vpop.f32.mrb[0].mxu0
        %v648 = vadd.f32 0.0, %v647
        %v649 = vpop.f32.mrb[0].mxu0
        %v650 = vadd.f32 0.0, %v649
        %v651 = vpop.f32.mrb[0].mxu0
        %v652 = vadd.f32 0.0, %v651
        %v653 = vpop.f32.mrb[0].mxu0
        %v654 = vadd.f32 0.0, %v653
        %655 = vmatprep.mubr.bf16.mxu0 0
        %656 = vmatmul.mubr.bf16.gmra.mrb[0].mxu0 %v510
        %v657 = vpop.f32.mrb[0].mxu0
        %v658 = vadd.f32 0.0, %v657
        %v659 = vpop.f32.mrb[0].mxu0
        %v660 = vadd.f32 0.0, %v659
        %v661 = vpop.f32.mrb[0].mxu0
        %v662 = vadd.f32 0.0, %v661
        %v663 = vpop.f32.mrb[0].mxu0
        %v664 = vadd.f32 0.0, %v663
        %665 = vmatprep.mubr.bf16.mxu0 0
        %666 = vmatmul.mubr.bf16.gmra.mrb[0].mxu0 %v513
        %v667 = vpop.f32.mrb[0].mxu0
        %v668 = vadd.f32 0.0, %v667
        %v669 = vpop.f32.mrb[0].mxu0
        %v670 = vadd.f32 0.0, %v669
        %v671 = vpop.f32.mrb[0].mxu0
        %v672 = vadd.f32 0.0, %v671
        %v673 = vpop.f32.mrb[0].mxu0
        %v674 = vadd.f32 0.0, %v673
        %675 = vmatprep.mubr.bf16.mxu0 0
        %676 = vmatmul.mubr.bf16.gmra.mrb[0].mxu0 %v516
        %v677 = vpop.f32.mrb[0].mxu0
        %v678 = vadd.f32 0.0, %v677
        %v679 = vpop.f32.mrb[0].mxu0
        %v680 = vadd.f32 0.0, %v679
        %v681 = vpop.f32.mrb[0].mxu0
        %v682 = vadd.f32 0.0, %v681
        %v683 = vpop.f32.mrb[0].mxu0
        %v684 = vadd.f32 0.0, %v683
        %685 = vmatprep.mubr.bf16.mxu0 0
        %686 = vmatmul.mubr.bf16.gmra.mrb[0].mxu0 %v519
        %v687 = vpop.f32.mrb[0].mxu0
        %v688 = vadd.f32 0.0, %v687
        %v689 = vpop.f32.mrb[0].mxu0
        %v690 = vadd.f32 0.0, %v689
        %v691 = vpop.f32.mrb[0].mxu0
        %v692 = vadd.f32 0.0, %v691
        %v693 = vpop.f32.mrb[0].mxu0
        %v694 = vadd.f32 0.0, %v693
        %695 = vmatprep.mubr.bf16.mxu0 0
        %696 = vmatmul.mubr.bf16.gmra.mrb[0].mxu0 %v522
        %v697 = vpop.f32.mrb[0].mxu0
        %v698 = vadd.f32 0.0, %v697
        %v699 = vpop.f32.mrb[0].mxu0
        %v700 = vadd.f32 0.0, %v699
        %v701 = vpop.f32.mrb[0].mxu0
        %v702 = vadd.f32 0.0, %v701
        %v703 = vpop.f32.mrb[0].mxu0
        %v704 = vadd.f32 0.0, %v703
        %705 = vmatprep.mubr.bf16.mxu0 0
        %706 = vmatmul.mubr.bf16.gmra.mrb[0].mxu0 %v525
        %v707 = vpop.f32.mrb[0].mxu0
        %v708 = vadd.f32 0.0, %v707
        %v709 = vpop.f32.mrb[0].mxu0
        %v710 = vadd.f32 0.0, %v709
        %v711 = vpop.f32.mrb[0].mxu0
        %v712 = vadd.f32 0.0, %v711
        %v713 = vpop.f32.mrb[0].mxu0
        %v714 = vadd.f32 0.0, %v713
        %715 = vmatprep.mubr.bf16.mxu0 0
        %716 = vmatmul.mubr.bf16.gmra.mrb[0].mxu0 %v528
        %v717 = vpop.f32.mrb[0].mxu0
        %v718 = vadd.f32 0.0, %v717
        %v719 = vpop.f32.mrb[0].mxu0
        %v720 = vadd.f32 0.0, %v719
        %v721 = vpop.f32.mrb[0].mxu0
        %v722 = vadd.f32 0.0, %v721
        %v723 = vpop.f32.mrb[0].mxu0
        %v724 = vadd.f32 0.0, %v723
        %725 = vmatprep.mubr.bf16.mxu0 0
        %726 = vmatmul.mubr.bf16.gmra.mrb[0].mxu0 %v531
        %v727 = vpop.f32.mrb[0].mxu0
        %v728 = vadd.f32 0.0, %v727
        %v729 = vpop.f32.mrb[0].mxu0
        %v730 = vadd.f32 0.0, %v729
        %v731 = vpop.f32.mrb[0].mxu0
        %v732 = vadd.f32 0.0, %v731
        %v733 = vpop.f32.mrb[0].mxu0
        %v734 = vadd.f32 0.0, %v733
        %735 = vmatprep.mubr.bf16.mxu0 0
        %736 = vmatmul.mubr.bf16.gmra.mrb[0].mxu0 %v534
        %v737 = vpop.f32.mrb[0].mxu0
        %v738 = vadd.f32 0.0, %v737
        %v739 = vpop.f32.mrb[0].mxu0
        %v740 = vadd.f32 0.0, %v739
        %v741 = vpop.f32.mrb[0].mxu0
        %v742 = vadd.f32 0.0, %v741
        %v743 = vpop.f32.mrb[0].mxu0
        %v744 = vadd.f32 0.0, %v743
        %745 = vmatprep.mubr.bf16.mxu0 0
        %746 = vmatmul.mubr.bf16.gmra.mrb[0].mxu0 %v537
        %v747 = vpop.f32.mrb[0].mxu0
        %v748 = vadd.f32 0.0, %v747
        %v749 = vpop.f32.mrb[0].mxu0
        %v750 = vadd.f32 0.0, %v749
        %v751 = vpop.f32.mrb[0].mxu0
        %v752 = vadd.f32 0.0, %v751
        %v753 = vpop.f32.mrb[0].mxu0
        %v754 = vadd.f32 0.0, %v753
        %755 = vmatprep.mubr.bf16.mxu0 0
        %756 = vmatmul.mubr.bf16.gmra.mrb[0].mxu0 %v540
        %v757 = vpop.f32.mrb[0].mxu0
        %v758 = vadd.f32 0.0, %v757
        %v759 = vpop.f32.mrb[0].mxu0
        %v760 = vadd.f32 0.0, %v759
        %v761 = vpop.f32.mrb[0].mxu0
        %v762 = vadd.f32 0.0, %v761
        %v763 = vpop.f32.mrb[0].mxu0
        %v764 = vadd.f32 0.0, %v763
        %765 = vmatprep.mubr.bf16.mxu0 0
        %766 = vmatmul.mubr.bf16.gmra.mrb[0].mxu0 %v543
        %v767 = vpop.f32.mrb[0].mxu0
        %v768 = vadd.f32 0.0, %v767
        %v769 = vpop.f32.mrb[0].mxu0
        %v770 = vadd.f32 0.0, %v769
        %v771 = vpop.f32.mrb[0].mxu0
        %v772 = vadd.f32 0.0, %v771
        %v773 = vpop.f32.mrb[0].mxu0
        %v774 = vadd.f32 0.0, %v773
        %775 = vmatprep.mubr.bf16.mxu0 0
        %776 = vmatmul.mubr.bf16.gmra.mrb[0].mxu0 %v546
        %v777 = vpop.f32.mrb[0].mxu0
        %v778 = vadd.f32 0.0, %v777
        %v779 = vpop.f32.mrb[0].mxu0
        %v780 = vadd.f32 0.0, %v779
        %v781 = vpop.f32.mrb[0].mxu0
        %v782 = vadd.f32 0.0, %v781
        %v783 = vpop.f32.mrb[0].mxu0
        %v784 = vadd.f32 0.0, %v783
        %785 = vmatprep.mubr.bf16.mxu0 0
        %786 = vmatmul.mubr.bf16.gmra.mrb[0].mxu0 %v549
        %v787 = vpop.f32.mrb[0].mxu0
        %v788 = vadd.f32 0.0, %v787
        %v789 = vpop.f32.mrb[0].mxu0
        %v790 = vadd.f32 0.0, %v789
        %v791 = vpop.f32.mrb[0].mxu0
        %v792 = vadd.f32 0.0, %v791
        %v793 = vpop.f32.mrb[0].mxu0
        %v794 = vadd.f32 0.0, %v793
        %795 = vmatprep.mubr.bf16.mxu0 0
        %796 = vmatmul.mubr.bf16.gmra.mrb[0].mxu0 %v552
        %v797 = vpop.f32.mrb[0].mxu0
        %v798 = vadd.f32 0.0, %v797
        %v799 = vpop.f32.mrb[0].mxu0
        %v800 = vadd.f32 0.0, %v799
        %v801 = vpop.f32.mrb[0].mxu0
        %v802 = vadd.f32 0.0, %v801
        %v803 = vpop.f32.mrb[0].mxu0
        %v804 = vadd.f32 0.0, %v803
        %805 = vmatprep.mubr.bf16.mxu0 0
        %806 = vmatmul.mubr.bf16.gmra.mrb[0].mxu0 %v555
        %v807 = vpop.f32.mrb[0].mxu0
        %v808 = vadd.f32 0.0, %v807
        %v809 = vpop.f32.mrb[0].mxu0
        %v810 = vadd.f32 0.0, %v809
        %v811 = vpop.f32.mrb[0].mxu0
        %v812 = vadd.f32 0.0, %v811
        %v813 = vpop.f32.mrb[0].mxu0
        %v814 = vadd.f32 0.0, %v813
        %815 = vmatprep.mubr.bf16.mxu0 0
        %816 = vmatmul.mubr.bf16.gmra.mrb[0].mxu0 %v558
        %v817 = vpop.f32.mrb[0].mxu0
        %v818 = vadd.f32 0.0, %v817
        %v819 = vpop.f32.mrb[0].mxu0
        %v820 = vadd.f32 0.0, %v819
        %v821 = vpop.f32.mrb[0].mxu0
        %v822 = vadd.f32 0.0, %v821
        %v823 = vpop.f32.mrb[0].mxu0
        %v824 = vadd.f32 0.0, %v823
        %825 = vmatprep.mubr.bf16.mxu0 0
        %826 = vmatmul.mubr.bf16.gmra.mrb[0].mxu0 %v561
        %v827 = vpop.f32.mrb[0].mxu0
        %v828 = vadd.f32 0.0, %v827
        %v829 = vpop.f32.mrb[0].mxu0
        %v830 = vadd.f32 0.0, %v829
        %v831 = vpop.f32.mrb[0].mxu0
        %v832 = vadd.f32 0.0, %v831
        %v833 = vpop.f32.mrb[0].mxu0
        %v834 = vadd.f32 0.0, %v833
        %835 = vmatprep.mubr.bf16.mxu0 0
        %836 = vmatmul.mubr.bf16.gmra.mrb[0].mxu0 %v564
        %v837 = vpop.f32.mrb[0].mxu0
        %v838 = vadd.f32 0.0, %v837
        %v839 = vpop.f32.mrb[0].mxu0
        %v840 = vadd.f32 0.0, %v839
        %v841 = vpop.f32.mrb[0].mxu0
        %v842 = vadd.f32 0.0, %v841
        %v843 = vpop.f32.mrb[0].mxu0
        %v844 = vadd.f32 0.0, %v843
        %845 = vdwg.mxu0
        %v846 = vpack.c.bf16 %v612, %v608
        %v847 = vpack.c.bf16 %v614, %v610
        %v848 = vpack.c.bf16 %v622, %v618
        %v849 = vpack.c.bf16 %v624, %v620
        %v850 = vpack.c.bf16 %v632, %v628
        %v851 = vpack.c.bf16 %v634, %v630
        %v852 = vpack.c.bf16 %v642, %v638
        %v853 = vpack.c.bf16 %v644, %v640
        %v854 = vpack.c.bf16 %v652, %v648
        %v855 = vpack.c.bf16 %v654, %v650
        %v856 = vpack.c.bf16 %v662, %v658
        %v857 = vpack.c.bf16 %v664, %v660
        %v858 = vpack.c.bf16 %v672, %v668
        %v859 = vpack.c.bf16 %v674, %v670
        %v860 = vpack.c.bf16 %v682, %v678
        %v861 = vpack.c.bf16 %v684, %v680
        %v862 = vpack.c.bf16 %v692, %v688
        %v863 = vpack.c.bf16 %v694, %v690
        %v864 = vpack.c.bf16 %v702, %v698
        %v865 = vpack.c.bf16 %v704, %v700
        %v866 = vpack.c.bf16 %v712, %v708
        %v867 = vpack.c.bf16 %v714, %v710
        %v868 = vpack.c.bf16 %v722, %v718
        %v869 = vpack.c.bf16 %v724, %v720
        %v870 = vpack.c.bf16 %v732, %v728
        %v871 = vpack.c.bf16 %v734, %v730
        %v872 = vpack.c.bf16 %v742, %v738
        %v873 = vpack.c.bf16 %v744, %v740
        %v874 = vpack.c.bf16 %v752, %v748
        %v875 = vpack.c.bf16 %v754, %v750
        %v876 = vpack.c.bf16 %v762, %v758
        %v877 = vpack.c.bf16 %v764, %v760
        %v878 = vpack.c.bf16 %v772, %v768
        %v879 = vpack.c.bf16 %v774, %v770
        %v880 = vpack.c.bf16 %v782, %v778
        %v881 = vpack.c.bf16 %v784, %v780
        %v882 = vpack.c.bf16 %v792, %v788
        %v883 = vpack.c.bf16 %v794, %v790
        %v884 = vpack.c.bf16 %v802, %v798
        %v885 = vpack.c.bf16 %v804, %v800
        %v886 = vpack.c.bf16 %v812, %v808
        %v887 = vpack.c.bf16 %v814, %v810
        %v888 = vpack.c.bf16 %v822, %v818
        %v889 = vpack.c.bf16 %v824, %v820
        %v890 = vpack.c.bf16 %v832, %v828
        %v891 = vpack.c.bf16 %v834, %v830
        %v892 = vpack.c.bf16 %v842, %v838
        %v893 = vpack.c.bf16 %v844, %v840
        %v894 = vld [vmem:[%s2] sm:$0xf]
        %v895 = vld [vmem:[%s2 + $0x4] sm:$0xf]
        %v896 = vld [vmem:[%s2 + $0x8] sm:$0xf]
        %v897 = vld [vmem:[%s2 + $0xc] sm:$0xf]
        %v898 = vld [vmem:[%s2 + $0x10] sm:$0xf]
        %v899 = vld [vmem:[%s2 + $0x14] sm:$0xf]
        %v900 = vld [vmem:[%s2 + $0x18] sm:$0xf]
        %v901 = vld [vmem:[%s2 + $0x1c] sm:$0xf]
        %v902 = vld [vmem:[%s2 + $0x20] sm:$0xf]
        %v903 = vld [vmem:[%s2 + $0x24] sm:$0xf]
        %v904 = vld [vmem:[%s2 + $0x28] sm:$0xf]
        %v905 = vld [vmem:[%s2 + $0x2c] sm:$0xf]
        %v906 = vld [vmem:[%s2 + $0x30] sm:$0xf]
        %v907 = vld [vmem:[%s2 + $0x34] sm:$0xf]
        %v908 = vld [vmem:[%s2 + $0x38] sm:$0xf]
        %v909 = vld [vmem:[%s2 + $0x3c] sm:$0xf]
        %v910 = vld [vmem:[%s2 + $0x40] sm:$0xf]
        %v911 = vld [vmem:[%s2 + $0x44] sm:$0xf]
        %v912 = vld [vmem:[%s2 + $0x48] sm:$0xf]
        %v913 = vld [vmem:[%s2 + $0x4c] sm:$0xf]
        %v914 = vld [vmem:[%s2 + $0x50] sm:$0xf]
        %v915 = vld [vmem:[%s2 + $0x54] sm:$0xf]
        %v916 = vld [vmem:[%s2 + $0x58] sm:$0xf]
        %v917 = vld [vmem:[%s2 + $0x5c] sm:$0xf]
        %v918 = vld [vmem:[%s2 + $0x60] sm:$0xf]
        %v919 = vld [vmem:[%s2 + $0x64] sm:$0xf]
        %v920 = vld [vmem:[%s2 + $0x68] sm:$0xf]
        %v921 = vld [vmem:[%s2 + $0x6c] sm:$0xf]
        %v922 = vld [vmem:[%s2 + $0x70] sm:$0xf]
        %v923 = vld [vmem:[%s2 + $0x74] sm:$0xf]
        %v924 = vld [vmem:[%s2 + $0x78] sm:$0xf]
        %v925 = vld [vmem:[%s2 + $0x7c] sm:$0xf]
        %v926 = vld [vmem:[%s2 + $0x80] sm:$0xf]
        %v927 = vld [vmem:[%s2 + $0x84] sm:$0xf]
        %v928 = vld [vmem:[%s2 + $0x88] sm:$0xf]
        %v929 = vld [vmem:[%s2 + $0x8c] sm:$0xf]
        %v930 = vld [vmem:[%s2 + $0x90] sm:$0xf]
        %v931 = vld [vmem:[%s2 + $0x94] sm:$0xf]
        %v932 = vld [vmem:[%s2 + $0x98] sm:$0xf]
        %v933 = vld [vmem:[%s2 + $0x9c] sm:$0xf]
        %v934 = vld [vmem:[%s2 + $0xa0] sm:$0xf]
        %v935 = vld [vmem:[%s2 + $0xa4] sm:$0xf]
        %v936 = vld [vmem:[%s2 + $0xa8] sm:$0xf]
        %v937 = vld [vmem:[%s2 + $0xac] sm:$0xf]
        %v938 = vld [vmem:[%s2 + $0xb0] sm:$0xf]
        %v939 = vld [vmem:[%s2 + $0xb4] sm:$0xf]
        %v940 = vld [vmem:[%s2 + $0xb8] sm:$0xf]
        %v941 = vld [vmem:[%s2 + $0xbc] sm:$0xf]
        %943 = vset.pattern.permute.xlu0 0
        %944 = vperm.xlu0 %943, %v894
        %v945 = vpop.permute.xlu0 %944
        %v948 = vunpack.c.l.s4 839922192
        %v949 = vunpack.c.0.s8 %v948
        %v950 = vlaneseq
        %v951 = vshrl.u32 %v950, 7
        %v952 = vsub.s32 %v949, %v951
        %v953 = vrot.slane %v945, %v952
        %955 = vset.pattern.permute.xlu0 0
        %956 = vperm.xlu0 %955, %v895
        %v957 = vpop.permute.xlu0 %956
        %v960 = vunpack.c.l.s4 839922192
        %v961 = vunpack.c.0.s8 %v960
        %v962 = vlaneseq
        %v963 = vshrl.u32 %v962, 7
        %v964 = vsub.s32 %v961, %v963
        %v965 = vrot.slane %v957, %v964
        %967 = vset.pattern.permute.xlu0 0
        %968 = vperm.xlu0 %967, %v896
        %v969 = vpop.permute.xlu0 %968
        %v972 = vunpack.c.l.s4 839922192
        %v973 = vunpack.c.0.s8 %v972
        %v974 = vlaneseq
        %v975 = vshrl.u32 %v974, 7
        %v976 = vsub.s32 %v973, %v975
        %v977 = vrot.slane %v969, %v976
        %979 = vset.pattern.permute.xlu0 0
        %980 = vperm.xlu0 %979, %v897
        %v981 = vpop.permute.xlu0 %980
        %v984 = vunpack.c.l.s4 839922192
        %v985 = vunpack.c.0.s8 %v984
        %v986 = vlaneseq
        %v987 = vshrl.u32 %v986, 7
        %v988 = vsub.s32 %v985, %v987
        %v989 = vrot.slane %v981, %v988
        %991 = vset.pattern.permute.xlu0 0
        %992 = vperm.xlu0 %991, %v898
        %v993 = vpop.permute.xlu0 %992
        %v996 = vunpack.c.l.s4 839922192
        %v997 = vunpack.c.0.s8 %v996
        %v998 = vlaneseq
        %v999 = vshrl.u32 %v998, 7
        %v1000 = vsub.s32 %v997, %v999
        %v1001 = vrot.slane %v993, %v1000
        %1003 = vset.pattern.permute.xlu0 0
        %1004 = vperm.xlu0 %1003, %v899
        %v1005 = vpop.permute.xlu0 %1004
        %v1008 = vunpack.c.l.s4 839922192
        %v1009 = vunpack.c.0.s8 %v1008
        %v1010 = vlaneseq
        %v1011 = vshrl.u32 %v1010, 7
        %v1012 = vsub.s32 %v1009, %v1011
        %v1013 = vrot.slane %v1005, %v1012
        %1015 = vset.pattern.permute.xlu0 0
        %1016 = vperm.xlu0 %1015, %v900
        %v1017 = vpop.permute.xlu0 %1016
        %v1020 = vunpack.c.l.s4 839922192
        %v1021 = vunpack.c.0.s8 %v1020
        %v1022 = vlaneseq
        %v1023 = vshrl.u32 %v1022, 7
        %v1024 = vsub.s32 %v1021, %v1023
        %v1025 = vrot.slane %v1017, %v1024
        %1027 = vset.pattern.permute.xlu0 0
        %1028 = vperm.xlu0 %1027, %v901
        %v1029 = vpop.permute.xlu0 %1028
        %v1032 = vunpack.c.l.s4 839922192
        %v1033 = vunpack.c.0.s8 %v1032
        %v1034 = vlaneseq
        %v1035 = vshrl.u32 %v1034, 7
        %v1036 = vsub.s32 %v1033, %v1035
        %v1037 = vrot.slane %v1029, %v1036
        %1039 = vset.pattern.permute.xlu0 0
        %1040 = vperm.xlu0 %1039, %v902
        %v1041 = vpop.permute.xlu0 %1040
        %v1044 = vunpack.c.l.s4 839922192
        %v1045 = vunpack.c.0.s8 %v1044
        %v1046 = vlaneseq
        %v1047 = vshrl.u32 %v1046, 7
        %v1048 = vsub.s32 %v1045, %v1047
        %v1049 = vrot.slane %v1041, %v1048
        %1051 = vset.pattern.permute.xlu0 0
        %1052 = vperm.xlu0 %1051, %v903
        %v1053 = vpop.permute.xlu0 %1052
        %v1056 = vunpack.c.l.s4 839922192
        %v1057 = vunpack.c.0.s8 %v1056
        %v1058 = vlaneseq
        %v1059 = vshrl.u32 %v1058, 7
        %v1060 = vsub.s32 %v1057, %v1059
        %v1061 = vrot.slane %v1053, %v1060
        %1063 = vset.pattern.permute.xlu0 0
        %1064 = vperm.xlu0 %1063, %v904
        %v1065 = vpop.permute.xlu0 %1064
        %v1068 = vunpack.c.l.s4 839922192
        %v1069 = vunpack.c.0.s8 %v1068
        %v1070 = vlaneseq
        %v1071 = vshrl.u32 %v1070, 7
        %v1072 = vsub.s32 %v1069, %v1071
        %v1073 = vrot.slane %v1065, %v1072
        %1075 = vset.pattern.permute.xlu0 0
        %1076 = vperm.xlu0 %1075, %v905
        %v1077 = vpop.permute.xlu0 %1076
        %v1080 = vunpack.c.l.s4 839922192
        %v1081 = vunpack.c.0.s8 %v1080
        %v1082 = vlaneseq
        %v1083 = vshrl.u32 %v1082, 7
        %v1084 = vsub.s32 %v1081, %v1083
        %v1085 = vrot.slane %v1077, %v1084
        %1087 = vset.pattern.permute.xlu0 0
        %1088 = vperm.xlu0 %1087, %v906
        %v1089 = vpop.permute.xlu0 %1088
        %v1092 = vunpack.c.l.s4 839922192
        %v1093 = vunpack.c.0.s8 %v1092
        %v1094 = vlaneseq
        %v1095 = vshrl.u32 %v1094, 7
        %v1096 = vsub.s32 %v1093, %v1095
        %v1097 = vrot.slane %v1089, %v1096
        %1099 = vset.pattern.permute.xlu0 0
        %1100 = vperm.xlu0 %1099, %v907
        %v1101 = vpop.permute.xlu0 %1100
        %v1104 = vunpack.c.l.s4 839922192
        %v1105 = vunpack.c.0.s8 %v1104
        %v1106 = vlaneseq
        %v1107 = vshrl.u32 %v1106, 7
        %v1108 = vsub.s32 %v1105, %v1107
        %v1109 = vrot.slane %v1101, %v1108
        %1111 = vset.pattern.permute.xlu0 0
        %1112 = vperm.xlu0 %1111, %v908
        %v1113 = vpop.permute.xlu0 %1112
        %v1116 = vunpack.c.l.s4 839922192
        %v1117 = vunpack.c.0.s8 %v1116
        %v1118 = vlaneseq
        %v1119 = vshrl.u32 %v1118, 7
        %v1120 = vsub.s32 %v1117, %v1119
        %v1121 = vrot.slane %v1113, %v1120
        %1123 = vset.pattern.permute.xlu0 0
        %1124 = vperm.xlu0 %1123, %v909
        %v1125 = vpop.permute.xlu0 %1124
        %v1128 = vunpack.c.l.s4 839922192
        %v1129 = vunpack.c.0.s8 %v1128
        %v1130 = vlaneseq
        %v1131 = vshrl.u32 %v1130, 7
        %v1132 = vsub.s32 %v1129, %v1131
        %v1133 = vrot.slane %v1125, %v1132
        %1135 = vset.pattern.permute.xlu0 0
        %1136 = vperm.xlu0 %1135, %v910
        %v1137 = vpop.permute.xlu0 %1136
        %v1140 = vunpack.c.l.s4 839922192
        %v1141 = vunpack.c.0.s8 %v1140
        %v1142 = vlaneseq
        %v1143 = vshrl.u32 %v1142, 7
        %v1144 = vsub.s32 %v1141, %v1143
        %v1145 = vrot.slane %v1137, %v1144
        %1147 = vset.pattern.permute.xlu0 0
        %1148 = vperm.xlu0 %1147, %v911
        %v1149 = vpop.permute.xlu0 %1148
        %v1152 = vunpack.c.l.s4 839922192
        %v1153 = vunpack.c.0.s8 %v1152
        %v1154 = vlaneseq
        %v1155 = vshrl.u32 %v1154, 7
        %v1156 = vsub.s32 %v1153, %v1155
        %v1157 = vrot.slane %v1149, %v1156
        %1159 = vset.pattern.permute.xlu0 0
        %1160 = vperm.xlu0 %1159, %v912
        %v1161 = vpop.permute.xlu0 %1160
        %v1164 = vunpack.c.l.s4 839922192
        %v1165 = vunpack.c.0.s8 %v1164
        %v1166 = vlaneseq
        %v1167 = vshrl.u32 %v1166, 7
        %v1168 = vsub.s32 %v1165, %v1167
        %v1169 = vrot.slane %v1161, %v1168
        %1171 = vset.pattern.permute.xlu0 0
        %1172 = vperm.xlu0 %1171, %v913
        %v1173 = vpop.permute.xlu0 %1172
        %v1176 = vunpack.c.l.s4 839922192
        %v1177 = vunpack.c.0.s8 %v1176
        %v1178 = vlaneseq
        %v1179 = vshrl.u32 %v1178, 7
        %v1180 = vsub.s32 %v1177, %v1179
        %v1181 = vrot.slane %v1173, %v1180
        %1183 = vset.pattern.permute.xlu0 0
        %1184 = vperm.xlu0 %1183, %v914
        %v1185 = vpop.permute.xlu0 %1184
        %v1188 = vunpack.c.l.s4 839922192
        %v1189 = vunpack.c.0.s8 %v1188
        %v1190 = vlaneseq
        %v1191 = vshrl.u32 %v1190, 7
        %v1192 = vsub.s32 %v1189, %v1191
        %v1193 = vrot.slane %v1185, %v1192
        %1195 = vset.pattern.permute.xlu0 0
        %1196 = vperm.xlu0 %1195, %v915
        %v1197 = vpop.permute.xlu0 %1196
        %v1200 = vunpack.c.l.s4 839922192
        %v1201 = vunpack.c.0.s8 %v1200
        %v1202 = vlaneseq
        %v1203 = vshrl.u32 %v1202, 7
        %v1204 = vsub.s32 %v1201, %v1203
        %v1205 = vrot.slane %v1197, %v1204
        %1207 = vset.pattern.permute.xlu0 0
        %1208 = vperm.xlu0 %1207, %v916
        %v1209 = vpop.permute.xlu0 %1208
        %v1212 = vunpack.c.l.s4 839922192
        %v1213 = vunpack.c.0.s8 %v1212
        %v1214 = vlaneseq
        %v1215 = vshrl.u32 %v1214, 7
        %v1216 = vsub.s32 %v1213, %v1215
        %v1217 = vrot.slane %v1209, %v1216
        %1219 = vset.pattern.permute.xlu0 0
        %1220 = vperm.xlu0 %1219, %v917
        %v1221 = vpop.permute.xlu0 %1220
        %v1224 = vunpack.c.l.s4 839922192
        %v1225 = vunpack.c.0.s8 %v1224
        %v1226 = vlaneseq
        %v1227 = vshrl.u32 %v1226, 7
        %v1228 = vsub.s32 %v1225, %v1227
        %v1229 = vrot.slane %v1221, %v1228
        %1231 = vset.pattern.permute.xlu0 0
        %1232 = vperm.xlu0 %1231, %v918
        %v1233 = vpop.permute.xlu0 %1232
        %v1236 = vunpack.c.l.s4 839922192
        %v1237 = vunpack.c.0.s8 %v1236
        %v1238 = vlaneseq
        %v1239 = vshrl.u32 %v1238, 7
        %v1240 = vsub.s32 %v1237, %v1239
        %v1241 = vrot.slane %v1233, %v1240
        %1243 = vset.pattern.permute.xlu0 0
        %1244 = vperm.xlu0 %1243, %v919
        %v1245 = vpop.permute.xlu0 %1244
        %v1248 = vunpack.c.l.s4 839922192
        %v1249 = vunpack.c.0.s8 %v1248
        %v1250 = vlaneseq
        %v1251 = vshrl.u32 %v1250, 7
        %v1252 = vsub.s32 %v1249, %v1251
        %v1253 = vrot.slane %v1245, %v1252
        %1255 = vset.pattern.permute.xlu0 0
        %1256 = vperm.xlu0 %1255, %v920
        %v1257 = vpop.permute.xlu0 %1256
        %v1260 = vunpack.c.l.s4 839922192
        %v1261 = vunpack.c.0.s8 %v1260
        %v1262 = vlaneseq
        %v1263 = vshrl.u32 %v1262, 7
        %v1264 = vsub.s32 %v1261, %v1263
        %v1265 = vrot.slane %v1257, %v1264
        %1267 = vset.pattern.permute.xlu0 0
        %1268 = vperm.xlu0 %1267, %v921
        %v1269 = vpop.permute.xlu0 %1268
        %v1272 = vunpack.c.l.s4 839922192
        %v1273 = vunpack.c.0.s8 %v1272
        %v1274 = vlaneseq
        %v1275 = vshrl.u32 %v1274, 7
        %v1276 = vsub.s32 %v1273, %v1275
        %v1277 = vrot.slane %v1269, %v1276
        %1279 = vset.pattern.permute.xlu0 0
        %1280 = vperm.xlu0 %1279, %v922
        %v1281 = vpop.permute.xlu0 %1280
        %v1284 = vunpack.c.l.s4 839922192
        %v1285 = vunpack.c.0.s8 %v1284
        %v1286 = vlaneseq
        %v1287 = vshrl.u32 %v1286, 7
        %v1288 = vsub.s32 %v1285, %v1287
        %v1289 = vrot.slane %v1281, %v1288
        %1291 = vset.pattern.permute.xlu0 0
        %1292 = vperm.xlu0 %1291, %v923
        %v1293 = vpop.permute.xlu0 %1292
        %v1296 = vunpack.c.l.s4 839922192
        %v1297 = vunpack.c.0.s8 %v1296
        %v1298 = vlaneseq
        %v1299 = vshrl.u32 %v1298, 7
        %v1300 = vsub.s32 %v1297, %v1299
        %v1301 = vrot.slane %v1293, %v1300
        %1303 = vset.pattern.permute.xlu0 0
        %1304 = vperm.xlu0 %1303, %v924
        %v1305 = vpop.permute.xlu0 %1304
        %v1308 = vunpack.c.l.s4 839922192
        %v1309 = vunpack.c.0.s8 %v1308
        %v1310 = vlaneseq
        %v1311 = vshrl.u32 %v1310, 7
        %v1312 = vsub.s32 %v1309, %v1311
        %v1313 = vrot.slane %v1305, %v1312
        %1315 = vset.pattern.permute.xlu0 0
        %1316 = vperm.xlu0 %1315, %v925
        %v1317 = vpop.permute.xlu0 %1316
        %v1320 = vunpack.c.l.s4 839922192
        %v1321 = vunpack.c.0.s8 %v1320
        %v1322 = vlaneseq
        %v1323 = vshrl.u32 %v1322, 7
        %v1324 = vsub.s32 %v1321, %v1323
        %v1325 = vrot.slane %v1317, %v1324
        %1327 = vset.pattern.permute.xlu0 0
        %1328 = vperm.xlu0 %1327, %v926
        %v1329 = vpop.permute.xlu0 %1328
        %v1332 = vunpack.c.l.s4 839922192
        %v1333 = vunpack.c.0.s8 %v1332
        %v1334 = vlaneseq
        %v1335 = vshrl.u32 %v1334, 7
        %v1336 = vsub.s32 %v1333, %v1335
        %v1337 = vrot.slane %v1329, %v1336
        %1339 = vset.pattern.permute.xlu0 0
        %1340 = vperm.xlu0 %1339, %v927
        %v1341 = vpop.permute.xlu0 %1340
        %v1344 = vunpack.c.l.s4 839922192
        %v1345 = vunpack.c.0.s8 %v1344
        %v1346 = vlaneseq
        %v1347 = vshrl.u32 %v1346, 7
        %v1348 = vsub.s32 %v1345, %v1347
        %v1349 = vrot.slane %v1341, %v1348
        %1351 = vset.pattern.permute.xlu0 0
        %1352 = vperm.xlu0 %1351, %v928
        %v1353 = vpop.permute.xlu0 %1352
        %v1356 = vunpack.c.l.s4 839922192
        %v1357 = vunpack.c.0.s8 %v1356
        %v1358 = vlaneseq
        %v1359 = vshrl.u32 %v1358, 7
        %v1360 = vsub.s32 %v1357, %v1359
        %v1361 = vrot.slane %v1353, %v1360
        %1363 = vset.pattern.permute.xlu0 0
        %1364 = vperm.xlu0 %1363, %v929
        %v1365 = vpop.permute.xlu0 %1364
        %v1368 = vunpack.c.l.s4 839922192
        %v1369 = vunpack.c.0.s8 %v1368
        %v1370 = vlaneseq
        %v1371 = vshrl.u32 %v1370, 7
        %v1372 = vsub.s32 %v1369, %v1371
        %v1373 = vrot.slane %v1365, %v1372
        %1375 = vset.pattern.permute.xlu0 0
        %1376 = vperm.xlu0 %1375, %v930
        %v1377 = vpop.permute.xlu0 %1376
        %v1380 = vunpack.c.l.s4 839922192
        %v1381 = vunpack.c.0.s8 %v1380
        %v1382 = vlaneseq
        %v1383 = vshrl.u32 %v1382, 7
        %v1384 = vsub.s32 %v1381, %v1383
        %v1385 = vrot.slane %v1377, %v1384
        %1387 = vset.pattern.permute.xlu0 0
        %1388 = vperm.xlu0 %1387, %v931
        %v1389 = vpop.permute.xlu0 %1388
        %v1392 = vunpack.c.l.s4 839922192
        %v1393 = vunpack.c.0.s8 %v1392
        %v1394 = vlaneseq
        %v1395 = vshrl.u32 %v1394, 7
        %v1396 = vsub.s32 %v1393, %v1395
        %v1397 = vrot.slane %v1389, %v1396
        %1399 = vset.pattern.permute.xlu0 0
        %1400 = vperm.xlu0 %1399, %v932
        %v1401 = vpop.permute.xlu0 %1400
        %v1404 = vunpack.c.l.s4 839922192
        %v1405 = vunpack.c.0.s8 %v1404
        %v1406 = vlaneseq
        %v1407 = vshrl.u32 %v1406, 7
        %v1408 = vsub.s32 %v1405, %v1407
        %v1409 = vrot.slane %v1401, %v1408
        %1411 = vset.pattern.permute.xlu0 0
        %1412 = vperm.xlu0 %1411, %v933
        %v1413 = vpop.permute.xlu0 %1412
        %v1416 = vunpack.c.l.s4 839922192
        %v1417 = vunpack.c.0.s8 %v1416
        %v1418 = vlaneseq
        %v1419 = vshrl.u32 %v1418, 7
        %v1420 = vsub.s32 %v1417, %v1419
        %v1421 = vrot.slane %v1413, %v1420
        %1423 = vset.pattern.permute.xlu0 0
        %1424 = vperm.xlu0 %1423, %v934
        %v1425 = vpop.permute.xlu0 %1424
        %v1428 = vunpack.c.l.s4 839922192
        %v1429 = vunpack.c.0.s8 %v1428
        %v1430 = vlaneseq
        %v1431 = vshrl.u32 %v1430, 7
        %v1432 = vsub.s32 %v1429, %v1431
        %v1433 = vrot.slane %v1425, %v1432
        %1435 = vset.pattern.permute.xlu0 0
        %1436 = vperm.xlu0 %1435, %v935
        %v1437 = vpop.permute.xlu0 %1436
        %v1440 = vunpack.c.l.s4 839922192
        %v1441 = vunpack.c.0.s8 %v1440
        %v1442 = vlaneseq
        %v1443 = vshrl.u32 %v1442, 7
        %v1444 = vsub.s32 %v1441, %v1443
        %v1445 = vrot.slane %v1437, %v1444
        %1447 = vset.pattern.permute.xlu0 0
        %1448 = vperm.xlu0 %1447, %v936
        %v1449 = vpop.permute.xlu0 %1448
        %v1452 = vunpack.c.l.s4 839922192
        %v1453 = vunpack.c.0.s8 %v1452
        %v1454 = vlaneseq
        %v1455 = vshrl.u32 %v1454, 7
        %v1456 = vsub.s32 %v1453, %v1455
        %v1457 = vrot.slane %v1449, %v1456
        %1459 = vset.pattern.permute.xlu0 0
        %1460 = vperm.xlu0 %1459, %v937
        %v1461 = vpop.permute.xlu0 %1460
        %v1464 = vunpack.c.l.s4 839922192
        %v1465 = vunpack.c.0.s8 %v1464
        %v1466 = vlaneseq
        %v1467 = vshrl.u32 %v1466, 7
        %v1468 = vsub.s32 %v1465, %v1467
        %v1469 = vrot.slane %v1461, %v1468
        %1471 = vset.pattern.permute.xlu0 0
        %1472 = vperm.xlu0 %1471, %v938
        %v1473 = vpop.permute.xlu0 %1472
        %v1476 = vunpack.c.l.s4 839922192
        %v1477 = vunpack.c.0.s8 %v1476
        %v1478 = vlaneseq
        %v1479 = vshrl.u32 %v1478, 7
        %v1480 = vsub.s32 %v1477, %v1479
        %v1481 = vrot.slane %v1473, %v1480
        %1483 = vset.pattern.permute.xlu0 0
        %1484 = vperm.xlu0 %1483, %v939
        %v1485 = vpop.permute.xlu0 %1484
        %v1488 = vunpack.c.l.s4 839922192
        %v1489 = vunpack.c.0.s8 %v1488
        %v1490 = vlaneseq
        %v1491 = vshrl.u32 %v1490, 7
        %v1492 = vsub.s32 %v1489, %v1491
        %v1493 = vrot.slane %v1485, %v1492
        %1495 = vset.pattern.permute.xlu0 0
        %1496 = vperm.xlu0 %1495, %v940
        %v1497 = vpop.permute.xlu0 %1496
        %v1500 = vunpack.c.l.s4 839922192
        %v1501 = vunpack.c.0.s8 %v1500
        %v1502 = vlaneseq
        %v1503 = vshrl.u32 %v1502, 7
        %v1504 = vsub.s32 %v1501, %v1503
        %v1505 = vrot.slane %v1497, %v1504
        %1507 = vset.pattern.permute.xlu0 0
        %1508 = vperm.xlu0 %1507, %v941
        %v1509 = vpop.permute.xlu0 %1508
        %v1512 = vunpack.c.l.s4 839922192
        %v1513 = vunpack.c.0.s8 %v1512
        %v1514 = vlaneseq
        %v1515 = vshrl.u32 %v1514, 7
        %v1516 = vsub.s32 %v1513, %v1515
        %v1517 = vrot.slane %v1509, %v1516
        %v1566 = vunpack.c.l.b16 %v953
        %v1567 = vunpack.c.l.b16 %v965
        %v1568 = vunpack.c.l.b16 %v977
        %v1569 = vunpack.c.l.b16 %v989
        %v1570 = vunpack.c.l.b16 %v1001
        %v1571 = vunpack.c.l.b16 %v1013
        %v1572 = vunpack.c.l.b16 %v1025
        %v1573 = vunpack.c.l.b16 %v1037
        %v1574 = vunpack.c.l.b16 %v1049
        %v1575 = vunpack.c.l.b16 %v1061
        %v1576 = vunpack.c.l.b16 %v1073
        %v1577 = vunpack.c.l.b16 %v1085
        %v1578 = vunpack.c.l.b16 %v1097
        %v1579 = vunpack.c.l.b16 %v1109
        %v1580 = vunpack.c.l.b16 %v1121
        %v1581 = vunpack.c.l.b16 %v1133
        %v1582 = vunpack.c.l.b16 %v1145
        %v1583 = vunpack.c.l.b16 %v1157
        %v1584 = vunpack.c.l.b16 %v1169
        %v1585 = vunpack.c.l.b16 %v1181
        %v1586 = vunpack.c.l.b16 %v1193
        %v1587 = vunpack.c.l.b16 %v1205
        %v1588 = vunpack.c.l.b16 %v1217
        %v1589 = vunpack.c.l.b16 %v1229
        %v1590 = vunpack.c.l.b16 %v1241
        %v1591 = vunpack.c.l.b16 %v1253
        %v1592 = vunpack.c.l.b16 %v1265
        %v1593 = vunpack.c.l.b16 %v1277
        %v1594 = vunpack.c.l.b16 %v1289
        %v1595 = vunpack.c.l.b16 %v1301
        %v1596 = vunpack.c.l.b16 %v1313
        %v1597 = vunpack.c.l.b16 %v1325
        %v1598 = vunpack.c.l.b16 %v1337
        %v1599 = vunpack.c.l.b16 %v1349
        %v1600 = vunpack.c.l.b16 %v1361
        %v1601 = vunpack.c.l.b16 %v1373
        %v1602 = vunpack.c.l.b16 %v1385
        %v1603 = vunpack.c.l.b16 %v1397
        %v1604 = vunpack.c.l.b16 %v1409
        %v1605 = vunpack.c.l.b16 %v1421
        %v1606 = vunpack.c.l.b16 %v1433
        %v1607 = vunpack.c.l.b16 %v1445
        %v1608 = vunpack.c.l.b16 %v1457
        %v1609 = vunpack.c.l.b16 %v1469
        %v1610 = vunpack.c.l.b16 %v1481
        %v1611 = vunpack.c.l.b16 %v1493
        %v1612 = vunpack.c.l.b16 %v1505
        %v1613 = vunpack.c.l.b16 %v1517
        %v1614 = vpack.c.b16 %v1567, %v1566
        %v1615 = vpack.c.b16 %v1569, %v1568
        %v1616 = vpack.c.b16 %v1571, %v1570
        %v1617 = vpack.c.b16 %v1573, %v1572
        %v1618 = vpack.c.b16 %v1575, %v1574
        %v1619 = vpack.c.b16 %v1577, %v1576
        %v1620 = vpack.c.b16 %v1579, %v1578
        %v1621 = vpack.c.b16 %v1581, %v1580
        %v1622 = vpack.c.b16 %v1583, %v1582
        %v1623 = vpack.c.b16 %v1585, %v1584
        %v1624 = vpack.c.b16 %v1587, %v1586
        %v1625 = vpack.c.b16 %v1589, %v1588
        %v1626 = vpack.c.b16 %v1591, %v1590
        %v1627 = vpack.c.b16 %v1593, %v1592
        %v1628 = vpack.c.b16 %v1595, %v1594
        %v1629 = vpack.c.b16 %v1597, %v1596
        %v1630 = vpack.c.b16 %v1599, %v1598
        %v1631 = vpack.c.b16 %v1601, %v1600
        %v1632 = vpack.c.b16 %v1603, %v1602
        %v1633 = vpack.c.b16 %v1605, %v1604
        %v1634 = vpack.c.b16 %v1607, %v1606
        %v1635 = vpack.c.b16 %v1609, %v1608
        %v1636 = vpack.c.b16 %v1611, %v1610
        %v1637 = vpack.c.b16 %v1613, %v1612
        %v1662 = vadd.bf16 %v846, %v1614
        %v1663 = vadd.bf16 %v847, %v1614
        %v1664 = vadd.bf16 %v848, %v1615
        %v1665 = vadd.bf16 %v849, %v1615
        %v1666 = vadd.bf16 %v850, %v1616
        %v1667 = vadd.bf16 %v851, %v1616
        %v1668 = vadd.bf16 %v852, %v1617
        %v1669 = vadd.bf16 %v853, %v1617
        %v1670 = vadd.bf16 %v854, %v1618
        %v1671 = vadd.bf16 %v855, %v1618
        %v1672 = vadd.bf16 %v856, %v1619
        %v1673 = vadd.bf16 %v857, %v1619
        %v1674 = vadd.bf16 %v858, %v1620
        %v1675 = vadd.bf16 %v859, %v1620
        %v1676 = vadd.bf16 %v860, %v1621
        %v1677 = vadd.bf16 %v861, %v1621
        %v1678 = vadd.bf16 %v862, %v1622
        %v1679 = vadd.bf16 %v863, %v1622
        %v1680 = vadd.bf16 %v864, %v1623
        %v1681 = vadd.bf16 %v865, %v1623
        %v1682 = vadd.bf16 %v866, %v1624
        %v1683 = vadd.bf16 %v867, %v1624
        %v1684 = vadd.bf16 %v868, %v1625
        %v1685 = vadd.bf16 %v869, %v1625
        %v1686 = vadd.bf16 %v870, %v1626
        %v1687 = vadd.bf16 %v871, %v1626
        %v1688 = vadd.bf16 %v872, %v1627
        %v1689 = vadd.bf16 %v873, %v1627
        %v1690 = vadd.bf16 %v874, %v1628
        %v1691 = vadd.bf16 %v875, %v1628
        %v1692 = vadd.bf16 %v876, %v1629
        %v1693 = vadd.bf16 %v877, %v1629
        %v1694 = vadd.bf16 %v878, %v1630
        %v1695 = vadd.bf16 %v879, %v1630
        %v1696 = vadd.bf16 %v880, %v1631
        %v1697 = vadd.bf16 %v881, %v1631
        %v1698 = vadd.bf16 %v882, %v1632
        %v1699 = vadd.bf16 %v883, %v1632
        %v1700 = vadd.bf16 %v884, %v1633
        %v1701 = vadd.bf16 %v885, %v1633
        %v1702 = vadd.bf16 %v886, %v1634
        %v1703 = vadd.bf16 %v887, %v1634
        %v1704 = vadd.bf16 %v888, %v1635
        %v1705 = vadd.bf16 %v889, %v1635
        %v1706 = vadd.bf16 %v890, %v1636
        %v1707 = vadd.bf16 %v891, %v1636
        %v1708 = vadd.bf16 %v892, %v1637
        %v1709 = vadd.bf16 %v893, %v1637
        %v1710 = vmax.bf16 %v1662, 0
        %v1711 = vmax.bf16 %v1663, 0
        %v1712 = vmax.bf16 %v1664, 0
        %v1713 = vmax.bf16 %v1665, 0
        %v1714 = vmax.bf16 %v1666, 0
        %v1715 = vmax.bf16 %v1667, 0
        %v1716 = vmax.bf16 %v1668, 0
        %v1717 = vmax.bf16 %v1669, 0
        %v1718 = vmax.bf16 %v1670, 0
        %v1719 = vmax.bf16 %v1671, 0
        %v1720 = vmax.bf16 %v1672, 0
        %v1721 = vmax.bf16 %v1673, 0
        %v1722 = vmax.bf16 %v1674, 0
        %v1723 = vmax.bf16 %v1675, 0
        %v1724 = vmax.bf16 %v1676, 0
        %v1725 = vmax.bf16 %v1677, 0
        %v1726 = vmax.bf16 %v1678, 0
        %v1727 = vmax.bf16 %v1679, 0
        %v1728 = vmax.bf16 %v1680, 0
        %v1729 = vmax.bf16 %v1681, 0
        %v1730 = vmax.bf16 %v1682, 0
        %v1731 = vmax.bf16 %v1683, 0
        %v1732 = vmax.bf16 %v1684, 0
        %v1733 = vmax.bf16 %v1685, 0
        %v1734 = vmax.bf16 %v1686, 0
        %v1735 = vmax.bf16 %v1687, 0
        %v1736 = vmax.bf16 %v1688, 0
        %v1737 = vmax.bf16 %v1689, 0
        %v1738 = vmax.bf16 %v1690, 0
        %v1739 = vmax.bf16 %v1691, 0
        %v1740 = vmax.bf16 %v1692, 0
        %v1741 = vmax.bf16 %v1693, 0
        %v1742 = vmax.bf16 %v1694, 0
        %v1743 = vmax.bf16 %v1695, 0
        %v1744 = vmax.bf16 %v1696, 0
        %v1745 = vmax.bf16 %v1697, 0
        %v1746 = vmax.bf16 %v1698, 0
        %v1747 = vmax.bf16 %v1699, 0
        %v1748 = vmax.bf16 %v1700, 0
        %v1749 = vmax.bf16 %v1701, 0
        %v1750 = vmax.bf16 %v1702, 0
        %v1751 = vmax.bf16 %v1703, 0
        %v1752 = vmax.bf16 %v1704, 0
        %v1753 = vmax.bf16 %v1705, 0
        %v1754 = vmax.bf16 %v1706, 0
        %v1755 = vmax.bf16 %v1707, 0
        %v1756 = vmax.bf16 %v1708, 0
        %v1757 = vmax.bf16 %v1709, 0
        %v1758 = vld [vmem:[%s3] sm:$0xff]
        %v1759 = vld [vmem:[%s3 + $0x8] sm:$0xf]
        %v1760 = vld [vmem:[%s3 + $0xc] sm:$0xff]
        %v1761 = vld [vmem:[%s3 + $0x14] sm:$0xf]
        %v1762 = vld [vmem:[%s3 + $0x18] sm:$0xff]
        %v1763 = vld [vmem:[%s3 + $0x20] sm:$0xf]
        %v1764 = vld [vmem:[%s3 + $0x24] sm:$0xff]
        %v1765 = vld [vmem:[%s3 + $0x2c] sm:$0xf]
        %v1766 = vld [vmem:[%s3 + $0x30] sm:$0xff]
        %v1767 = vld [vmem:[%s3 + $0x38] sm:$0xf]
        %v1768 = vld [vmem:[%s3 + $0x3c] sm:$0xff]
        %v1769 = vld [vmem:[%s3 + $0x44] sm:$0xf]
        %v1770 = vld [vmem:[%s3 + $0x48] sm:$0xff]
        %v1771 = vld [vmem:[%s3 + $0x50] sm:$0xf]
        %v1772 = vld [vmem:[%s3 + $0x54] sm:$0xff]
        %v1773 = vld [vmem:[%s3 + $0x5c] sm:$0xf]
        %v1774 = vld [vmem:[%s3 + $0x60] sm:$0xff]
        %v1775 = vld [vmem:[%s3 + $0x68] sm:$0xf]
        %v1776 = vld [vmem:[%s3 + $0x6c] sm:$0xff]
        %v1777 = vld [vmem:[%s3 + $0x74] sm:$0xf]
        %v1778 = vld [vmem:[%s3 + $0x78] sm:$0xff]
        %v1779 = vld [vmem:[%s3 + $0x80] sm:$0xf]
        %v1780 = vld [vmem:[%s3 + $0x84] sm:$0xff]
        %v1781 = vld [vmem:[%s3 + $0x8c] sm:$0xf]
        %v1782 = vld [vmem:[%s3 + $0x90] sm:$0xff]
        %v1783 = vld [vmem:[%s3 + $0x98] sm:$0xf]
        %v1784 = vld [vmem:[%s3 + $0x9c] sm:$0xff]
        %v1785 = vld [vmem:[%s3 + $0xa4] sm:$0xf]
        %v1786 = vld [vmem:[%s3 + $0xa8] sm:$0xff]
        %v1787 = vld [vmem:[%s3 + $0xb0] sm:$0xf]
        %v1788 = vld [vmem:[%s3 + $0xb4] sm:$0xff]
        %v1789 = vld [vmem:[%s3 + $0xbc] sm:$0xf]
        %v1790 = vld [vmem:[%s3 + $0xc0] sm:$0xff]
        %v1791 = vld [vmem:[%s3 + $0xc8] sm:$0xf]
        %v1792 = vld [vmem:[%s3 + $0xcc] sm:$0xff]
        %v1793 = vld [vmem:[%s3 + $0xd4] sm:$0xf]
        %v1794 = vld [vmem:[%s3 + $0xd8] sm:$0xff]
        %v1795 = vld [vmem:[%s3 + $0xe0] sm:$0xf]
        %v1796 = vld [vmem:[%s3 + $0xe4] sm:$0xff]
        %v1797 = vld [vmem:[%s3 + $0xec] sm:$0xf]
        %v1798 = vld [vmem:[%s3 + $0xf0] sm:$0xff]
        %v1799 = vld [vmem:[%s3 + $0xf8] sm:$0xf]
        %v1800 = vld [vmem:[%s3 + $0xfc] sm:$0xff]
        %v1801 = vld [vmem:[%s3 + $0x104] sm:$0xf]
        %v1802 = vld [vmem:[%s3 + $0x108] sm:$0xff]
        %v1803 = vld [vmem:[%s3 + $0x110] sm:$0xf]
        %v1804 = vld [vmem:[%s3 + $0x114] sm:$0xff]
        %v1805 = vld [vmem:[%s3 + $0x11c] sm:$0xf]
        %v1806 = vld [vmem:[%s3 + $0x120] sm:$0xff]
        %v1807 = vld [vmem:[%s3 + $0x128] sm:$0xf]
        %v1808 = vld [vmem:[%s3 + $0x12c] sm:$0xff]
        %v1809 = vld [vmem:[%s3 + $0x134] sm:$0xf]
        %v1810 = vld [vmem:[%s3 + $0x138] sm:$0xff]
        %v1811 = vld [vmem:[%s3 + $0x140] sm:$0xf]
        %v1812 = vld [vmem:[%s3 + $0x144] sm:$0xff]
        %v1813 = vld [vmem:[%s3 + $0x14c] sm:$0xf]
        %v1814 = vld [vmem:[%s3 + $0x150] sm:$0xff]
        %v1815 = vld [vmem:[%s3 + $0x158] sm:$0xf]
        %v1816 = vld [vmem:[%s3 + $0x15c] sm:$0xff]
        %v1817 = vld [vmem:[%s3 + $0x164] sm:$0xf]
        %v1818 = vld [vmem:[%s3 + $0x168] sm:$0xff]
        %v1819 = vld [vmem:[%s3 + $0x170] sm:$0xf]
        %v1820 = vld [vmem:[%s3 + $0x174] sm:$0xff]
        %v1821 = vld [vmem:[%s3 + $0x17c] sm:$0xf]
        %v1886 = vunpack.c.l.b16 %v1758
        %v1887 = vunpack.c.h.b16 %v1758
        %v1888 = vunpack.c.l.b16 %v1759
        %v1889 = vunpack.c.l.b16 %v1760
        %v1890 = vunpack.c.h.b16 %v1760
        %v1891 = vunpack.c.l.b16 %v1761
        %v1892 = vunpack.c.l.b16 %v1762
        %v1893 = vunpack.c.h.b16 %v1762
        %v1894 = vunpack.c.l.b16 %v1763
        %v1895 = vunpack.c.l.b16 %v1764
        %v1896 = vunpack.c.h.b16 %v1764
        %v1897 = vunpack.c.l.b16 %v1765
        %v1898 = vunpack.c.l.b16 %v1766
        %v1899 = vunpack.c.h.b16 %v1766
        %v1900 = vunpack.c.l.b16 %v1767
        %v1901 = vunpack.c.l.b16 %v1768
        %v1902 = vunpack.c.h.b16 %v1768
        %v1903 = vunpack.c.l.b16 %v1769
        %v1904 = vunpack.c.l.b16 %v1770
        %v1905 = vunpack.c.h.b16 %v1770
        %v1906 = vunpack.c.l.b16 %v1771
        %v1907 = vunpack.c.l.b16 %v1772
        %v1908 = vunpack.c.h.b16 %v1772
        %v1909 = vunpack.c.l.b16 %v1773
        %v1910 = vunpack.c.l.b16 %v1774
        %v1911 = vunpack.c.h.b16 %v1774
        %v1912 = vunpack.c.l.b16 %v1775
        %v1913 = vunpack.c.l.b16 %v1776
        %v1914 = vunpack.c.h.b16 %v1776
        %v1915 = vunpack.c.l.b16 %v1777
        %v1916 = vunpack.c.l.b16 %v1778
        %v1917 = vunpack.c.h.b16 %v1778
        %v1918 = vunpack.c.l.b16 %v1779
        %v1919 = vunpack.c.l.b16 %v1780
        %v1920 = vunpack.c.h.b16 %v1780
        %v1921 = vunpack.c.l.b16 %v1781
        %v1922 = vunpack.c.l.b16 %v1782
        %v1923 = vunpack.c.h.b16 %v1782
        %v1924 = vunpack.c.l.b16 %v1783
        %v1925 = vunpack.c.l.b16 %v1784
        %v1926 = vunpack.c.h.b16 %v1784
        %v1927 = vunpack.c.l.b16 %v1785
        %v1928 = vunpack.c.l.b16 %v1786
        %v1929 = vunpack.c.h.b16 %v1786
        %v1930 = vunpack.c.l.b16 %v1787
        %v1931 = vunpack.c.l.b16 %v1788
        %v1932 = vunpack.c.h.b16 %v1788
        %v1933 = vunpack.c.l.b16 %v1789
        %v1934 = vunpack.c.l.b16 %v1790
        %v1935 = vunpack.c.h.b16 %v1790
        %v1936 = vunpack.c.l.b16 %v1791
        %v1937 = vunpack.c.l.b16 %v1792
        %v1938 = vunpack.c.h.b16 %v1792
        %v1939 = vunpack.c.l.b16 %v1793
        %v1940 = vunpack.c.l.b16 %v1794
        %v1941 = vunpack.c.h.b16 %v1794
        %v1942 = vunpack.c.l.b16 %v1795
        %v1943 = vunpack.c.l.b16 %v1796
        %v1944 = vunpack.c.h.b16 %v1796
        %v1945 = vunpack.c.l.b16 %v1797
        %v1946 = vunpack.c.l.b16 %v1798
        %v1947 = vunpack.c.h.b16 %v1798
        %v1948 = vunpack.c.l.b16 %v1799
        %v1949 = vunpack.c.l.b16 %v1800
        %v1950 = vunpack.c.h.b16 %v1800
        %v1951 = vunpack.c.l.b16 %v1801
        %v1952 = vunpack.c.l.b16 %v1802
        %v1953 = vunpack.c.h.b16 %v1802
        %v1954 = vunpack.c.l.b16 %v1803
        %v1955 = vunpack.c.l.b16 %v1804
        %v1956 = vunpack.c.h.b16 %v1804
        %v1957 = vunpack.c.l.b16 %v1805
        %v1958 = vunpack.c.l.b16 %v1806
        %v1959 = vunpack.c.h.b16 %v1806
        %v1960 = vunpack.c.l.b16 %v1807
        %v1961 = vunpack.c.l.b16 %v1808
        %v1962 = vunpack.c.h.b16 %v1808
        %v1963 = vunpack.c.l.b16 %v1809
        %v1964 = vunpack.c.l.b16 %v1810
        %v1965 = vunpack.c.h.b16 %v1810
        %v1966 = vunpack.c.l.b16 %v1811
        %v1967 = vunpack.c.l.b16 %v1812
        %v1968 = vunpack.c.h.b16 %v1812
        %v1969 = vunpack.c.l.b16 %v1813
        %v1970 = vunpack.c.l.b16 %v1814
        %v1971 = vunpack.c.h.b16 %v1814
        %v1972 = vunpack.c.l.b16 %v1815
        %v1973 = vunpack.c.l.b16 %v1816
        %v1974 = vunpack.c.h.b16 %v1816
        %v1975 = vunpack.c.l.b16 %v1817
        %v1976 = vunpack.c.l.b16 %v1818
        %v1977 = vunpack.c.h.b16 %v1818
        %v1978 = vunpack.c.l.b16 %v1819
        %v1979 = vunpack.c.l.b16 %v1820
        %v1980 = vunpack.c.h.b16 %v1820
        %v1981 = vunpack.c.l.b16 %v1821
        %v1982 = vpack.c.b16 %v1889, %v1886
        %v1983 = vpack.c.b16 %v1890, %v1887
        %v1984 = vpack.c.b16 %v1891, %v1888
        %v1985 = vpack.c.b16 %v1895, %v1892
        %v1986 = vpack.c.b16 %v1896, %v1893
        %v1987 = vpack.c.b16 %v1897, %v1894
        %v1988 = vpack.c.b16 %v1901, %v1898
        %v1989 = vpack.c.b16 %v1902, %v1899
        %v1990 = vpack.c.b16 %v1903, %v1900
        %v1991 = vpack.c.b16 %v1907, %v1904
        %v1992 = vpack.c.b16 %v1908, %v1905
        %v1993 = vpack.c.b16 %v1909, %v1906
        %v1994 = vpack.c.b16 %v1913, %v1910
        %v1995 = vpack.c.b16 %v1914, %v1911
        %v1996 = vpack.c.b16 %v1915, %v1912
        %v1997 = vpack.c.b16 %v1919, %v1916
        %v1998 = vpack.c.b16 %v1920, %v1917
        %v1999 = vpack.c.b16 %v1921, %v1918
        %v2000 = vpack.c.b16 %v1925, %v1922
        %v2001 = vpack.c.b16 %v1926, %v1923
        %v2002 = vpack.c.b16 %v1927, %v1924
        %v2003 = vpack.c.b16 %v1931, %v1928
        %v2004 = vpack.c.b16 %v1932, %v1929
        %v2005 = vpack.c.b16 %v1933, %v1930
        %v2006 = vpack.c.b16 %v1937, %v1934
        %v2007 = vpack.c.b16 %v1938, %v1935
        %v2008 = vpack.c.b16 %v1939, %v1936
        %v2009 = vpack.c.b16 %v1943, %v1940
        %v2010 = vpack.c.b16 %v1944, %v1941
        %v2011 = vpack.c.b16 %v1945, %v1942
        %v2012 = vpack.c.b16 %v1949, %v1946
        %v2013 = vpack.c.b16 %v1950, %v1947
        %v2014 = vpack.c.b16 %v1951, %v1948
        %v2015 = vpack.c.b16 %v1955, %v1952
        %v2016 = vpack.c.b16 %v1956, %v1953
        %v2017 = vpack.c.b16 %v1957, %v1954
        %v2018 = vpack.c.b16 %v1961, %v1958
        %v2019 = vpack.c.b16 %v1962, %v1959
        %v2020 = vpack.c.b16 %v1963, %v1960
        %v2021 = vpack.c.b16 %v1967, %v1964
        %v2022 = vpack.c.b16 %v1968, %v1965
        %v2023 = vpack.c.b16 %v1969, %v1966
        %v2024 = vpack.c.b16 %v1973, %v1970
        %v2025 = vpack.c.b16 %v1974, %v1971
        %v2026 = vpack.c.b16 %v1975, %v1972
        %v2027 = vpack.c.b16 %v1979, %v1976
        %v2028 = vpack.c.b16 %v1980, %v1977
        %v2029 = vpack.c.b16 %v1981, %v1978
        %2078 = vmatprep.subr.bf16.mxu0 %v1711
        %2079 = vmatpush1.bf16.msra.mxu0 %v1710
        %2080 = vmatprep.subr.bf16.mxu0 %v1713
        %2081 = vmatpush1.bf16.msra.mxu0 %v1712
        %2082 = vmatprep.subr.bf16.mxu0 %v1715
        %2083 = vmatpush1.bf16.msra.mxu0 %v1714
        %2084 = vmatprep.subr.bf16.mxu0 %v1717
        %2085 = vmatpush1.bf16.msra.mxu0 %v1716
        %2086 = vmatprep.subr.bf16.mxu0 %v1719
        %2087 = vmatpush1.bf16.msra.mxu0 %v1718
        %2088 = vmatprep.subr.bf16.mxu0 %v1721
        %2089 = vmatpush1.bf16.msra.mxu0 %v1720
        %2090 = vmatprep.subr.bf16.mxu0 %v1723
        %2091 = vmatpush1.bf16.msra.mxu0 %v1722
        %2092 = vmatprep.subr.bf16.mxu0 %v1725
        %2093 = vmatpush1.bf16.msra.mxu0 %v1724
        %2094 = vmatprep.subr.bf16.mxu0 %v1727
        %2095 = vmatpush1.bf16.msra.mxu0 %v1726
        %2096 = vmatprep.subr.bf16.mxu0 %v1729
        %2097 = vmatpush1.bf16.msra.mxu0 %v1728
        %2098 = vmatprep.subr.bf16.mxu0 %v1731
        %2099 = vmatpush1.bf16.msra.mxu0 %v1730
        %2100 = vmatprep.subr.bf16.mxu0 %v1733
        %2101 = vmatpush1.bf16.msra.mxu0 %v1732
        %2102 = vmatprep.subr.bf16.mxu0 %v1735
        %2103 = vmatpush1.bf16.msra.mxu0 %v1734
        %2104 = vmatprep.subr.bf16.mxu0 %v1737
        %2105 = vmatpush1.bf16.msra.mxu0 %v1736
        %2106 = vmatprep.subr.bf16.mxu0 %v1739
        %2107 = vmatpush1.bf16.msra.mxu0 %v1738
        %2108 = vmatprep.subr.bf16.mxu0 %v1741
        %2109 = vmatpush1.bf16.msra.mxu0 %v1740
        %2110 = vmatprep.mubr.bf16.mxu0 %v1983
        %2111 = vmatmul.mubr.bf16.gmra.mrb[0].mxu0 %v1982
        %v2112 = vpop.f32.mrb[0].mxu0
        %v2113 = vadd.f32 0.0, %v2112
        %v2114 = vpop.f32.mrb[0].mxu0
        %v2115 = vadd.f32 0.0, %v2114
        %v2116 = vpop.f32.mrb[0].mxu0
        %v2117 = vadd.f32 0.0, %v2116
        %v2118 = vpop.f32.mrb[0].mxu0
        %v2119 = vadd.f32 0.0, %v2118
        %2120 = vmatprep.mubr.bf16.mxu0 %v1986
        %2121 = vmatmul.mubr.bf16.gmra.mrb[0].mxu0 %v1985
        %v2122 = vpop.f32.mrb[0].mxu0
        %v2123 = vadd.f32 0.0, %v2122
        %v2124 = vpop.f32.mrb[0].mxu0
        %v2125 = vadd.f32 0.0, %v2124
        %v2126 = vpop.f32.mrb[0].mxu0
        %v2127 = vadd.f32 0.0, %v2126
        %v2128 = vpop.f32.mrb[0].mxu0
        %v2129 = vadd.f32 0.0, %v2128
        %2130 = vmatprep.mubr.bf16.mxu0 %v1989
        %2131 = vmatmul.mubr.bf16.gmra.mrb[0].mxu0 %v1988
        %v2132 = vpop.f32.mrb[0].mxu0
        %v2133 = vadd.f32 0.0, %v2132
        %v2134 = vpop.f32.mrb[0].mxu0
        %v2135 = vadd.f32 0.0, %v2134
        %v2136 = vpop.f32.mrb[0].mxu0
        %v2137 = vadd.f32 0.0, %v2136
        %v2138 = vpop.f32.mrb[0].mxu0
        %v2139 = vadd.f32 0.0, %v2138
        %2140 = vmatprep.mubr.bf16.mxu0 %v1992
        %2141 = vmatmul.mubr.bf16.gmra.mrb[0].mxu0 %v1991
        %v2142 = vpop.f32.mrb[0].mxu0
        %v2143 = vadd.f32 0.0, %v2142
        %v2144 = vpop.f32.mrb[0].mxu0
        %v2145 = vadd.f32 0.0, %v2144
        %v2146 = vpop.f32.mrb[0].mxu0
        %v2147 = vadd.f32 0.0, %v2146
        %v2148 = vpop.f32.mrb[0].mxu0
        %v2149 = vadd.f32 0.0, %v2148
        %2150 = vmatprep.mubr.bf16.mxu0 %v1995
        %2151 = vmatmul.mubr.bf16.gmra.mrb[0].mxu0 %v1994
        %v2152 = vpop.f32.mrb[0].mxu0
        %v2153 = vadd.f32 0.0, %v2152
        %v2154 = vpop.f32.mrb[0].mxu0
        %v2155 = vadd.f32 0.0, %v2154
        %v2156 = vpop.f32.mrb[0].mxu0
        %v2157 = vadd.f32 0.0, %v2156
        %v2158 = vpop.f32.mrb[0].mxu0
        %v2159 = vadd.f32 0.0, %v2158
        %2160 = vmatprep.mubr.bf16.mxu0 %v1998
        %2161 = vmatmul.mubr.bf16.gmra.mrb[0].mxu0 %v1997
        %v2162 = vpop.f32.mrb[0].mxu0
        %v2163 = vadd.f32 0.0, %v2162
        %v2164 = vpop.f32.mrb[0].mxu0
        %v2165 = vadd.f32 0.0, %v2164
        %v2166 = vpop.f32.mrb[0].mxu0
        %v2167 = vadd.f32 0.0, %v2166
        %v2168 = vpop.f32.mrb[0].mxu0
        %v2169 = vadd.f32 0.0, %v2168
        %2170 = vmatprep.mubr.bf16.mxu0 %v2001
        %2171 = vmatmul.mubr.bf16.gmra.mrb[0].mxu0 %v2000
        %v2172 = vpop.f32.mrb[0].mxu0
        %v2173 = vadd.f32 0.0, %v2172
        %v2174 = vpop.f32.mrb[0].mxu0
        %v2175 = vadd.f32 0.0, %v2174
        %v2176 = vpop.f32.mrb[0].mxu0
        %v2177 = vadd.f32 0.0, %v2176
        %v2178 = vpop.f32.mrb[0].mxu0
        %v2179 = vadd.f32 0.0, %v2178
        %2180 = vmatprep.mubr.bf16.mxu0 %v2004
        %2181 = vmatmul.mubr.bf16.gmra.mrb[0].mxu0 %v2003
        %v2182 = vpop.f32.mrb[0].mxu0
        %v2183 = vadd.f32 0.0, %v2182
        %v2184 = vpop.f32.mrb[0].mxu0
        %v2185 = vadd.f32 0.0, %v2184
        %v2186 = vpop.f32.mrb[0].mxu0
        %v2187 = vadd.f32 0.0, %v2186
        %v2188 = vpop.f32.mrb[0].mxu0
        %v2189 = vadd.f32 0.0, %v2188
        %2190 = vmatprep.mubr.bf16.mxu0 %v2007
        %2191 = vmatmul.mubr.bf16.gmra.mrb[0].mxu0 %v2006
        %v2192 = vpop.f32.mrb[0].mxu0
        %v2193 = vadd.f32 0.0, %v2192
        %v2194 = vpop.f32.mrb[0].mxu0
        %v2195 = vadd.f32 0.0, %v2194
        %v2196 = vpop.f32.mrb[0].mxu0
        %v2197 = vadd.f32 0.0, %v2196
        %v2198 = vpop.f32.mrb[0].mxu0
        %v2199 = vadd.f32 0.0, %v2198
        %2200 = vmatprep.mubr.bf16.mxu0 %v2010
        %2201 = vmatmul.mubr.bf16.gmra.mrb[0].mxu0 %v2009
        %v2202 = vpop.f32.mrb[0].mxu0
        %v2203 = vadd.f32 0.0, %v2202
        %v2204 = vpop.f32.mrb[0].mxu0
        %v2205 = vadd.f32 0.0, %v2204
        %v2206 = vpop.f32.mrb[0].mxu0
        %v2207 = vadd.f32 0.0, %v2206
        %v2208 = vpop.f32.mrb[0].mxu0
        %v2209 = vadd.f32 0.0, %v2208
        %2210 = vmatprep.mubr.bf16.mxu0 %v2013
        %2211 = vmatmul.mubr.bf16.gmra.mrb[0].mxu0 %v2012
        %v2212 = vpop.f32.mrb[0].mxu0
        %v2213 = vadd.f32 0.0, %v2212
        %v2214 = vpop.f32.mrb[0].mxu0
        %v2215 = vadd.f32 0.0, %v2214
        %v2216 = vpop.f32.mrb[0].mxu0
        %v2217 = vadd.f32 0.0, %v2216
        %v2218 = vpop.f32.mrb[0].mxu0
        %v2219 = vadd.f32 0.0, %v2218
        %2220 = vmatprep.mubr.bf16.mxu0 %v2016
        %2221 = vmatmul.mubr.bf16.gmra.mrb[0].mxu0 %v2015
        %v2222 = vpop.f32.mrb[0].mxu0
        %v2223 = vadd.f32 0.0, %v2222
        %v2224 = vpop.f32.mrb[0].mxu0
        %v2225 = vadd.f32 0.0, %v2224
        %v2226 = vpop.f32.mrb[0].mxu0
        %v2227 = vadd.f32 0.0, %v2226
        %v2228 = vpop.f32.mrb[0].mxu0
        %v2229 = vadd.f32 0.0, %v2228
        %2230 = vmatprep.mubr.bf16.mxu0 %v2019
        %2231 = vmatmul.mubr.bf16.gmra.mrb[0].mxu0 %v2018
        %v2232 = vpop.f32.mrb[0].mxu0
        %v2233 = vadd.f32 0.0, %v2232
        %v2234 = vpop.f32.mrb[0].mxu0
        %v2235 = vadd.f32 0.0, %v2234
        %v2236 = vpop.f32.mrb[0].mxu0
        %v2237 = vadd.f32 0.0, %v2236
        %v2238 = vpop.f32.mrb[0].mxu0
        %v2239 = vadd.f32 0.0, %v2238
        %2240 = vmatprep.mubr.bf16.mxu0 %v2022
        %2241 = vmatmul.mubr.bf16.gmra.mrb[0].mxu0 %v2021
        %v2242 = vpop.f32.mrb[0].mxu0
        %v2243 = vadd.f32 0.0, %v2242
        %v2244 = vpop.f32.mrb[0].mxu0
        %v2245 = vadd.f32 0.0, %v2244
        %v2246 = vpop.f32.mrb[0].mxu0
        %v2247 = vadd.f32 0.0, %v2246
        %v2248 = vpop.f32.mrb[0].mxu0
        %v2249 = vadd.f32 0.0, %v2248
        %2250 = vmatprep.mubr.bf16.mxu0 %v2025
        %2251 = vmatmul.mubr.bf16.gmra.mrb[0].mxu0 %v2024
        %v2252 = vpop.f32.mrb[0].mxu0
        %v2253 = vadd.f32 0.0, %v2252
        %v2254 = vpop.f32.mrb[0].mxu0
        %v2255 = vadd.f32 0.0, %v2254
        %v2256 = vpop.f32.mrb[0].mxu0
        %v2257 = vadd.f32 0.0, %v2256
        %v2258 = vpop.f32.mrb[0].mxu0
        %v2259 = vadd.f32 0.0, %v2258
        %2260 = vmatprep.mubr.bf16.mxu0 %v2028
        %2261 = vmatmul.mubr.bf16.gmra.mrb[0].mxu0 %v2027
        %v2262 = vpop.f32.mrb[0].mxu0
        %v2263 = vadd.f32 0.0, %v2262
        %v2264 = vpop.f32.mrb[0].mxu0
        %v2265 = vadd.f32 0.0, %v2264
        %v2266 = vpop.f32.mrb[0].mxu0
        %v2267 = vadd.f32 0.0, %v2266
        %v2268 = vpop.f32.mrb[0].mxu0
        %v2269 = vadd.f32 0.0, %v2268
        %2270 = vdwg.mxu0
        %2271 = vmatprep.subr.bf16.mxu0 %v1743
        %2272 = vmatpush1.bf16.msra.mxu0 %v1742
        %2273 = vmatprep.subr.bf16.mxu0 %v1745
        %2274 = vmatpush1.bf16.msra.mxu0 %v1744
        %2275 = vmatprep.subr.bf16.mxu0 %v1747
        %2276 = vmatpush1.bf16.msra.mxu0 %v1746
        %2277 = vmatprep.subr.bf16.mxu0 %v1749
        %2278 = vmatpush1.bf16.msra.mxu0 %v1748
        %2279 = vmatprep.subr.bf16.mxu0 %v1751
        %2280 = vmatpush1.bf16.msra.mxu0 %v1750
        %2281 = vmatprep.subr.bf16.mxu0 %v1753
        %2282 = vmatpush1.bf16.msra.mxu0 %v1752
        %2283 = vmatprep.subr.bf16.mxu0 %v1755
        %2284 = vmatpush1.bf16.msra.mxu0 %v1754
        %2285 = vmatprep.subr.bf16.mxu0 %v1757
        %2286 = vmatpush1.bf16.msra.mxu0 %v1756
        %2287 = vmatprep.subr.bf16.mxu0 0
        %2288 = vmatpush1.bf16.msra.mxu0 0
        %2289 = vmatprep.subr.bf16.mxu0 0
        %2290 = vmatpush1.bf16.msra.mxu0 0
        %2291 = vmatprep.subr.bf16.mxu0 0
        %2292 = vmatpush1.bf16.msra.mxu0 0
        %2293 = vmatprep.subr.bf16.mxu0 0
        %2294 = vmatpush1.bf16.msra.mxu0 0
        %2295 = vmatprep.subr.bf16.mxu0 0
        %2296 = vmatpush1.bf16.msra.mxu0 0
        %2297 = vmatprep.subr.bf16.mxu0 0
        %2298 = vmatpush1.bf16.msra.mxu0 0
        %2299 = vmatprep.subr.bf16.mxu0 0
        %2300 = vmatpush1.bf16.msra.mxu0 0
        %2301 = vmatprep.subr.bf16.mxu0 0
        %2302 = vmatpush1.bf16.msra.mxu0 0
        %2303 = vmatprep.mubr.bf16.mxu0 0
        %2304 = vmatmul.mubr.bf16.gmra.mrb[0].mxu0 %v1984
        %v2305 = vpop.f32.mrb[0].mxu0
        %v2306 = vadd.f32 %v2113, %v2305
        %v2307 = vpop.f32.mrb[0].mxu0
        %v2308 = vadd.f32 %v2115, %v2307
        %v2309 = vpop.f32.mrb[0].mxu0
        %v2310 = vadd.f32 %v2117, %v2309
        %v2311 = vpop.f32.mrb[0].mxu0
        %v2312 = vadd.f32 %v2119, %v2311
        %2313 = vmatprep.mubr.bf16.mxu0 0
        %2314 = vmatmul.mubr.bf16.gmra.mrb[0].mxu0 %v1987
        %v2315 = vpop.f32.mrb[0].mxu0
        %v2316 = vadd.f32 %v2123, %v2315
        %v2317 = vpop.f32.mrb[0].mxu0
        %v2318 = vadd.f32 %v2125, %v2317
        %v2319 = vpop.f32.mrb[0].mxu0
        %v2320 = vadd.f32 %v2127, %v2319
        %v2321 = vpop.f32.mrb[0].mxu0
        %v2322 = vadd.f32 %v2129, %v2321
        %2323 = vmatprep.mubr.bf16.mxu0 0
        %2324 = vmatmul.mubr.bf16.gmra.mrb[0].mxu0 %v1990
        %v2325 = vpop.f32.mrb[0].mxu0
        %v2326 = vadd.f32 %v2133, %v2325
        %v2327 = vpop.f32.mrb[0].mxu0
        %v2328 = vadd.f32 %v2135, %v2327
        %v2329 = vpop.f32.mrb[0].mxu0
        %v2330 = vadd.f32 %v2137, %v2329
        %v2331 = vpop.f32.mrb[0].mxu0
        %v2332 = vadd.f32 %v2139, %v2331
        %2333 = vmatprep.mubr.bf16.mxu0 0
        %2334 = vmatmul.mubr.bf16.gmra.mrb[0].mxu0 %v1993
        %v2335 = vpop.f32.mrb[0].mxu0
        %v2336 = vadd.f32 %v2143, %v2335
        %v2337 = vpop.f32.mrb[0].mxu0
        %v2338 = vadd.f32 %v2145, %v2337
        %v2339 = vpop.f32.mrb[0].mxu0
        %v2340 = vadd.f32 %v2147, %v2339
        %v2341 = vpop.f32.mrb[0].mxu0
        %v2342 = vadd.f32 %v2149, %v2341
        %2343 = vmatprep.mubr.bf16.mxu0 0
        %2344 = vmatmul.mubr.bf16.gmra.mrb[0].mxu0 %v1996
        %v2345 = vpop.f32.mrb[0].mxu0
        %v2346 = vadd.f32 %v2153, %v2345
        %v2347 = vpop.f32.mrb[0].mxu0
        %v2348 = vadd.f32 %v2155, %v2347
        %v2349 = vpop.f32.mrb[0].mxu0
        %v2350 = vadd.f32 %v2157, %v2349
        %v2351 = vpop.f32.mrb[0].mxu0
        %v2352 = vadd.f32 %v2159, %v2351
        %2353 = vmatprep.mubr.bf16.mxu0 0
        %2354 = vmatmul.mubr.bf16.gmra.mrb[0].mxu0 %v1999
        %v2355 = vpop.f32.mrb[0].mxu0
        %v2356 = vadd.f32 %v2163, %v2355
        %v2357 = vpop.f32.mrb[0].mxu0
        %v2358 = vadd.f32 %v2165, %v2357
        %v2359 = vpop.f32.mrb[0].mxu0
        %v2360 = vadd.f32 %v2167, %v2359
        %v2361 = vpop.f32.mrb[0].mxu0
        %v2362 = vadd.f32 %v2169, %v2361
        %2363 = vmatprep.mubr.bf16.mxu0 0
        %2364 = vmatmul.mubr.bf16.gmra.mrb[0].mxu0 %v2002
        %v2365 = vpop.f32.mrb[0].mxu0
        %v2366 = vadd.f32 %v2173, %v2365
        %v2367 = vpop.f32.mrb[0].mxu0
        %v2368 = vadd.f32 %v2175, %v2367
        %v2369 = vpop.f32.mrb[0].mxu0
        %v2370 = vadd.f32 %v2177, %v2369
        %v2371 = vpop.f32.mrb[0].mxu0
        %v2372 = vadd.f32 %v2179, %v2371
        %2373 = vmatprep.mubr.bf16.mxu0 0
        %2374 = vmatmul.mubr.bf16.gmra.mrb[0].mxu0 %v2005
        %v2375 = vpop.f32.mrb[0].mxu0
        %v2376 = vadd.f32 %v2183, %v2375
        %v2377 = vpop.f32.mrb[0].mxu0
        %v2378 = vadd.f32 %v2185, %v2377
        %v2379 = vpop.f32.mrb[0].mxu0
        %v2380 = vadd.f32 %v2187, %v2379
        %v2381 = vpop.f32.mrb[0].mxu0
        %v2382 = vadd.f32 %v2189, %v2381
        %2383 = vmatprep.mubr.bf16.mxu0 0
        %2384 = vmatmul.mubr.bf16.gmra.mrb[0].mxu0 %v2008
        %v2385 = vpop.f32.mrb[0].mxu0
        %v2386 = vadd.f32 %v2193, %v2385
        %v2387 = vpop.f32.mrb[0].mxu0
        %v2388 = vadd.f32 %v2195, %v2387
        %v2389 = vpop.f32.mrb[0].mxu0
        %v2390 = vadd.f32 %v2197, %v2389
        %v2391 = vpop.f32.mrb[0].mxu0
        %v2392 = vadd.f32 %v2199, %v2391
        %2393 = vmatprep.mubr.bf16.mxu0 0
        %2394 = vmatmul.mubr.bf16.gmra.mrb[0].mxu0 %v2011
        %v2395 = vpop.f32.mrb[0].mxu0
        %v2396 = vadd.f32 %v2203, %v2395
        %v2397 = vpop.f32.mrb[0].mxu0
        %v2398 = vadd.f32 %v2205, %v2397
        %v2399 = vpop.f32.mrb[0].mxu0
        %v2400 = vadd.f32 %v2207, %v2399
        %v2401 = vpop.f32.mrb[0].mxu0
        %v2402 = vadd.f32 %v2209, %v2401
        %2403 = vmatprep.mubr.bf16.mxu0 0
        %2404 = vmatmul.mubr.bf16.gmra.mrb[0].mxu0 %v2014
        %v2405 = vpop.f32.mrb[0].mxu0
        %v2406 = vadd.f32 %v2213, %v2405
        %v2407 = vpop.f32.mrb[0].mxu0
        %v2408 = vadd.f32 %v2215, %v2407
        %v2409 = vpop.f32.mrb[0].mxu0
        %v2410 = vadd.f32 %v2217, %v2409
        %v2411 = vpop.f32.mrb[0].mxu0
        %v2412 = vadd.f32 %v2219, %v2411
        %2413 = vmatprep.mubr.bf16.mxu0 0
        %2414 = vmatmul.mubr.bf16.gmra.mrb[0].mxu0 %v2017
        %v2415 = vpop.f32.mrb[0].mxu0
        %v2416 = vadd.f32 %v2223, %v2415
        %v2417 = vpop.f32.mrb[0].mxu0
        %v2418 = vadd.f32 %v2225, %v2417
        %v2419 = vpop.f32.mrb[0].mxu0
        %v2420 = vadd.f32 %v2227, %v2419
        %v2421 = vpop.f32.mrb[0].mxu0
        %v2422 = vadd.f32 %v2229, %v2421
        %2423 = vmatprep.mubr.bf16.mxu0 0
        %2424 = vmatmul.mubr.bf16.gmra.mrb[0].mxu0 %v2020
        %v2425 = vpop.f32.mrb[0].mxu0
        %v2426 = vadd.f32 %v2233, %v2425
        %v2427 = vpop.f32.mrb[0].mxu0
        %v2428 = vadd.f32 %v2235, %v2427
        %v2429 = vpop.f32.mrb[0].mxu0
        %v2430 = vadd.f32 %v2237, %v2429
        %v2431 = vpop.f32.mrb[0].mxu0
        %v2432 = vadd.f32 %v2239, %v2431
        %2433 = vmatprep.mubr.bf16.mxu0 0
        %2434 = vmatmul.mubr.bf16.gmra.mrb[0].mxu0 %v2023
        %v2435 = vpop.f32.mrb[0].mxu0
        %v2436 = vadd.f32 %v2243, %v2435
        %v2437 = vpop.f32.mrb[0].mxu0
        %v2438 = vadd.f32 %v2245, %v2437
        %v2439 = vpop.f32.mrb[0].mxu0
        %v2440 = vadd.f32 %v2247, %v2439
        %v2441 = vpop.f32.mrb[0].mxu0
        %v2442 = vadd.f32 %v2249, %v2441
        %2443 = vmatprep.mubr.bf16.mxu0 0
        %2444 = vmatmul.mubr.bf16.gmra.mrb[0].mxu0 %v2026
        %v2445 = vpop.f32.mrb[0].mxu0
        %v2446 = vadd.f32 %v2253, %v2445
        %v2447 = vpop.f32.mrb[0].mxu0
        %v2448 = vadd.f32 %v2255, %v2447
        %v2449 = vpop.f32.mrb[0].mxu0
        %v2450 = vadd.f32 %v2257, %v2449
        %v2451 = vpop.f32.mrb[0].mxu0
        %v2452 = vadd.f32 %v2259, %v2451
        %2453 = vmatprep.mubr.bf16.mxu0 0
        %2454 = vmatmul.mubr.bf16.gmra.mrb[0].mxu0 %v2029
        %v2455 = vpop.f32.mrb[0].mxu0
        %v2456 = vadd.f32 %v2263, %v2455
        %v2457 = vpop.f32.mrb[0].mxu0
        %v2458 = vadd.f32 %v2265, %v2457
        %v2459 = vpop.f32.mrb[0].mxu0
        %v2460 = vadd.f32 %v2267, %v2459
        %v2461 = vpop.f32.mrb[0].mxu0
        %v2462 = vadd.f32 %v2269, %v2461
        %2463 = vdwg.mxu0
        %v2464 = vpack.c.bf16 %v2310, %v2306
        %v2465 = vpack.c.bf16 %v2312, %v2308
        %v2466 = vpack.c.bf16 %v2320, %v2316
        %v2467 = vpack.c.bf16 %v2322, %v2318
        %v2468 = vpack.c.bf16 %v2330, %v2326
        %v2469 = vpack.c.bf16 %v2332, %v2328
        %v2470 = vpack.c.bf16 %v2340, %v2336
        %v2471 = vpack.c.bf16 %v2342, %v2338
        %v2472 = vpack.c.bf16 %v2350, %v2346
        %v2473 = vpack.c.bf16 %v2352, %v2348
        %v2474 = vpack.c.bf16 %v2360, %v2356
        %v2475 = vpack.c.bf16 %v2362, %v2358
        %v2476 = vpack.c.bf16 %v2370, %v2366
        %v2477 = vpack.c.bf16 %v2372, %v2368
        %v2478 = vpack.c.bf16 %v2380, %v2376
        %v2479 = vpack.c.bf16 %v2382, %v2378
        %v2480 = vpack.c.bf16 %v2390, %v2386
        %v2481 = vpack.c.bf16 %v2392, %v2388
        %v2482 = vpack.c.bf16 %v2400, %v2396
        %v2483 = vpack.c.bf16 %v2402, %v2398
        %v2484 = vpack.c.bf16 %v2410, %v2406
        %v2485 = vpack.c.bf16 %v2412, %v2408
        %v2486 = vpack.c.bf16 %v2420, %v2416
        %v2487 = vpack.c.bf16 %v2422, %v2418
        %v2488 = vpack.c.bf16 %v2430, %v2426
        %v2489 = vpack.c.bf16 %v2432, %v2428
        %v2490 = vpack.c.bf16 %v2440, %v2436
        %v2491 = vpack.c.bf16 %v2442, %v2438
        %v2492 = vpack.c.bf16 %v2450, %v2446
        %v2493 = vpack.c.bf16 %v2452, %v2448
        %v2494 = vpack.c.bf16 %v2460, %v2456
        %v2495 = vpack.c.bf16 %v2462, %v2458
        %v2496 = vld [vmem:[%s4] sm:$0xf]
        %v2497 = vld [vmem:[%s4 + $0x4] sm:$0xf]
        %v2498 = vld [vmem:[%s4 + $0x8] sm:$0xf]
        %v2499 = vld [vmem:[%s4 + $0xc] sm:$0xf]
        %v2500 = vld [vmem:[%s4 + $0x10] sm:$0xf]
        %v2501 = vld [vmem:[%s4 + $0x14] sm:$0xf]
        %v2502 = vld [vmem:[%s4 + $0x18] sm:$0xf]
        %v2503 = vld [vmem:[%s4 + $0x1c] sm:$0xf]
        %v2504 = vld [vmem:[%s4 + $0x20] sm:$0xf]
        %v2505 = vld [vmem:[%s4 + $0x24] sm:$0xf]
        %v2506 = vld [vmem:[%s4 + $0x28] sm:$0xf]
        %v2507 = vld [vmem:[%s4 + $0x2c] sm:$0xf]
        %v2508 = vld [vmem:[%s4 + $0x30] sm:$0xf]
        %v2509 = vld [vmem:[%s4 + $0x34] sm:$0xf]
        %v2510 = vld [vmem:[%s4 + $0x38] sm:$0xf]
        %v2511 = vld [vmem:[%s4 + $0x3c] sm:$0xf]
        %v2512 = vld [vmem:[%s4 + $0x40] sm:$0xf]
        %v2513 = vld [vmem:[%s4 + $0x44] sm:$0xf]
        %v2514 = vld [vmem:[%s4 + $0x48] sm:$0xf]
        %v2515 = vld [vmem:[%s4 + $0x4c] sm:$0xf]
        %v2516 = vld [vmem:[%s4 + $0x50] sm:$0xf]
        %v2517 = vld [vmem:[%s4 + $0x54] sm:$0xf]
        %v2518 = vld [vmem:[%s4 + $0x58] sm:$0xf]
        %v2519 = vld [vmem:[%s4 + $0x5c] sm:$0xf]
        %v2520 = vld [vmem:[%s4 + $0x60] sm:$0xf]
        %v2521 = vld [vmem:[%s4 + $0x64] sm:$0xf]
        %v2522 = vld [vmem:[%s4 + $0x68] sm:$0xf]
        %v2523 = vld [vmem:[%s4 + $0x6c] sm:$0xf]
        %v2524 = vld [vmem:[%s4 + $0x70] sm:$0xf]
        %v2525 = vld [vmem:[%s4 + $0x74] sm:$0xf]
        %v2526 = vld [vmem:[%s4 + $0x78] sm:$0xf]
        %v2527 = vld [vmem:[%s4 + $0x7c] sm:$0xf]
        %2529 = vset.pattern.permute.xlu0 0
        %2530 = vperm.xlu0 %2529, %v2496
        %v2531 = vpop.permute.xlu0 %2530
        %v2534 = vunpack.c.l.s4 839922192
        %v2535 = vunpack.c.0.s8 %v2534
        %v2536 = vlaneseq
        %v2537 = vshrl.u32 %v2536, 7
        %v2538 = vsub.s32 %v2535, %v2537
        %v2539 = vrot.slane %v2531, %v2538
        %2541 = vset.pattern.permute.xlu0 0
        %2542 = vperm.xlu0 %2541, %v2497
        %v2543 = vpop.permute.xlu0 %2542
        %v2546 = vunpack.c.l.s4 839922192
        %v2547 = vunpack.c.0.s8 %v2546
        %v2548 = vlaneseq
        %v2549 = vshrl.u32 %v2548, 7
        %v2550 = vsub.s32 %v2547, %v2549
        %v2551 = vrot.slane %v2543, %v2550
        %2553 = vset.pattern.permute.xlu0 0
        %2554 = vperm.xlu0 %2553, %v2498
        %v2555 = vpop.permute.xlu0 %2554
        %v2558 = vunpack.c.l.s4 839922192
        %v2559 = vunpack.c.0.s8 %v2558
        %v2560 = vlaneseq
        %v2561 = vshrl.u32 %v2560, 7
        %v2562 = vsub.s32 %v2559, %v2561
        %v2563 = vrot.slane %v2555, %v2562
        %2565 = vset.pattern.permute.xlu0 0
        %2566 = vperm.xlu0 %2565, %v2499
        %v2567 = vpop.permute.xlu0 %2566
        %v2570 = vunpack.c.l.s4 839922192
        %v2571 = vunpack.c.0.s8 %v2570
        %v2572 = vlaneseq
        %v2573 = vshrl.u32 %v2572, 7
        %v2574 = vsub.s32 %v2571, %v2573
        %v2575 = vrot.slane %v2567, %v2574
        %2577 = vset.pattern.permute.xlu0 0
        %2578 = vperm.xlu0 %2577, %v2500
        %v2579 = vpop.permute.xlu0 %2578
        %v2582 = vunpack.c.l.s4 839922192
        %v2583 = vunpack.c.0.s8 %v2582
        %v2584 = vlaneseq
        %v2585 = vshrl.u32 %v2584, 7
        %v2586 = vsub.s32 %v2583, %v2585
        %v2587 = vrot.slane %v2579, %v2586
        %2589 = vset.pattern.permute.xlu0 0
        %2590 = vperm.xlu0 %2589, %v2501
        %v2591 = vpop.permute.xlu0 %2590
        %v2594 = vunpack.c.l.s4 839922192
        %v2595 = vunpack.c.0.s8 %v2594
        %v2596 = vlaneseq
        %v2597 = vshrl.u32 %v2596, 7
        %v2598 = vsub.s32 %v2595, %v2597
        %v2599 = vrot.slane %v2591, %v2598
        %2601 = vset.pattern.permute.xlu0 0
        %2602 = vperm.xlu0 %2601, %v2502
        %v2603 = vpop.permute.xlu0 %2602
        %v2606 = vunpack.c.l.s4 839922192
        %v2607 = vunpack.c.0.s8 %v2606
        %v2608 = vlaneseq
        %v2609 = vshrl.u32 %v2608, 7
        %v2610 = vsub.s32 %v2607, %v2609
        %v2611 = vrot.slane %v2603, %v2610
        %2613 = vset.pattern.permute.xlu0 0
        %2614 = vperm.xlu0 %2613, %v2503
        %v2615 = vpop.permute.xlu0 %2614
        %v2618 = vunpack.c.l.s4 839922192
        %v2619 = vunpack.c.0.s8 %v2618
        %v2620 = vlaneseq
        %v2621 = vshrl.u32 %v2620, 7
        %v2622 = vsub.s32 %v2619, %v2621
        %v2623 = vrot.slane %v2615, %v2622
        %2625 = vset.pattern.permute.xlu0 0
        %2626 = vperm.xlu0 %2625, %v2504
        %v2627 = vpop.permute.xlu0 %2626
        %v2630 = vunpack.c.l.s4 839922192
        %v2631 = vunpack.c.0.s8 %v2630
        %v2632 = vlaneseq
        %v2633 = vshrl.u32 %v2632, 7
        %v2634 = vsub.s32 %v2631, %v2633
        %v2635 = vrot.slane %v2627, %v2634
        %2637 = vset.pattern.permute.xlu0 0
        %2638 = vperm.xlu0 %2637, %v2505
        %v2639 = vpop.permute.xlu0 %2638
        %v2642 = vunpack.c.l.s4 839922192
        %v2643 = vunpack.c.0.s8 %v2642
        %v2644 = vlaneseq
        %v2645 = vshrl.u32 %v2644, 7
        %v2646 = vsub.s32 %v2643, %v2645
        %v2647 = vrot.slane %v2639, %v2646
        %2649 = vset.pattern.permute.xlu0 0
        %2650 = vperm.xlu0 %2649, %v2506
        %v2651 = vpop.permute.xlu0 %2650
        %v2654 = vunpack.c.l.s4 839922192
        %v2655 = vunpack.c.0.s8 %v2654
        %v2656 = vlaneseq
        %v2657 = vshrl.u32 %v2656, 7
        %v2658 = vsub.s32 %v2655, %v2657
        %v2659 = vrot.slane %v2651, %v2658
        %2661 = vset.pattern.permute.xlu0 0
        %2662 = vperm.xlu0 %2661, %v2507
        %v2663 = vpop.permute.xlu0 %2662
        %v2666 = vunpack.c.l.s4 839922192
        %v2667 = vunpack.c.0.s8 %v2666
        %v2668 = vlaneseq
        %v2669 = vshrl.u32 %v2668, 7
        %v2670 = vsub.s32 %v2667, %v2669
        %v2671 = vrot.slane %v2663, %v2670
        %2673 = vset.pattern.permute.xlu0 0
        %2674 = vperm.xlu0 %2673, %v2508
        %v2675 = vpop.permute.xlu0 %2674
        %v2678 = vunpack.c.l.s4 839922192
        %v2679 = vunpack.c.0.s8 %v2678
        %v2680 = vlaneseq
        %v2681 = vshrl.u32 %v2680, 7
        %v2682 = vsub.s32 %v2679, %v2681
        %v2683 = vrot.slane %v2675, %v2682
        %2685 = vset.pattern.permute.xlu0 0
        %2686 = vperm.xlu0 %2685, %v2509
        %v2687 = vpop.permute.xlu0 %2686
        %v2690 = vunpack.c.l.s4 839922192
        %v2691 = vunpack.c.0.s8 %v2690
        %v2692 = vlaneseq
        %v2693 = vshrl.u32 %v2692, 7
        %v2694 = vsub.s32 %v2691, %v2693
        %v2695 = vrot.slane %v2687, %v2694
        %2697 = vset.pattern.permute.xlu0 0
        %2698 = vperm.xlu0 %2697, %v2510
        %v2699 = vpop.permute.xlu0 %2698
        %v2702 = vunpack.c.l.s4 839922192
        %v2703 = vunpack.c.0.s8 %v2702
        %v2704 = vlaneseq
        %v2705 = vshrl.u32 %v2704, 7
        %v2706 = vsub.s32 %v2703, %v2705
        %v2707 = vrot.slane %v2699, %v2706
        %2709 = vset.pattern.permute.xlu0 0
        %2710 = vperm.xlu0 %2709, %v2511
        %v2711 = vpop.permute.xlu0 %2710
        %v2714 = vunpack.c.l.s4 839922192
        %v2715 = vunpack.c.0.s8 %v2714
        %v2716 = vlaneseq
        %v2717 = vshrl.u32 %v2716, 7
        %v2718 = vsub.s32 %v2715, %v2717
        %v2719 = vrot.slane %v2711, %v2718
        %2721 = vset.pattern.permute.xlu0 0
        %2722 = vperm.xlu0 %2721, %v2512
        %v2723 = vpop.permute.xlu0 %2722
        %v2726 = vunpack.c.l.s4 839922192
        %v2727 = vunpack.c.0.s8 %v2726
        %v2728 = vlaneseq
        %v2729 = vshrl.u32 %v2728, 7
        %v2730 = vsub.s32 %v2727, %v2729
        %v2731 = vrot.slane %v2723, %v2730
        %2733 = vset.pattern.permute.xlu0 0
        %2734 = vperm.xlu0 %2733, %v2513
        %v2735 = vpop.permute.xlu0 %2734
        %v2738 = vunpack.c.l.s4 839922192
        %v2739 = vunpack.c.0.s8 %v2738
        %v2740 = vlaneseq
        %v2741 = vshrl.u32 %v2740, 7
        %v2742 = vsub.s32 %v2739, %v2741
        %v2743 = vrot.slane %v2735, %v2742
        %2745 = vset.pattern.permute.xlu0 0
        %2746 = vperm.xlu0 %2745, %v2514
        %v2747 = vpop.permute.xlu0 %2746
        %v2750 = vunpack.c.l.s4 839922192
        %v2751 = vunpack.c.0.s8 %v2750
        %v2752 = vlaneseq
        %v2753 = vshrl.u32 %v2752, 7
        %v2754 = vsub.s32 %v2751, %v2753
        %v2755 = vrot.slane %v2747, %v2754
        %2757 = vset.pattern.permute.xlu0 0
        %2758 = vperm.xlu0 %2757, %v2515
        %v2759 = vpop.permute.xlu0 %2758
        %v2762 = vunpack.c.l.s4 839922192
        %v2763 = vunpack.c.0.s8 %v2762
        %v2764 = vlaneseq
        %v2765 = vshrl.u32 %v2764, 7
        %v2766 = vsub.s32 %v2763, %v2765
        %v2767 = vrot.slane %v2759, %v2766
        %2769 = vset.pattern.permute.xlu0 0
        %2770 = vperm.xlu0 %2769, %v2516
        %v2771 = vpop.permute.xlu0 %2770
        %v2774 = vunpack.c.l.s4 839922192
        %v2775 = vunpack.c.0.s8 %v2774
        %v2776 = vlaneseq
        %v2777 = vshrl.u32 %v2776, 7
        %v2778 = vsub.s32 %v2775, %v2777
        %v2779 = vrot.slane %v2771, %v2778
        %2781 = vset.pattern.permute.xlu0 0
        %2782 = vperm.xlu0 %2781, %v2517
        %v2783 = vpop.permute.xlu0 %2782
        %v2786 = vunpack.c.l.s4 839922192
        %v2787 = vunpack.c.0.s8 %v2786
        %v2788 = vlaneseq
        %v2789 = vshrl.u32 %v2788, 7
        %v2790 = vsub.s32 %v2787, %v2789
        %v2791 = vrot.slane %v2783, %v2790
        %2793 = vset.pattern.permute.xlu0 0
        %2794 = vperm.xlu0 %2793, %v2518
        %v2795 = vpop.permute.xlu0 %2794
        %v2798 = vunpack.c.l.s4 839922192
        %v2799 = vunpack.c.0.s8 %v2798
        %v2800 = vlaneseq
        %v2801 = vshrl.u32 %v2800, 7
        %v2802 = vsub.s32 %v2799, %v2801
        %v2803 = vrot.slane %v2795, %v2802
        %2805 = vset.pattern.permute.xlu0 0
        %2806 = vperm.xlu0 %2805, %v2519
        %v2807 = vpop.permute.xlu0 %2806
        %v2810 = vunpack.c.l.s4 839922192
        %v2811 = vunpack.c.0.s8 %v2810
        %v2812 = vlaneseq
        %v2813 = vshrl.u32 %v2812, 7
        %v2814 = vsub.s32 %v2811, %v2813
        %v2815 = vrot.slane %v2807, %v2814
        %2817 = vset.pattern.permute.xlu0 0
        %2818 = vperm.xlu0 %2817, %v2520
        %v2819 = vpop.permute.xlu0 %2818
        %v2822 = vunpack.c.l.s4 839922192
        %v2823 = vunpack.c.0.s8 %v2822
        %v2824 = vlaneseq
        %v2825 = vshrl.u32 %v2824, 7
        %v2826 = vsub.s32 %v2823, %v2825
        %v2827 = vrot.slane %v2819, %v2826
        %2829 = vset.pattern.permute.xlu0 0
        %2830 = vperm.xlu0 %2829, %v2521
        %v2831 = vpop.permute.xlu0 %2830
        %v2834 = vunpack.c.l.s4 839922192
        %v2835 = vunpack.c.0.s8 %v2834
        %v2836 = vlaneseq
        %v2837 = vshrl.u32 %v2836, 7
        %v2838 = vsub.s32 %v2835, %v2837
        %v2839 = vrot.slane %v2831, %v2838
        %2841 = vset.pattern.permute.xlu0 0
        %2842 = vperm.xlu0 %2841, %v2522
        %v2843 = vpop.permute.xlu0 %2842
        %v2846 = vunpack.c.l.s4 839922192
        %v2847 = vunpack.c.0.s8 %v2846
        %v2848 = vlaneseq
        %v2849 = vshrl.u32 %v2848, 7
        %v2850 = vsub.s32 %v2847, %v2849
        %v2851 = vrot.slane %v2843, %v2850
        %2853 = vset.pattern.permute.xlu0 0
        %2854 = vperm.xlu0 %2853, %v2523
        %v2855 = vpop.permute.xlu0 %2854
        %v2858 = vunpack.c.l.s4 839922192
        %v2859 = vunpack.c.0.s8 %v2858
        %v2860 = vlaneseq
        %v2861 = vshrl.u32 %v2860, 7
        %v2862 = vsub.s32 %v2859, %v2861
        %v2863 = vrot.slane %v2855, %v2862
        %2865 = vset.pattern.permute.xlu0 0
        %2866 = vperm.xlu0 %2865, %v2524
        %v2867 = vpop.permute.xlu0 %2866
        %v2870 = vunpack.c.l.s4 839922192
        %v2871 = vunpack.c.0.s8 %v2870
        %v2872 = vlaneseq
        %v2873 = vshrl.u32 %v2872, 7
        %v2874 = vsub.s32 %v2871, %v2873
        %v2875 = vrot.slane %v2867, %v2874
        %2877 = vset.pattern.permute.xlu0 0
        %2878 = vperm.xlu0 %2877, %v2525
        %v2879 = vpop.permute.xlu0 %2878
        %v2882 = vunpack.c.l.s4 839922192
        %v2883 = vunpack.c.0.s8 %v2882
        %v2884 = vlaneseq
        %v2885 = vshrl.u32 %v2884, 7
        %v2886 = vsub.s32 %v2883, %v2885
        %v2887 = vrot.slane %v2879, %v2886
        %2889 = vset.pattern.permute.xlu0 0
        %2890 = vperm.xlu0 %2889, %v2526
        %v2891 = vpop.permute.xlu0 %2890
        %v2894 = vunpack.c.l.s4 839922192
        %v2895 = vunpack.c.0.s8 %v2894
        %v2896 = vlaneseq
        %v2897 = vshrl.u32 %v2896, 7
        %v2898 = vsub.s32 %v2895, %v2897
        %v2899 = vrot.slane %v2891, %v2898
        %2901 = vset.pattern.permute.xlu0 0
        %2902 = vperm.xlu0 %2901, %v2527
        %v2903 = vpop.permute.xlu0 %2902
        %v2906 = vunpack.c.l.s4 839922192
        %v2907 = vunpack.c.0.s8 %v2906
        %v2908 = vlaneseq
        %v2909 = vshrl.u32 %v2908, 7
        %v2910 = vsub.s32 %v2907, %v2909
        %v2911 = vrot.slane %v2903, %v2910
        %v2944 = vunpack.c.l.b16 %v2539
        %v2945 = vunpack.c.l.b16 %v2551
        %v2946 = vunpack.c.l.b16 %v2563
        %v2947 = vunpack.c.l.b16 %v2575
        %v2948 = vunpack.c.l.b16 %v2587
        %v2949 = vunpack.c.l.b16 %v2599
        %v2950 = vunpack.c.l.b16 %v2611
        %v2951 = vunpack.c.l.b16 %v2623
        %v2952 = vunpack.c.l.b16 %v2635
        %v2953 = vunpack.c.l.b16 %v2647
        %v2954 = vunpack.c.l.b16 %v2659
        %v2955 = vunpack.c.l.b16 %v2671
        %v2956 = vunpack.c.l.b16 %v2683
        %v2957 = vunpack.c.l.b16 %v2695
        %v2958 = vunpack.c.l.b16 %v2707
        %v2959 = vunpack.c.l.b16 %v2719
        %v2960 = vunpack.c.l.b16 %v2731
        %v2961 = vunpack.c.l.b16 %v2743
        %v2962 = vunpack.c.l.b16 %v2755
        %v2963 = vunpack.c.l.b16 %v2767
        %v2964 = vunpack.c.l.b16 %v2779
        %v2965 = vunpack.c.l.b16 %v2791
        %v2966 = vunpack.c.l.b16 %v2803
        %v2967 = vunpack.c.l.b16 %v2815
        %v2968 = vunpack.c.l.b16 %v2827
        %v2969 = vunpack.c.l.b16 %v2839
        %v2970 = vunpack.c.l.b16 %v2851
        %v2971 = vunpack.c.l.b16 %v2863
        %v2972 = vunpack.c.l.b16 %v2875
        %v2973 = vunpack.c.l.b16 %v2887
        %v2974 = vunpack.c.l.b16 %v2899
        %v2975 = vunpack.c.l.b16 %v2911
        %v2976 = vpack.c.b16 %v2945, %v2944
        %v2977 = vpack.c.b16 %v2947, %v2946
        %v2978 = vpack.c.b16 %v2949, %v2948
        %v2979 = vpack.c.b16 %v2951, %v2950
        %v2980 = vpack.c.b16 %v2953, %v2952
        %v2981 = vpack.c.b16 %v2955, %v2954
        %v2982 = vpack.c.b16 %v2957, %v2956
        %v2983 = vpack.c.b16 %v2959, %v2958
        %v2984 = vpack.c.b16 %v2961, %v2960
        %v2985 = vpack.c.b16 %v2963, %v2962
        %v2986 = vpack.c.b16 %v2965, %v2964
        %v2987 = vpack.c.b16 %v2967, %v2966
        %v2988 = vpack.c.b16 %v2969, %v2968
        %v2989 = vpack.c.b16 %v2971, %v2970
        %v2990 = vpack.c.b16 %v2973, %v2972
        %v2991 = vpack.c.b16 %v2975, %v2974
        %v3008 = vadd.bf16 %v2464, %v2976
        %v3009 = vadd.bf16 %v2465, %v2976
        %v3010 = vadd.bf16 %v2466, %v2977
        %v3011 = vadd.bf16 %v2467, %v2977
        %v3012 = vadd.bf16 %v2468, %v2978
        %v3013 = vadd.bf16 %v2469, %v2978
        %v3014 = vadd.bf16 %v2470, %v2979
        %v3015 = vadd.bf16 %v2471, %v2979
        %v3016 = vadd.bf16 %v2472, %v2980
        %v3017 = vadd.bf16 %v2473, %v2980
        %v3018 = vadd.bf16 %v2474, %v2981
        %v3019 = vadd.bf16 %v2475, %v2981
        %v3020 = vadd.bf16 %v2476, %v2982
        %v3021 = vadd.bf16 %v2477, %v2982
        %v3022 = vadd.bf16 %v2478, %v2983
        %v3023 = vadd.bf16 %v2479, %v2983
        %v3024 = vadd.bf16 %v2480, %v2984
        %v3025 = vadd.bf16 %v2481, %v2984
        %v3026 = vadd.bf16 %v2482, %v2985
        %v3027 = vadd.bf16 %v2483, %v2985
        %v3028 = vadd.bf16 %v2484, %v2986
        %v3029 = vadd.bf16 %v2485, %v2986
        %v3030 = vadd.bf16 %v2486, %v2987
        %v3031 = vadd.bf16 %v2487, %v2987
        %v3032 = vadd.bf16 %v2488, %v2988
        %v3033 = vadd.bf16 %v2489, %v2988
        %v3034 = vadd.bf16 %v2490, %v2989
        %v3035 = vadd.bf16 %v2491, %v2989
        %v3036 = vadd.bf16 %v2492, %v2990
        %v3037 = vadd.bf16 %v2493, %v2990
        %v3038 = vadd.bf16 %v2494, %v2991
        %v3039 = vadd.bf16 %v2495, %v2991
        %v3040 = vmax.bf16 %v3008, 0
        %v3041 = vmax.bf16 %v3009, 0
        %v3042 = vmax.bf16 %v3010, 0
        %v3043 = vmax.bf16 %v3011, 0
        %v3044 = vmax.bf16 %v3012, 0
        %v3045 = vmax.bf16 %v3013, 0
        %v3046 = vmax.bf16 %v3014, 0
        %v3047 = vmax.bf16 %v3015, 0
        %v3048 = vmax.bf16 %v3016, 0
        %v3049 = vmax.bf16 %v3017, 0
        %v3050 = vmax.bf16 %v3018, 0
        %v3051 = vmax.bf16 %v3019, 0
        %v3052 = vmax.bf16 %v3020, 0
        %v3053 = vmax.bf16 %v3021, 0
        %v3054 = vmax.bf16 %v3022, 0
        %v3055 = vmax.bf16 %v3023, 0
        %v3056 = vmax.bf16 %v3024, 0
        %v3057 = vmax.bf16 %v3025, 0
        %v3058 = vmax.bf16 %v3026, 0
        %v3059 = vmax.bf16 %v3027, 0
        %v3060 = vmax.bf16 %v3028, 0
        %v3061 = vmax.bf16 %v3029, 0
        %v3062 = vmax.bf16 %v3030, 0
        %v3063 = vmax.bf16 %v3031, 0
        %v3064 = vmax.bf16 %v3032, 0
        %v3065 = vmax.bf16 %v3033, 0
        %v3066 = vmax.bf16 %v3034, 0
        %v3067 = vmax.bf16 %v3035, 0
        %v3068 = vmax.bf16 %v3036, 0
        %v3069 = vmax.bf16 %v3037, 0
        %v3070 = vmax.bf16 %v3038, 0
        %v3071 = vmax.bf16 %v3039, 0
        %v3072 = vld [vmem:[%s5] sm:$0xff]
        %v3073 = vld [vmem:[%s5 + $0x8] sm:$0xff]
        %v3074 = vld [vmem:[%s5 + $0x10] sm:$0xff]
        %v3075 = vld [vmem:[%s5 + $0x18] sm:$0xff]
        %v3076 = vld [vmem:[%s5 + $0x20] sm:$0xff]
        %v3077 = vld [vmem:[%s5 + $0x28] sm:$0xff]
        %v3078 = vld [vmem:[%s5 + $0x30] sm:$0xff]
        %v3079 = vld [vmem:[%s5 + $0x38] sm:$0xff]
        %v3080 = vld [vmem:[%s5 + $0x40] sm:$0xff]
        %v3081 = vld [vmem:[%s5 + $0x48] sm:$0xff]
        %v3082 = vld [vmem:[%s5 + $0x50] sm:$0xff]
        %v3083 = vld [vmem:[%s5 + $0x58] sm:$0xff]
        %v3084 = vld [vmem:[%s5 + $0x60] sm:$0xff]
        %v3085 = vld [vmem:[%s5 + $0x68] sm:$0xff]
        %v3086 = vld [vmem:[%s5 + $0x70] sm:$0xff]
        %v3087 = vld [vmem:[%s5 + $0x78] sm:$0xff]
        %v3104 = vunpack.c.l.b16 %v3072
        %v3105 = vunpack.c.h.b16 %v3072
        %v3106 = vunpack.c.l.b16 %v3073
        %v3107 = vunpack.c.h.b16 %v3073
        %v3108 = vunpack.c.l.b16 %v3074
        %v3109 = vunpack.c.h.b16 %v3074
        %v3110 = vunpack.c.l.b16 %v3075
        %v3111 = vunpack.c.h.b16 %v3075
        %v3112 = vunpack.c.l.b16 %v3076
        %v3113 = vunpack.c.h.b16 %v3076
        %v3114 = vunpack.c.l.b16 %v3077
        %v3115 = vunpack.c.h.b16 %v3077
        %v3116 = vunpack.c.l.b16 %v3078
        %v3117 = vunpack.c.h.b16 %v3078
        %v3118 = vunpack.c.l.b16 %v3079
        %v3119 = vunpack.c.h.b16 %v3079
        %v3120 = vunpack.c.l.b16 %v3080
        %v3121 = vunpack.c.h.b16 %v3080
        %v3122 = vunpack.c.l.b16 %v3081
        %v3123 = vunpack.c.h.b16 %v3081
        %v3124 = vunpack.c.l.b16 %v3082
        %v3125 = vunpack.c.h.b16 %v3082
        %v3126 = vunpack.c.l.b16 %v3083
        %v3127 = vunpack.c.h.b16 %v3083
        %v3128 = vunpack.c.l.b16 %v3084
        %v3129 = vunpack.c.h.b16 %v3084
        %v3130 = vunpack.c.l.b16 %v3085
        %v3131 = vunpack.c.h.b16 %v3085
        %v3132 = vunpack.c.l.b16 %v3086
        %v3133 = vunpack.c.h.b16 %v3086
        %v3134 = vunpack.c.l.b16 %v3087
        %v3135 = vunpack.c.h.b16 %v3087
        %v3136 = vpack.c.b16 %v3106, %v3104
        %v3137 = vpack.c.b16 %v3107, %v3105
        %v3138 = vpack.c.b16 %v3110, %v3108
        %v3139 = vpack.c.b16 %v3111, %v3109
        %v3140 = vpack.c.b16 %v3114, %v3112
        %v3141 = vpack.c.b16 %v3115, %v3113
        %v3142 = vpack.c.b16 %v3118, %v3116
        %v3143 = vpack.c.b16 %v3119, %v3117
        %v3144 = vpack.c.b16 %v3122, %v3120
        %v3145 = vpack.c.b16 %v3123, %v3121
        %v3146 = vpack.c.b16 %v3126, %v3124
        %v3147 = vpack.c.b16 %v3127, %v3125
        %v3148 = vpack.c.b16 %v3130, %v3128
        %v3149 = vpack.c.b16 %v3131, %v3129
        %v3150 = vpack.c.b16 %v3134, %v3132
        %v3151 = vpack.c.b16 %v3135, %v3133
        %3168 = vmatprep.subr.bf16.mxu0 %v3041
        %3169 = vmatpush1.bf16.msra.mxu0 %v3040
        %3170 = vmatprep.subr.bf16.mxu0 %v3043
        %3171 = vmatpush1.bf16.msra.mxu0 %v3042
        %3172 = vmatprep.subr.bf16.mxu0 %v3045
        %3173 = vmatpush1.bf16.msra.mxu0 %v3044
        %3174 = vmatprep.subr.bf16.mxu0 %v3047
        %3175 = vmatpush1.bf16.msra.mxu0 %v3046
        %3176 = vmatprep.subr.bf16.mxu0 %v3049
        %3177 = vmatpush1.bf16.msra.mxu0 %v3048
        %3178 = vmatprep.subr.bf16.mxu0 %v3051
        %3179 = vmatpush1.bf16.msra.mxu0 %v3050
        %3180 = vmatprep.subr.bf16.mxu0 %v3053
        %3181 = vmatpush1.bf16.msra.mxu0 %v3052
        %3182 = vmatprep.subr.bf16.mxu0 %v3055
        %3183 = vmatpush1.bf16.msra.mxu0 %v3054
        %3184 = vmatprep.subr.bf16.mxu0 %v3057
        %3185 = vmatpush1.bf16.msra.mxu0 %v3056
        %3186 = vmatprep.subr.bf16.mxu0 %v3059
        %3187 = vmatpush1.bf16.msra.mxu0 %v3058
        %3188 = vmatprep.subr.bf16.mxu0 %v3061
        %3189 = vmatpush1.bf16.msra.mxu0 %v3060
        %3190 = vmatprep.subr.bf16.mxu0 %v3063
        %3191 = vmatpush1.bf16.msra.mxu0 %v3062
        %3192 = vmatprep.subr.bf16.mxu0 %v3065
        %3193 = vmatpush1.bf16.msra.mxu0 %v3064
        %3194 = vmatprep.subr.bf16.mxu0 %v3067
        %3195 = vmatpush1.bf16.msra.mxu0 %v3066
        %3196 = vmatprep.subr.bf16.mxu0 %v3069
        %3197 = vmatpush1.bf16.msra.mxu0 %v3068
        %3198 = vmatprep.subr.bf16.mxu0 %v3071
        %3199 = vmatpush1.bf16.msra.mxu0 %v3070
        %3200 = vmatprep.mubr.bf16.mxu0 %v3137
        %3201 = vmatmul.mubr.bf16.gmra.mrb[0].mxu0 %v3136
        %v3202 = vpop.f32.mrb[0].mxu0
        %v3203 = vadd.f32 0.0, %v3202
        %v3204 = vpop.f32.mrb[0].mxu0
        %v3205 = vadd.f32 0.0, %v3204
        %v3206 = vpop.f32.mrb[0].mxu0
        %v3207 = vadd.f32 0.0, %v3206
        %v3208 = vpop.f32.mrb[0].mxu0
        %v3209 = vadd.f32 0.0, %v3208
        %3210 = vmatprep.mubr.bf16.mxu0 %v3139
        %3211 = vmatmul.mubr.bf16.gmra.mrb[0].mxu0 %v3138
        %v3212 = vpop.f32.mrb[0].mxu0
        %v3213 = vadd.f32 0.0, %v3212
        %v3214 = vpop.f32.mrb[0].mxu0
        %v3215 = vadd.f32 0.0, %v3214
        %v3216 = vpop.f32.mrb[0].mxu0
        %v3217 = vadd.f32 0.0, %v3216
        %v3218 = vpop.f32.mrb[0].mxu0
        %v3219 = vadd.f32 0.0, %v3218
        %3220 = vmatprep.mubr.bf16.mxu0 %v3141
        %3221 = vmatmul.mubr.bf16.gmra.mrb[0].mxu0 %v3140
        %v3222 = vpop.f32.mrb[0].mxu0
        %v3223 = vadd.f32 0.0, %v3222
        %v3224 = vpop.f32.mrb[0].mxu0
        %v3225 = vadd.f32 0.0, %v3224
        %v3226 = vpop.f32.mrb[0].mxu0
        %v3227 = vadd.f32 0.0, %v3226
        %v3228 = vpop.f32.mrb[0].mxu0
        %v3229 = vadd.f32 0.0, %v3228
        %3230 = vmatprep.mubr.bf16.mxu0 %v3143
        %3231 = vmatmul.mubr.bf16.gmra.mrb[0].mxu0 %v3142
        %v3232 = vpop.f32.mrb[0].mxu0
        %v3233 = vadd.f32 0.0, %v3232
        %v3234 = vpop.f32.mrb[0].mxu0
        %v3235 = vadd.f32 0.0, %v3234
        %v3236 = vpop.f32.mrb[0].mxu0
        %v3237 = vadd.f32 0.0, %v3236
        %v3238 = vpop.f32.mrb[0].mxu0
        %v3239 = vadd.f32 0.0, %v3238
        %3240 = vmatprep.mubr.bf16.mxu0 %v3145
        %3241 = vmatmul.mubr.bf16.gmra.mrb[0].mxu0 %v3144
        %v3242 = vpop.f32.mrb[0].mxu0
        %v3243 = vadd.f32 0.0, %v3242
        %v3244 = vpop.f32.mrb[0].mxu0
        %v3245 = vadd.f32 0.0, %v3244
        %v3246 = vpop.f32.mrb[0].mxu0
        %v3247 = vadd.f32 0.0, %v3246
        %v3248 = vpop.f32.mrb[0].mxu0
        %v3249 = vadd.f32 0.0, %v3248
        %3250 = vmatprep.mubr.bf16.mxu0 %v3147
        %3251 = vmatmul.mubr.bf16.gmra.mrb[0].mxu0 %v3146
        %v3252 = vpop.f32.mrb[0].mxu0
        %v3253 = vadd.f32 0.0, %v3252
        %v3254 = vpop.f32.mrb[0].mxu0
        %v3255 = vadd.f32 0.0, %v3254
        %v3256 = vpop.f32.mrb[0].mxu0
        %v3257 = vadd.f32 0.0, %v3256
        %v3258 = vpop.f32.mrb[0].mxu0
        %v3259 = vadd.f32 0.0, %v3258
        %3260 = vmatprep.mubr.bf16.mxu0 %v3149
        %3261 = vmatmul.mubr.bf16.gmra.mrb[0].mxu0 %v3148
        %v3262 = vpop.f32.mrb[0].mxu0
        %v3263 = vadd.f32 0.0, %v3262
        %v3264 = vpop.f32.mrb[0].mxu0
        %v3265 = vadd.f32 0.0, %v3264
        %v3266 = vpop.f32.mrb[0].mxu0
        %v3267 = vadd.f32 0.0, %v3266
        %v3268 = vpop.f32.mrb[0].mxu0
        %v3269 = vadd.f32 0.0, %v3268
        %3270 = vmatprep.mubr.bf16.mxu0 %v3151
        %3271 = vmatmul.mubr.bf16.gmra.mrb[0].mxu0 %v3150
        %v3272 = vpop.f32.mrb[0].mxu0
        %v3273 = vadd.f32 0.0, %v3272
        %v3274 = vpop.f32.mrb[0].mxu0
        %v3275 = vadd.f32 0.0, %v3274
        %v3276 = vpop.f32.mrb[0].mxu0
        %v3277 = vadd.f32 0.0, %v3276
        %v3278 = vpop.f32.mrb[0].mxu0
        %v3279 = vadd.f32 0.0, %v3278
        %3280 = vdwg.mxu0
        %v3281 = vpack.c.bf16 %v3207, %v3203
        %v3282 = vpack.c.bf16 %v3209, %v3205
        %v3283 = vpack.c.bf16 %v3217, %v3213
        %v3284 = vpack.c.bf16 %v3219, %v3215
        %v3285 = vpack.c.bf16 %v3227, %v3223
        %v3286 = vpack.c.bf16 %v3229, %v3225
        %v3287 = vpack.c.bf16 %v3237, %v3233
        %v3288 = vpack.c.bf16 %v3239, %v3235
        %v3289 = vpack.c.bf16 %v3247, %v3243
        %v3290 = vpack.c.bf16 %v3249, %v3245
        %v3291 = vpack.c.bf16 %v3257, %v3253
        %v3292 = vpack.c.bf16 %v3259, %v3255
        %v3293 = vpack.c.bf16 %v3267, %v3263
        %v3294 = vpack.c.bf16 %v3269, %v3265
        %v3295 = vpack.c.bf16 %v3277, %v3273
        %v3296 = vpack.c.bf16 %v3279, %v3275
        %v3297 = vld [vmem:[%s6] sm:$0xf]
        %v3298 = vld [vmem:[%s6 + $0x4] sm:$0xf]
        %v3299 = vld [vmem:[%s6 + $0x8] sm:$0xf]
        %v3300 = vld [vmem:[%s6 + $0xc] sm:$0xf]
        %v3301 = vld [vmem:[%s6 + $0x10] sm:$0xf]
        %v3302 = vld [vmem:[%s6 + $0x14] sm:$0xf]
        %v3303 = vld [vmem:[%s6 + $0x18] sm:$0xf]
        %v3304 = vld [vmem:[%s6 + $0x1c] sm:$0xf]
        %v3305 = vld [vmem:[%s6 + $0x20] sm:$0xf]
        %v3306 = vld [vmem:[%s6 + $0x24] sm:$0xf]
        %v3307 = vld [vmem:[%s6 + $0x28] sm:$0xf]
        %v3308 = vld [vmem:[%s6 + $0x2c] sm:$0xf]
        %v3309 = vld [vmem:[%s6 + $0x30] sm:$0xf]
        %v3310 = vld [vmem:[%s6 + $0x34] sm:$0xf]
        %v3311 = vld [vmem:[%s6 + $0x38] sm:$0xf]
        %v3312 = vld [vmem:[%s6 + $0x3c] sm:$0xf]
        %3314 = vset.pattern.permute.xlu0 0
        %3315 = vperm.xlu0 %3314, %v3297
        %v3316 = vpop.permute.xlu0 %3315
        %v3319 = vunpack.c.l.s4 839922192
        %v3320 = vunpack.c.0.s8 %v3319
        %v3321 = vlaneseq
        %v3322 = vshrl.u32 %v3321, 7
        %v3323 = vsub.s32 %v3320, %v3322
        %v3324 = vrot.slane %v3316, %v3323
        %3326 = vset.pattern.permute.xlu0 0
        %3327 = vperm.xlu0 %3326, %v3298
        %v3328 = vpop.permute.xlu0 %3327
        %v3331 = vunpack.c.l.s4 839922192
        %v3332 = vunpack.c.0.s8 %v3331
        %v3333 = vlaneseq
        %v3334 = vshrl.u32 %v3333, 7
        %v3335 = vsub.s32 %v3332, %v3334
        %v3336 = vrot.slane %v3328, %v3335
        %3338 = vset.pattern.permute.xlu0 0
        %3339 = vperm.xlu0 %3338, %v3299
        %v3340 = vpop.permute.xlu0 %3339
        %v3343 = vunpack.c.l.s4 839922192
        %v3344 = vunpack.c.0.s8 %v3343
        %v3345 = vlaneseq
        %v3346 = vshrl.u32 %v3345, 7
        %v3347 = vsub.s32 %v3344, %v3346
        %v3348 = vrot.slane %v3340, %v3347
        %3350 = vset.pattern.permute.xlu0 0
        %3351 = vperm.xlu0 %3350, %v3300
        %v3352 = vpop.permute.xlu0 %3351
        %v3355 = vunpack.c.l.s4 839922192
        %v3356 = vunpack.c.0.s8 %v3355
        %v3357 = vlaneseq
        %v3358 = vshrl.u32 %v3357, 7
        %v3359 = vsub.s32 %v3356, %v3358
        %v3360 = vrot.slane %v3352, %v3359
        %3362 = vset.pattern.permute.xlu0 0
        %3363 = vperm.xlu0 %3362, %v3301
        %v3364 = vpop.permute.xlu0 %3363
        %v3367 = vunpack.c.l.s4 839922192
        %v3368 = vunpack.c.0.s8 %v3367
        %v3369 = vlaneseq
        %v3370 = vshrl.u32 %v3369, 7
        %v3371 = vsub.s32 %v3368, %v3370
        %v3372 = vrot.slane %v3364, %v3371
        %3374 = vset.pattern.permute.xlu0 0
        %3375 = vperm.xlu0 %3374, %v3302
        %v3376 = vpop.permute.xlu0 %3375
        %v3379 = vunpack.c.l.s4 839922192
        %v3380 = vunpack.c.0.s8 %v3379
        %v3381 = vlaneseq
        %v3382 = vshrl.u32 %v3381, 7
        %v3383 = vsub.s32 %v3380, %v3382
        %v3384 = vrot.slane %v3376, %v3383
        %3386 = vset.pattern.permute.xlu0 0
        %3387 = vperm.xlu0 %3386, %v3303
        %v3388 = vpop.permute.xlu0 %3387
        %v3391 = vunpack.c.l.s4 839922192
        %v3392 = vunpack.c.0.s8 %v3391
        %v3393 = vlaneseq
        %v3394 = vshrl.u32 %v3393, 7
        %v3395 = vsub.s32 %v3392, %v3394
        %v3396 = vrot.slane %v3388, %v3395
        %3398 = vset.pattern.permute.xlu0 0
        %3399 = vperm.xlu0 %3398, %v3304
        %v3400 = vpop.permute.xlu0 %3399
        %v3403 = vunpack.c.l.s4 839922192
        %v3404 = vunpack.c.0.s8 %v3403
        %v3405 = vlaneseq
        %v3406 = vshrl.u32 %v3405, 7
        %v3407 = vsub.s32 %v3404, %v3406
        %v3408 = vrot.slane %v3400, %v3407
        %3410 = vset.pattern.permute.xlu0 0
        %3411 = vperm.xlu0 %3410, %v3305
        %v3412 = vpop.permute.xlu0 %3411
        %v3415 = vunpack.c.l.s4 839922192
        %v3416 = vunpack.c.0.s8 %v3415
        %v3417 = vlaneseq
        %v3418 = vshrl.u32 %v3417, 7
        %v3419 = vsub.s32 %v3416, %v3418
        %v3420 = vrot.slane %v3412, %v3419
        %3422 = vset.pattern.permute.xlu0 0
        %3423 = vperm.xlu0 %3422, %v3306
        %v3424 = vpop.permute.xlu0 %3423
        %v3427 = vunpack.c.l.s4 839922192
        %v3428 = vunpack.c.0.s8 %v3427
        %v3429 = vlaneseq
        %v3430 = vshrl.u32 %v3429, 7
        %v3431 = vsub.s32 %v3428, %v3430
        %v3432 = vrot.slane %v3424, %v3431
        %3434 = vset.pattern.permute.xlu0 0
        %3435 = vperm.xlu0 %3434, %v3307
        %v3436 = vpop.permute.xlu0 %3435
        %v3439 = vunpack.c.l.s4 839922192
        %v3440 = vunpack.c.0.s8 %v3439
        %v3441 = vlaneseq
        %v3442 = vshrl.u32 %v3441, 7
        %v3443 = vsub.s32 %v3440, %v3442
        %v3444 = vrot.slane %v3436, %v3443
        %3446 = vset.pattern.permute.xlu0 0
        %3447 = vperm.xlu0 %3446, %v3308
        %v3448 = vpop.permute.xlu0 %3447
        %v3451 = vunpack.c.l.s4 839922192
        %v3452 = vunpack.c.0.s8 %v3451
        %v3453 = vlaneseq
        %v3454 = vshrl.u32 %v3453, 7
        %v3455 = vsub.s32 %v3452, %v3454
        %v3456 = vrot.slane %v3448, %v3455
        %3458 = vset.pattern.permute.xlu0 0
        %3459 = vperm.xlu0 %3458, %v3309
        %v3460 = vpop.permute.xlu0 %3459
        %v3463 = vunpack.c.l.s4 839922192
        %v3464 = vunpack.c.0.s8 %v3463
        %v3465 = vlaneseq
        %v3466 = vshrl.u32 %v3465, 7
        %v3467 = vsub.s32 %v3464, %v3466
        %v3468 = vrot.slane %v3460, %v3467
        %3470 = vset.pattern.permute.xlu0 0
        %3471 = vperm.xlu0 %3470, %v3310
        %v3472 = vpop.permute.xlu0 %3471
        %v3475 = vunpack.c.l.s4 839922192
        %v3476 = vunpack.c.0.s8 %v3475
        %v3477 = vlaneseq
        %v3478 = vshrl.u32 %v3477, 7
        %v3479 = vsub.s32 %v3476, %v3478
        %v3480 = vrot.slane %v3472, %v3479
        %3482 = vset.pattern.permute.xlu0 0
        %3483 = vperm.xlu0 %3482, %v3311
        %v3484 = vpop.permute.xlu0 %3483
        %v3487 = vunpack.c.l.s4 839922192
        %v3488 = vunpack.c.0.s8 %v3487
        %v3489 = vlaneseq
        %v3490 = vshrl.u32 %v3489, 7
        %v3491 = vsub.s32 %v3488, %v3490
        %v3492 = vrot.slane %v3484, %v3491
        %3494 = vset.pattern.permute.xlu0 0
        %3495 = vperm.xlu0 %3494, %v3312
        %v3496 = vpop.permute.xlu0 %3495
        %v3499 = vunpack.c.l.s4 839922192
        %v3500 = vunpack.c.0.s8 %v3499
        %v3501 = vlaneseq
        %v3502 = vshrl.u32 %v3501, 7
        %v3503 = vsub.s32 %v3500, %v3502
        %v3504 = vrot.slane %v3496, %v3503
        %v3521 = vunpack.c.l.b16 %v3324
        %v3522 = vunpack.c.l.b16 %v3336
        %v3523 = vunpack.c.l.b16 %v3348
        %v3524 = vunpack.c.l.b16 %v3360
        %v3525 = vunpack.c.l.b16 %v3372
        %v3526 = vunpack.c.l.b16 %v3384
        %v3527 = vunpack.c.l.b16 %v3396
        %v3528 = vunpack.c.l.b16 %v3408
        %v3529 = vunpack.c.l.b16 %v3420
        %v3530 = vunpack.c.l.b16 %v3432
        %v3531 = vunpack.c.l.b16 %v3444
        %v3532 = vunpack.c.l.b16 %v3456
        %v3533 = vunpack.c.l.b16 %v3468
        %v3534 = vunpack.c.l.b16 %v3480
        %v3535 = vunpack.c.l.b16 %v3492
        %v3536 = vunpack.c.l.b16 %v3504
        %v3537 = vpack.c.b16 %v3522, %v3521
        %v3538 = vpack.c.b16 %v3524, %v3523
        %v3539 = vpack.c.b16 %v3526, %v3525
        %v3540 = vpack.c.b16 %v3528, %v3527
        %v3541 = vpack.c.b16 %v3530, %v3529
        %v3542 = vpack.c.b16 %v3532, %v3531
        %v3543 = vpack.c.b16 %v3534, %v3533
        %v3544 = vpack.c.b16 %v3536, %v3535
        %v3553 = vadd.bf16 %v3281, %v3537
        %v3554 = vadd.bf16 %v3282, %v3537
        %v3555 = vadd.bf16 %v3283, %v3538
        %v3556 = vadd.bf16 %v3284, %v3538
        %v3557 = vadd.bf16 %v3285, %v3539
        %v3558 = vadd.bf16 %v3286, %v3539
        %v3559 = vadd.bf16 %v3287, %v3540
        %v3560 = vadd.bf16 %v3288, %v3540
        %v3561 = vadd.bf16 %v3289, %v3541
        %v3562 = vadd.bf16 %v3290, %v3541
        %v3563 = vadd.bf16 %v3291, %v3542
        %v3564 = vadd.bf16 %v3292, %v3542
        %v3565 = vadd.bf16 %v3293, %v3543
        %v3566 = vadd.bf16 %v3294, %v3543
        %v3567 = vadd.bf16 %v3295, %v3544
        %v3568 = vadd.bf16 %v3296, %v3544
        %v3569 = vmax.bf16 %v3553, 0
        %v3570 = vmax.bf16 %v3554, 0
        %v3571 = vmax.bf16 %v3555, 0
        %v3572 = vmax.bf16 %v3556, 0
        %v3573 = vmax.bf16 %v3557, 0
        %v3574 = vmax.bf16 %v3558, 0
        %v3575 = vmax.bf16 %v3559, 0
        %v3576 = vmax.bf16 %v3560, 0
        %v3577 = vmax.bf16 %v3561, 0
        %v3578 = vmax.bf16 %v3562, 0
        %v3579 = vmax.bf16 %v3563, 0
        %v3580 = vmax.bf16 %v3564, 0
        %v3581 = vmax.bf16 %v3565, 0
        %v3582 = vmax.bf16 %v3566, 0
        %v3583 = vmax.bf16 %v3567, 0
        %v3584 = vmax.bf16 %v3568, 0
        %v3585 = vld [vmem:[%s7] sm:$0x1]
        %s3586 = sld [smem:[#allocation2]]
        %v3587 = vstv %s3586
        %3588 = vmatprep.subr.bf16.mxu0 %v3570
        %3589 = vmatpush1.bf16.msra.mxu0 %v3569
        %3590 = vmatprep.subr.bf16.mxu0 %v3572
        %3591 = vmatpush1.bf16.msra.mxu0 %v3571
        %3592 = vmatprep.subr.bf16.mxu0 %v3574
        %3593 = vmatpush1.bf16.msra.mxu0 %v3573
        %3594 = vmatprep.subr.bf16.mxu0 %v3576
        %3595 = vmatpush1.bf16.msra.mxu0 %v3575
        %3596 = vmatprep.subr.bf16.mxu0 %v3578
        %3597 = vmatpush1.bf16.msra.mxu0 %v3577
        %3598 = vmatprep.subr.bf16.mxu0 %v3580
        %3599 = vmatpush1.bf16.msra.mxu0 %v3579
        %3600 = vmatprep.subr.bf16.mxu0 %v3582
        %3601 = vmatpush1.bf16.msra.mxu0 %v3581
        %3602 = vmatprep.subr.bf16.mxu0 %v3584
        %3603 = vmatpush1.bf16.msra.mxu0 %v3583
        %3604 = vmatprep.subr.bf16.mxu0 0
        %3605 = vmatpush1.bf16.msra.mxu0 0
        %3606 = vmatprep.subr.bf16.mxu0 0
        %3607 = vmatpush1.bf16.msra.mxu0 0
        %3608 = vmatprep.subr.bf16.mxu0 0
        %3609 = vmatpush1.bf16.msra.mxu0 0
        %3610 = vmatprep.subr.bf16.mxu0 0
        %3611 = vmatpush1.bf16.msra.mxu0 0
        %3612 = vmatprep.subr.bf16.mxu0 0
        %3613 = vmatpush1.bf16.msra.mxu0 0
        %3614 = vmatprep.subr.bf16.mxu0 0
        %3615 = vmatpush1.bf16.msra.mxu0 0
        %3616 = vmatprep.subr.bf16.mxu0 0
        %3617 = vmatpush1.bf16.msra.mxu0 0
        %3618 = vmatprep.subr.bf16.mxu0 0
        %3619 = vmatpush1.bf16.msra.mxu0 0
        %3620 = vmatprep.mubr.bf16.mxu0 0
        %3621 = vmatmul.mubr.bf16.gmra.mrb[0].mxu0 %v3585
        %v3622 = vpop.f32.mrb[0].mxu0
        %v3623 = vadd.f32 %v3587, %v3622
        %v3624 = vpop.f32.mrb[0].mxu0
        %v3625 = vadd.f32 %v3587, %v3624
        %v3626 = vpop.f32.mrb[0].mxu0
        %v3627 = vpop.f32.mrb[0].mxu0
        %3628 = vdwg.mxu0
        %v3629 = vmul.f32 %v3623, 1.442695
        %v3630 = vpow.pop %v3629
        %v3631 = vmul.f32 %v3625, 1.442695
        %v3632 = vpow.pop %v3631
        %v3633 = vadd.f32 %v3630, 1.0
        %v3634 = vadd.f32 %v3632, 1.0
        %v3635 = vrcp.pop %v3633
        %v3636 = vrcp.pop %v3634
        %v3639 = vcombine.low %v3635, %v3636
        %v3641 = vunpack.c.l.s4 1966171168
        %v3642 = vunpack.c.0.s8 %v3641
        %v3643 = vlaneseq
        %v3644 = vshrl.u32 %v3643, 7
        %v3645 = vsub.s32 %v3642, %v3644
        %v3646 = vrot.slane %v3639, %v3645
        %v3648 = vunpack.c.l.s4 1966171168
        %v3649 = vunpack.c.0.s8 %v3648
        %v3650 = vlaneseq
        %v3651 = vshrl.u32 %v3650, 7
        %v3652 = vsub.s32 %v3649, %v3651
        %v3653 = vrot.slane %v3646, %v3652
        %v3655 = vlaneseq
        %vm3656 = vcmp.ge.s32.totalorder %v3655, 0
        %vm3657 = vcmp.lt.s32.totalorder %v3655, 256
        %vm3658 = vmand %vm3656, %vm3657
        %3659 = vst.msk [vmem:[%s311] sm:$0x3] %vm3658, %v3653
        %s3660 = sand.u32 %s221, 1
        %s3661 = scalar_lea.sflag [#allocation4], %s3660
        %s3662 = sand.u32 %s221, 1
        %s3663 = smul.addr %s3662, 2
        %s3664 = scalar_lea.vmem [#allocation3], %s3663
        // Predicated region
        $region57: #{tpu_custom_call.1} parent=55 // pred_check
          %p3665 = pneg %p231
        $region58: #{tpu_custom_call.1} parent=55 // pred_check_branch
          %3667 = sbr.rel (%p3665) target = $region60
        $region59: #{tpu_custom_call.1} parent=55 // pred_region
          %s3668 = smul.u32 2, %s24
          %s3670 = ssub.s32 32, 32
          %3671 = vsyncadd %s3661, %s3670
          %s3672 = smul.addr %s3668, 16
          %s3673 = scalar_lea.hbm %s9, %s3672
          %s3675 = sshll.u32 %s3664, 4
          %s3676 = int_to_ptr.vmem [resolvable:$true] %s3675
          %3678 = dma.vmem_to_hbm [thread:$0]  %s3676, 32, %s3673, %s3661
        $region60: #{tpu_custom_call.1} parent=55 // pred_fallthru
          _
      $region56: #{tpu_custom_call.1} parent=5 // pred_fallthru
        _
      %p3679 = scmp.le.s32.totalorder 2, %s19
      // Predicated region
      $region61: #{tpu_custom_call.1} parent=5 // pred_check
        %p3680 = pneg %p3679
      $region62: #{tpu_custom_call.1} parent=5 // pred_check_branch
        %3682 = sbr.rel (%p3680) target = $region64
      $region63: #{tpu_custom_call.1} parent=5 // pred_region
        %s3683 = ssub.s32 %s19, 2
        // Predicated region
        $region65: #{tpu_custom_call.1} parent=63 // pred_check
          %p3684 = pneg %p237
        $region66: #{tpu_custom_call.1} parent=63 // pred_check_branch
          %3686 = sbr.rel (%p3684) target = $region68
        $region67: #{tpu_custom_call.1} parent=63 // pred_region
          %s3687 = sand.u32 %s222, 1
          %s3688 = scalar_lea.sflag [#allocation4], %s3687
          %s3689 = sand.u32 %s222, 1
          %s3690 = smul.addr %s3689, 2
          %s3691 = scalar_lea.vmem [#allocation3], %s3690
          %3692 = dma.done %s3688, 32
        $region68: #{tpu_custom_call.1} parent=63 // pred_fallthru
          _
      $region64: #{tpu_custom_call.1} parent=5 // pred_fallthru
        _
    $region6: #{tpu_custom_call.1} parent=1 // loop_footer
      %s23 = sadd.s32 1, %s19
    $region7: #{tpu_custom_call.1} parent=1 // loop_footer_branch
      %18 = sbr.rel target = $region3
    $region8: #{tpu_custom_call.1} parent=1 // loop_exit
      _
    %3693 = vsyncpa [#allocation4], 1
    %s3694 = scalar_lea.sflag [#allocation4], 1
    %3695 = vsyncpa %s3694, 1

</llo_original>
